<compile_context>
chip_gen: v7x
topology: tpu7x:2x2x1
jax: 0.10.0
libtpu: 0.0.40
codegen_flags: <defaults>
</compile_context>

<pallas_src>
import functools
import numpy as np
import jax
import jax.numpy as jnp
from jax import lax
from jax.experimental import pallas as pl
from jax.experimental.pallas import tpu as pltpu


# --------------------------- fused Pallas kernel ---------------------------

def _orient_kernel(x_ref, mh_ref, mwt_ref,
                   wsw_ref, bw_ref, wsh_ref, bh_ref, wf_ref,
                   att_ref, xhw_ref, *, c, p, kh, kw, d, Hw, Wh):
    """One batch element per grid step; everything stays in VMEM / vregs.

    x_ref  : (1, c, h, w)  VMEM   input image
    mh_ref : (h, Hw)       VMEM   height interpolation matrix
    mwt_ref: (Wh, w)       VMEM   width interpolation matrix (transposed)
    wsw_ref: (p, c*kh)     SMEM   atrous_w weights (BN scale folded in)
    bw_ref : (p,)          SMEM   atrous_w folded BN bias
    wsh_ref: (p, c*kw)     SMEM   atrous_h weights (BN scale folded in)
    bh_ref : (p,)          SMEM   atrous_h folded BN bias
    wf_ref : (c, 9*p)      SMEM   3x3 fuse weights, [co, (ki*3 + kj)*p + pi]
    att_ref: (1, 1, h, w)  VMEM   sigmoid(H-W attention)
    xhw_ref: (1, c, h, w)  VMEM   fuse1(relu(up_h + up_w)) + x
    """
    f32 = jnp.float32
    h = x_ref.shape[2]
    w = x_ref.shape[3]

    # ---- load the input channels once (also the residual) -----------------
    xc = [x_ref[0, ci] for ci in range(c)]                       # (h, w) each

    # tap windows reused by every output channel (static slices, no copies of
    # x in HBM, no im2col)
    slc_w = [[xc[ci][r * d:r * d + Hw, :] for r in range(kh)] for ci in range(c)]
    slc_h = [[xc[ci][:, r * d:r * d + Wh] for r in range(kw)] for ci in range(c)]

    # ---- atrous_w / atrous_h (+ folded BN bias + ReLU6) --------------------
    # K = c*k = 12 taps: done as scalar-broadcast FMAs on the VPU (zero
    # redundant FLOPs, no reshapes / relayouts); scalar weights live in SMEM.
    xw, xh = [], []                                   # p x (Hw, w), p x (h, Wh)
    for pi in range(p):
        aw = jnp.zeros((Hw, w), f32)
        ah = jnp.zeros((h, Wh), f32)
        for ci in range(c):
            for r in range(kh):
                aw = aw + wsw_ref[pi, ci * kh + r] * slc_w[ci][r]
            for r in range(kw):
                ah = ah + wsh_ref[pi, ci * kw + r] * slc_h[ci][r]
        xw.append(jnp.clip(aw + bw_ref[pi], 0.0, 6.0))
        xh.append(jnp.clip(ah + bh_ref[pi], 0.0, 6.0))

    # ---- H-W attention ------------------------------------------------------
    # torch: bmm(xh_t, xw_t)[i,k] = sum_{m,pi} xh[pi,i,m] * xw[pi,m,k]
    #                             = sum_pi (xh[pi] @ xw[pi])[i,k]
    s = jnp.dot(xh[0], xw[0], preferred_element_type=f32)
    for pi in range(1, p):
        s = s + jnp.dot(xh[pi], xw[pi], preferred_element_type=f32)
    # +1e-10*eye dropped: below f32 resolution of the sigmoid argument.
    s = jnp.clip(s, -30.0, 30.0)
    att_ref[0, 0] = pl.reciprocal(1.0 + jnp.exp(-s), approx=True)

    # ---- bilinear upsample (align_corners=True), add, ReLU ------------------
    mh = mh_ref[...]                                             # (h, Hw)
    mwt = mwt_ref[...]                                           # (Wh, w)
    y = []
    for pi in range(p):
        up = (jnp.dot(xh[pi], mwt, preferred_element_type=f32)
              + jnp.dot(mh, xw[pi], preferred_element_type=f32))
        y.append(jnp.maximum(up, 0.0))                           # (h, w)

    # ---- 3x3 fuse conv (padding=1) + residual -------------------------------
    # Shifted taps with explicit zero boundaries (slice + zero-pad concat);
    # row shifts shared across the three column offsets.
    taps = {}
    for di in (-1, 0, 1):
        rowshift = []
        for pi in range(p):
            t = y[pi]
            if di > 0:
                t = jnp.concatenate([t[di:, :], jnp.zeros((di, w), f32)], axis=0)
            elif di < 0:
                t = jnp.concatenate([jnp.zeros((-di, w), f32), t[:h + di, :]],
                                    axis=0)
            rowshift.append(t)
        for dj in (-1, 0, 1):
            tk = []
            for pi in range(p):
                t = rowshift[pi]
                if dj > 0:
                    t = jnp.concatenate([t[:, dj:], jnp.zeros((h, dj), f32)],
                                        axis=1)
                elif dj < 0:
                    t = jnp.concatenate([jnp.zeros((h, -dj), f32), t[:, :w + dj]],
                                        axis=1)
                tk.append(t)
            taps[(di, dj)] = tk

    for co in range(c):
        acc = xc[co]                                             # residual add
        for ki in range(3):
            for kj in range(3):
                tk = taps[(ki - 1, kj - 1)]
                for pi in range(p):
                    acc = acc + wf_ref[co, (ki * 3 + kj) * p + pi] * tk[pi]
        xhw_ref[0, co] = acc


# ----------------------------- plain-JAX glue -----------------------------

def _interp_matrix(n_out, n_in):
    # 1-D bilinear interpolation matrix, align_corners=True:  out = M @ in
    m = np.zeros((n_out, n_in), np.float32)
    if n_in == 1 or n_out == 1:
        m[:, 0] = 1.0
        return m
    src = np.arange(n_out, dtype=np.float64) * (n_in - 1) / (n_out - 1)
    low = np.clip(np.floor(src).astype(np.int64), 0, n_in - 2)
    frac = (src - low).astype(np.float32)
    m[np.arange(n_out), low] = 1.0 - frac
    m[np.arange(n_out), low + 1] += frac
    return m


def _fold_bn(bn, eps=1e-5):
    scale = bn["gamma"] / jnp.sqrt(bn["var"] + eps)
    bias = bn["beta"] - bn["mean"] * scale
    return scale, bias


def init_orient_params(key, inplanes, planes, kh, kw):
    k1, k2, k3 = jax.random.split(key, 3)
    # Synthetic parameters.  The atrous weights carry an extra 0.2 factor so
    # the attention logits stay in a well-conditioned (non-saturated) range.
    params = {
        # Conv2d(inplanes, planes, (kh, 1), bias=False)
        "w_atrous_w": 0.2 * jax.random.normal(
            k1, (planes, inplanes, kh, 1), jnp.float32) / np.sqrt(inplanes * kh),
        # Conv2d(inplanes, planes, (1, kw), bias=False)
        "w_atrous_h": 0.2 * jax.random.normal(
            k2, (planes, inplanes, 1, kw), jnp.float32) / np.sqrt(inplanes * kw),
        # Conv2d(planes, inplanes, 3, padding=1, bias=False)
        "w_fuse1": jax.random.normal(
            k3, (inplanes, planes, 3, 3), jnp.float32) / np.sqrt(planes * 9),
    }
    ar = jnp.arange(planes, dtype=jnp.float32)
    for name in ("bn_w", "bn_h"):
        params[name] = dict(gamma=1.0 + 0.05 * ar, beta=0.01 * ar,
                            mean=0.02 * ar, var=1.0 + 0.1 * ar)
    return params


def orient_forward(params, x, kh, kw, dilation=1):
    b, c, h, w = x.shape
    d = dilation
    p = params["w_atrous_w"].shape[0]
    Hw = h - d * (kh - 1)                 # atrous_w output height
    Wh = w - d * (kw - 1)                 # atrous_h output width
    # torch bmm contracts Wh*p against Hw*p -> the two must match
    assert Hw == Wh and Hw >= 1, "need h - d*(kh-1) == w - d*(kw-1) >= 1"
    f32 = jnp.float32

    # fold BN (inference stats) into scale/bias; pre-multiply the scale into
    # the conv weights so the kernel only adds the bias.
    sw, bw = _fold_bn(params["bn_w"])
    sh, bh = _fold_bn(params["bn_h"])
    wsw = (params["w_atrous_w"].reshape(p, c, kh)
           * sw[:, None, None]).reshape(p, c * kh).astype(f32)
    wsh = (params["w_atrous_h"].reshape(p, c, kw)
           * sh[:, None, None]).reshape(p, c * kw).astype(f32)
    # 3x3 fuse weights, indexed [co, (ki*3 + kj)*p + pi]
    wf = jnp.transpose(params["w_fuse1"], (0, 2, 3, 1)).reshape(c, 9 * p)

    # separable bilinear (align_corners=True) interpolation matrices (tiny)
    mh = jnp.asarray(_interp_matrix(h, Hw))          # (h, Hw)
    mwt = jnp.asarray(_interp_matrix(w, Wh).T)       # (Wh, w)

    kernel = functools.partial(_orient_kernel, c=c, p=p, kh=kh, kw=kw,
                               d=d, Hw=Hw, Wh=Wh)
    smem_specs = [pl.BlockSpec(memory_space=pltpu.MemorySpace.SMEM)
                  for _ in range(5)]
    att, xhw = pl.pallas_call(
        kernel,
        out_shape=(jax.ShapeDtypeStruct((b, 1, h, w), f32),
                   jax.ShapeDtypeStruct((b, c, h, w), f32)),
        grid=(b,),
        in_specs=[
            pl.BlockSpec((1, c, h, w), lambda i: (i, 0, 0, 0)),   # x (fed once)
            pl.BlockSpec((h, Hw), lambda i: (0, 0)),              # mh
            pl.BlockSpec((Wh, w), lambda i: (0, 0)),              # mw^T
            *smem_specs,                                          # scalar params
        ],
        out_specs=(pl.BlockSpec((1, 1, h, w), lambda i: (i, 0, 0, 0)),
                   pl.BlockSpec((1, c, h, w), lambda i: (i, 0, 0, 0))),
        # "parallel" lets the runtime shard batch across cores where available;
        # pltpu.CORE_PARALLEL / core_map would force the 2-TC split on v7x.
        compiler_params=pltpu.CompilerParams(
            dimension_semantics=("parallel",)),
    )(x, mh, mwt, wsw, bw.astype(f32), wsh, bh.astype(f32), wf)
    return att, xhw


# --------------------- pure-JAX reference (for checking) -------------------

def _conv_nchw(x, w_, padding, dil):
    return lax.conv_general_dilated(
        x, w_, window_strides=(1, 1), padding=padding,
        rhs_dilation=(dil, dil),
        dimension_numbers=("NCHW", "OIHW", "NCHW"),
        precision=lax.Precision.HIGHEST)


def orient_reference(params, x, kh, kw, dilation=1):
    b, c, h, w = x.shape
    d = dilation
    sw, bw = _fold_bn(params["bn_w"])
    sh, bh = _fold_bn(params["bn_h"])
    xw = _conv_nchw(x, params["w_atrous_w"], "VALID", d)
    xw = jnp.clip(xw * sw[None, :, None, None] + bw[None, :, None, None], 0.0, 6.0)
    xh = _conv_nchw(x, params["w_atrous_h"], "VALID", d)
    xh = jnp.clip(xh * sh[None, :, None, None] + bh[None, :, None, None], 0.0, 6.0)
    p = xw.shape[1]
    Hw, Wh = xw.shape[2], xh.shape[3]
    xh_t = jnp.transpose(
        jnp.transpose(xh, (0, 3, 1, 2)).reshape(b, Wh * p, h), (0, 2, 1))
    xw_t = jnp.transpose(xw, (0, 2, 1, 3)).reshape(b, Hw * p, w)
    s = jnp.einsum("bij,bjk->bik", xh_t, xw_t, precision=lax.Precision.HIGHEST)
    att = jax.nn.sigmoid(s + 1e-10 * jnp.eye(h, w, dtype=x.dtype))
    mw = jnp.asarray(_interp_matrix(w, Wh))
    mh = jnp.asarray(_interp_matrix(h, Hw))
    up_h = jnp.einsum("bphm,wm->bphw", xh, mw, precision=lax.Precision.HIGHEST)
    up_w = jnp.einsum("hm,bpmw->bphw", mh, xw, precision=lax.Precision.HIGHEST)
    y = jnp.maximum(up_h + up_w, 0.0)
    xhw = _conv_nchw(y, params["w_fuse1"], ((1, 1), (1, 1)), 1) + x
    return att[:, None], xhw


# ----------------------------- main -----------------------------

if __name__ == "__main__":
    inplanes, planes, kh, kw = 4, 4, 3, 3
    b, h, w = 2, 16, 16                      # square + kh == kw so bmm dims match

    key = jax.random.PRNGKey(0)
    kx, kp = jax.random.split(key)
    x = jax.random.normal(kx, (b, inplanes, h, w), jnp.float32)
    params = init_orient_params(kp, inplanes, planes, kh, kw)

    fwd = jax.jit(functools.partial(orient_forward, kh=kh, kw=kw, dilation=1))
    att, xhw = fwd(params, x)
    jax.block_until_ready((att, xhw))

    assert att.shape == (b, 1, h, w), att.shape
    assert xhw.shape == (b, inplanes, h, w), xhw.shape
    assert bool(jnp.all(jnp.isfinite(att))) and bool(jnp.all(jnp.isfinite(xhw)))
    # sigmoid range (loose bound: approx reciprocal may over/undershoot by ~1e-4)
    assert bool(jnp.all(att >= -1e-3)) and bool(jnp.all(att <= 1.0 + 1e-3))

    # cross-check the fused kernel against a pure-JAX/XLA reference
    att_r, xhw_r = jax.jit(
        functools.partial(orient_reference, kh=kh, kw=kw, dilation=1))(params, x)
    np.testing.assert_allclose(np.asarray(att), np.asarray(att_r),
                               rtol=2e-2, atol=2e-2)
    np.testing.assert_allclose(np.asarray(xhw), np.asarray(xhw_r),
                               rtol=2e-2, atol=2e-2)

    print("KERNEL_OK")
</pallas_src>

<mosaic_0001>
module attributes {stable_mosaic.version = 11 : i64} {
  func.func @_orient_kernel(%arg0: i32, %arg1: memref<1x4x16x16xf32, #tpu.memory_space<vmem>>, %arg2: memref<16x14xf32, #tpu.memory_space<vmem>>, %arg3: memref<14x16xf32, #tpu.memory_space<vmem>>, %arg4: memref<4x12xf32, #tpu.memory_space<smem>>, %arg5: memref<4xf32, #tpu.memory_space<smem>>, %arg6: memref<4x12xf32, #tpu.memory_space<smem>>, %arg7: memref<4xf32, #tpu.memory_space<smem>>, %arg8: memref<4x36xf32, #tpu.memory_space<smem>>, %arg9: memref<1x1x16x16xf32, #tpu.memory_space<vmem>>, %arg10: memref<1x4x16x16xf32, #tpu.memory_space<vmem>>) attributes {dimension_semantics = [#tpu.dimension_semantics<parallel>], iteration_bounds = array<i64: 2>, scalar_prefetch = 0 : i64, scratch_operands = 0 : i64, tpu.core_type = #tpu.core_type<tc>, window_params = [{transform_indices = @transform_0, window_bounds = array<i64: 1, 4, 16, 16>}, {pipeline_mode = #tpu.pipeline_mode<synchronous>, transform_indices = @transform_1, window_bounds = array<i64: 16, 14>}, {pipeline_mode = #tpu.pipeline_mode<synchronous>, transform_indices = @transform_2, window_bounds = array<i64: 14, 16>}, {transform_indices = @transform_3, window_bounds = array<i64: 4, 12>}, {transform_indices = @transform_4, window_bounds = array<i64: 4>}, {transform_indices = @transform_5, window_bounds = array<i64: 4, 12>}, {transform_indices = @transform_6, window_bounds = array<i64: 4>}, {transform_indices = @transform_7, window_bounds = array<i64: 4, 36>}, {transform_indices = @transform_8, window_bounds = array<i64: 1, 1, 16, 16>}, {transform_indices = @transform_9, window_bounds = array<i64: 1, 4, 16, 16>}]} {
    %c0 = arith.constant 0 : index
    %c0_0 = arith.constant 0 : index
    %c0_1 = arith.constant 0 : index
    %c0_2 = arith.constant 0 : index
    %0 = vector.load %arg1[%c0, %c0_0, %c0_1, %c0_2] : memref<1x4x16x16xf32, #tpu.memory_space<vmem>>, vector<1x1x16x16xf32>
    %1 = vector.shape_cast %0 : vector<1x1x16x16xf32> to vector<16x16xf32>
    %c0_3 = arith.constant 0 : index
    %c1 = arith.constant 1 : index
    %c0_4 = arith.constant 0 : index
    %c0_5 = arith.constant 0 : index
    %2 = vector.load %arg1[%c0_3, %c1, %c0_4, %c0_5] : memref<1x4x16x16xf32, #tpu.memory_space<vmem>>, vector<1x1x16x16xf32>
    %3 = vector.shape_cast %2 : vector<1x1x16x16xf32> to vector<16x16xf32>
    %c0_6 = arith.constant 0 : index
    %c2 = arith.constant 2 : index
    %c0_7 = arith.constant 0 : index
    %c0_8 = arith.constant 0 : index
    %4 = vector.load %arg1[%c0_6, %c2, %c0_7, %c0_8] : memref<1x4x16x16xf32, #tpu.memory_space<vmem>>, vector<1x1x16x16xf32>
    %5 = vector.shape_cast %4 : vector<1x1x16x16xf32> to vector<16x16xf32>
    %c0_9 = arith.constant 0 : index
    %c3 = arith.constant 3 : index
    %c0_10 = arith.constant 0 : index
    %c0_11 = arith.constant 0 : index
    %6 = vector.load %arg1[%c0_9, %c3, %c0_10, %c0_11] : memref<1x4x16x16xf32, #tpu.memory_space<vmem>>, vector<1x1x16x16xf32>
    %7 = vector.shape_cast %6 : vector<1x1x16x16xf32> to vector<16x16xf32>
    %8 = vector.extract_strided_slice %1 {offsets = [0, 0], sizes = [14, 16], strides = [1, 1]} : vector<16x16xf32> to vector<14x16xf32>
    %9 = vector.extract_strided_slice %1 {offsets = [1, 0], sizes = [14, 16], strides = [1, 1]} : vector<16x16xf32> to vector<14x16xf32>
    %10 = vector.extract_strided_slice %1 {offsets = [2, 0], sizes = [14, 16], strides = [1, 1]} : vector<16x16xf32> to vector<14x16xf32>
    %11 = vector.extract_strided_slice %3 {offsets = [0, 0], sizes = [14, 16], strides = [1, 1]} : vector<16x16xf32> to vector<14x16xf32>
    %12 = vector.extract_strided_slice %3 {offsets = [1, 0], sizes = [14, 16], strides = [1, 1]} : vector<16x16xf32> to vector<14x16xf32>
    %13 = vector.extract_strided_slice %3 {offsets = [2, 0], sizes = [14, 16], strides = [1, 1]} : vector<16x16xf32> to vector<14x16xf32>
    %14 = vector.extract_strided_slice %5 {offsets = [0, 0], sizes = [14, 16], strides = [1, 1]} : vector<16x16xf32> to vector<14x16xf32>
    %15 = vector.extract_strided_slice %5 {offsets = [1, 0], sizes = [14, 16], strides = [1, 1]} : vector<16x16xf32> to vector<14x16xf32>
    %16 = vector.extract_strided_slice %5 {offsets = [2, 0], sizes = [14, 16], strides = [1, 1]} : vector<16x16xf32> to vector<14x16xf32>
    %17 = vector.extract_strided_slice %7 {offsets = [0, 0], sizes = [14, 16], strides = [1, 1]} : vector<16x16xf32> to vector<14x16xf32>
    %18 = vector.extract_strided_slice %7 {offsets = [1, 0], sizes = [14, 16], strides = [1, 1]} : vector<16x16xf32> to vector<14x16xf32>
    %19 = vector.extract_strided_slice %7 {offsets = [2, 0], sizes = [14, 16], strides = [1, 1]} : vector<16x16xf32> to vector<14x16xf32>
    %20 = vector.extract_strided_slice %1 {offsets = [0, 0], sizes = [16, 14], strides = [1, 1]} : vector<16x16xf32> to vector<16x14xf32>
    %21 = vector.extract_strided_slice %1 {offsets = [0, 1], sizes = [16, 14], strides = [1, 1]} : vector<16x16xf32> to vector<16x14xf32>
    %22 = vector.extract_strided_slice %1 {offsets = [0, 2], sizes = [16, 14], strides = [1, 1]} : vector<16x16xf32> to vector<16x14xf32>
    %23 = vector.extract_strided_slice %3 {offsets = [0, 0], sizes = [16, 14], strides = [1, 1]} : vector<16x16xf32> to vector<16x14xf32>
    %24 = vector.extract_strided_slice %3 {offsets = [0, 1], sizes = [16, 14], strides = [1, 1]} : vector<16x16xf32> to vector<16x14xf32>
    %25 = vector.extract_strided_slice %3 {offsets = [0, 2], sizes = [16, 14], strides = [1, 1]} : vector<16x16xf32> to vector<16x14xf32>
    %26 = vector.extract_strided_slice %5 {offsets = [0, 0], sizes = [16, 14], strides = [1, 1]} : vector<16x16xf32> to vector<16x14xf32>
    %27 = vector.extract_strided_slice %5 {offsets = [0, 1], sizes = [16, 14], strides = [1, 1]} : vector<16x16xf32> to vector<16x14xf32>
    %28 = vector.extract_strided_slice %5 {offsets = [0, 2], sizes = [16, 14], strides = [1, 1]} : vector<16x16xf32> to vector<16x14xf32>
    %29 = vector.extract_strided_slice %7 {offsets = [0, 0], sizes = [16, 14], strides = [1, 1]} : vector<16x16xf32> to vector<16x14xf32>
    %30 = vector.extract_strided_slice %7 {offsets = [0, 1], sizes = [16, 14], strides = [1, 1]} : vector<16x16xf32> to vector<16x14xf32>
    %31 = vector.extract_strided_slice %7 {offsets = [0, 2], sizes = [16, 14], strides = [1, 1]} : vector<16x16xf32> to vector<16x14xf32>
    %cst = arith.constant 0.000000e+00 : f32
    %32 = vector.broadcast %cst : f32 to vector<14x16xf32>
    %cst_12 = arith.constant 0.000000e+00 : f32
    %33 = vector.broadcast %cst_12 : f32 to vector<16x14xf32>
    %c0_13 = arith.constant 0 : index
    %c0_14 = arith.constant 0 : index
    %34 = memref.load %arg4[%c0_13, %c0_14] : memref<4x12xf32, #tpu.memory_space<smem>>
    %35 = vector.broadcast %34 : f32 to vector<14x16xf32>
    %36 = arith.mulf %35, %8 : vector<14x16xf32>
    %37 = arith.addf %32, %36 : vector<14x16xf32>
    %c0_15 = arith.constant 0 : index
    %c1_16 = arith.constant 1 : index
    %38 = memref.load %arg4[%c0_15, %c1_16] : memref<4x12xf32, #tpu.memory_space<smem>>
    %39 = vector.broadcast %38 : f32 to vector<14x16xf32>
    %40 = arith.mulf %39, %9 : vector<14x16xf32>
    %41 = arith.addf %37, %40 : vector<14x16xf32>
    %c0_17 = arith.constant 0 : index
    %c2_18 = arith.constant 2 : index
    %42 = memref.load %arg4[%c0_17, %c2_18] : memref<4x12xf32, #tpu.memory_space<smem>>
    %43 = vector.broadcast %42 : f32 to vector<14x16xf32>
    %44 = arith.mulf %43, %10 : vector<14x16xf32>
    %45 = arith.addf %41, %44 : vector<14x16xf32>
    %c0_19 = arith.constant 0 : index
    %c0_20 = arith.constant 0 : index
    %46 = memref.load %arg6[%c0_19, %c0_20] : memref<4x12xf32, #tpu.memory_space<smem>>
    %47 = vector.broadcast %46 : f32 to vector<16x14xf32>
    %48 = arith.mulf %47, %20 : vector<16x14xf32>
    %49 = arith.addf %33, %48 : vector<16x14xf32>
    %c0_21 = arith.constant 0 : index
    %c1_22 = arith.constant 1 : index
    %50 = memref.load %arg6[%c0_21, %c1_22] : memref<4x12xf32, #tpu.memory_space<smem>>
    %51 = vector.broadcast %50 : f32 to vector<16x14xf32>
    %52 = arith.mulf %51, %21 : vector<16x14xf32>
    %53 = arith.addf %49, %52 : vector<16x14xf32>
    %c0_23 = arith.constant 0 : index
    %c2_24 = arith.constant 2 : index
    %54 = memref.load %arg6[%c0_23, %c2_24] : memref<4x12xf32, #tpu.memory_space<smem>>
    %55 = vector.broadcast %54 : f32 to vector<16x14xf32>
    %56 = arith.mulf %55, %22 : vector<16x14xf32>
    %57 = arith.addf %53, %56 : vector<16x14xf32>
    %c0_25 = arith.constant 0 : index
    %c3_26 = arith.constant 3 : index
    %58 = memref.load %arg4[%c0_25, %c3_26] : memref<4x12xf32, #tpu.memory_space<smem>>
    %59 = vector.broadcast %58 : f32 to vector<14x16xf32>
    %60 = arith.mulf %59, %11 : vector<14x16xf32>
    %61 = arith.addf %45, %60 : vector<14x16xf32>
    %c0_27 = arith.constant 0 : index
    %c4 = arith.constant 4 : index
    %62 = memref.load %arg4[%c0_27, %c4] : memref<4x12xf32, #tpu.memory_space<smem>>
    %63 = vector.broadcast %62 : f32 to vector<14x16xf32>
    %64 = arith.mulf %63, %12 : vector<14x16xf32>
    %65 = arith.addf %61, %64 : vector<14x16xf32>
    %c0_28 = arith.constant 0 : index
    %c5 = arith.constant 5 : index
    %66 = memref.load %arg4[%c0_28, %c5] : memref<4x12xf32, #tpu.memory_space<smem>>
    %67 = vector.broadcast %66 : f32 to vector<14x16xf32>
    %68 = arith.mulf %67, %13 : vector<14x16xf32>
    %69 = arith.addf %65, %68 : vector<14x16xf32>
    %c0_29 = arith.constant 0 : index
    %c3_30 = arith.constant 3 : index
    %70 = memref.load %arg6[%c0_29, %c3_30] : memref<4x12xf32, #tpu.memory_space<smem>>
    %71 = vector.broadcast %70 : f32 to vector<16x14xf32>
    %72 = arith.mulf %71, %23 : vector<16x14xf32>
    %73 = arith.addf %57, %72 : vector<16x14xf32>
    %c0_31 = arith.constant 0 : index
    %c4_32 = arith.constant 4 : index
    %74 = memref.load %arg6[%c0_31, %c4_32] : memref<4x12xf32, #tpu.memory_space<smem>>
    %75 = vector.broadcast %74 : f32 to vector<16x14xf32>
    %76 = arith.mulf %75, %24 : vector<16x14xf32>
    %77 = arith.addf %73, %76 : vector<16x14xf32>
    %c0_33 = arith.constant 0 : index
    %c5_34 = arith.constant 5 : index
    %78 = memref.load %arg6[%c0_33, %c5_34] : memref<4x12xf32, #tpu.memory_space<smem>>
    %79 = vector.broadcast %78 : f32 to vector<16x14xf32>
    %80 = arith.mulf %79, %25 : vector<16x14xf32>
    %81 = arith.addf %77, %80 : vector<16x14xf32>
    %c0_35 = arith.constant 0 : index
    %c6 = arith.constant 6 : index
    %82 = memref.load %arg4[%c0_35, %c6] : memref<4x12xf32, #tpu.memory_space<smem>>
    %83 = vector.broadcast %82 : f32 to vector<14x16xf32>
    %84 = arith.mulf %83, %14 : vector<14x16xf32>
    %85 = arith.addf %69, %84 : vector<14x16xf32>
    %c0_36 = arith.constant 0 : index
    %c7 = arith.constant 7 : index
    %86 = memref.load %arg4[%c0_36, %c7] : memref<4x12xf32, #tpu.memory_space<smem>>
    %87 = vector.broadcast %86 : f32 to vector<14x16xf32>
    %88 = arith.mulf %87, %15 : vector<14x16xf32>
    %89 = arith.addf %85, %88 : vector<14x16xf32>
    %c0_37 = arith.constant 0 : index
    %c8 = arith.constant 8 : index
    %90 = memref.load %arg4[%c0_37, %c8] : memref<4x12xf32, #tpu.memory_space<smem>>
    %91 = vector.broadcast %90 : f32 to vector<14x16xf32>
    %92 = arith.mulf %91, %16 : vector<14x16xf32>
    %93 = arith.addf %89, %92 : vector<14x16xf32>
    %c0_38 = arith.constant 0 : index
    %c6_39 = arith.constant 6 : index
    %94 = memref.load %arg6[%c0_38, %c6_39] : memref<4x12xf32, #tpu.memory_space<smem>>
    %95 = vector.broadcast %94 : f32 to vector<16x14xf32>
    %96 = arith.mulf %95, %26 : vector<16x14xf32>
    %97 = arith.addf %81, %96 : vector<16x14xf32>
    %c0_40 = arith.constant 0 : index
    %c7_41 = arith.constant 7 : index
    %98 = memref.load %arg6[%c0_40, %c7_41] : memref<4x12xf32, #tpu.memory_space<smem>>
    %99 = vector.broadcast %98 : f32 to vector<16x14xf32>
    %100 = arith.mulf %99, %27 : vector<16x14xf32>
    %101 = arith.addf %97, %100 : vector<16x14xf32>
    %c0_42 = arith.constant 0 : index
    %c8_43 = arith.constant 8 : index
    %102 = memref.load %arg6[%c0_42, %c8_43] : memref<4x12xf32, #tpu.memory_space<smem>>
    %103 = vector.broadcast %102 : f32 to vector<16x14xf32>
    %104 = arith.mulf %103, %28 : vector<16x14xf32>
    %105 = arith.addf %101, %104 : vector<16x14xf32>
    %c0_44 = arith.constant 0 : index
    %c9 = arith.constant 9 : index
    %106 = memref.load %arg4[%c0_44, %c9] : memref<4x12xf32, #tpu.memory_space<smem>>
    %107 = vector.broadcast %106 : f32 to vector<14x16xf32>
    %108 = arith.mulf %107, %17 : vector<14x16xf32>
    %109 = arith.addf %93, %108 : vector<14x16xf32>
    %c0_45 = arith.constant 0 : index
    %c10 = arith.constant 10 : index
    %110 = memref.load %arg4[%c0_45, %c10] : memref<4x12xf32, #tpu.memory_space<smem>>
    %111 = vector.broadcast %110 : f32 to vector<14x16xf32>
    %112 = arith.mulf %111, %18 : vector<14x16xf32>
    %113 = arith.addf %109, %112 : vector<14x16xf32>
    %c0_46 = arith.constant 0 : index
    %c11 = arith.constant 11 : index
    %114 = memref.load %arg4[%c0_46, %c11] : memref<4x12xf32, #tpu.memory_space<smem>>
    %115 = vector.broadcast %114 : f32 to vector<14x16xf32>
    %116 = arith.mulf %115, %19 : vector<14x16xf32>
    %117 = arith.addf %113, %116 : vector<14x16xf32>
    %c0_47 = arith.constant 0 : index
    %c9_48 = arith.constant 9 : index
    %118 = memref.load %arg6[%c0_47, %c9_48] : memref<4x12xf32, #tpu.memory_space<smem>>
    %119 = vector.broadcast %118 : f32 to vector<16x14xf32>
    %120 = arith.mulf %119, %29 : vector<16x14xf32>
    %121 = arith.addf %105, %120 : vector<16x14xf32>
    %c0_49 = arith.constant 0 : index
    %c10_50 = arith.constant 10 : index
    %122 = memref.load %arg6[%c0_49, %c10_50] : memref<4x12xf32, #tpu.memory_space<smem>>
    %123 = vector.broadcast %122 : f32 to vector<16x14xf32>
    %124 = arith.mulf %123, %30 : vector<16x14xf32>
    %125 = arith.addf %121, %124 : vector<16x14xf32>
    %c0_51 = arith.constant 0 : index
    %c11_52 = arith.constant 11 : index
    %126 = memref.load %arg6[%c0_51, %c11_52] : memref<4x12xf32, #tpu.memory_space<smem>>
    %127 = vector.broadcast %126 : f32 to vector<16x14xf32>
    %128 = arith.mulf %127, %31 : vector<16x14xf32>
    %129 = arith.addf %125, %128 : vector<16x14xf32>
    %c0_53 = arith.constant 0 : index
    %130 = memref.load %arg5[%c0_53] : memref<4xf32, #tpu.memory_space<smem>>
    %131 = vector.broadcast %130 : f32 to vector<14x16xf32>
    %132 = arith.addf %117, %131 : vector<14x16xf32>
    %cst_54 = arith.constant 0.000000e+00 : f32
    %cst_55 = arith.constant 6.000000e+00 : f32
    %133 = vector.broadcast %cst_54 : f32 to vector<14x16xf32>
    %134 = arith.maximumf %133, %132 : vector<14x16xf32>
    %135 = vector.broadcast %cst_55 : f32 to vector<14x16xf32>
    %136 = arith.minimumf %135, %134 : vector<14x16xf32>
    %c0_56 = arith.constant 0 : index
    %137 = memref.load %arg7[%c0_56] : memref<4xf32, #tpu.memory_space<smem>>
    %138 = vector.broadcast %137 : f32 to vector<16x14xf32>
    %139 = arith.addf %129, %138 : vector<16x14xf32>
    %cst_57 = arith.constant 0.000000e+00 : f32
    %cst_58 = arith.constant 6.000000e+00 : f32
    %140 = vector.broadcast %cst_57 : f32 to vector<16x14xf32>
    %141 = arith.maximumf %140, %139 : vector<16x14xf32>
    %142 = vector.broadcast %cst_58 : f32 to vector<16x14xf32>
    %143 = arith.minimumf %142, %141 : vector<16x14xf32>
    %cst_59 = arith.constant 0.000000e+00 : f32
    %144 = vector.broadcast %cst_59 : f32 to vector<14x16xf32>
    %cst_60 = arith.constant 0.000000e+00 : f32
    %145 = vector.broadcast %cst_60 : f32 to vector<16x14xf32>
    %c1_61 = arith.constant 1 : index
    %c0_62 = arith.constant 0 : index
    %146 = memref.load %arg4[%c1_61, %c0_62] : memref<4x12xf32, #tpu.memory_space<smem>>
    %147 = vector.broadcast %146 : f32 to vector<14x16xf32>
    %148 = arith.mulf %147, %8 : vector<14x16xf32>
    %149 = arith.addf %144, %148 : vector<14x16xf32>
    %c1_63 = arith.constant 1 : index
    %c1_64 = arith.constant 1 : index
    %150 = memref.load %arg4[%c1_63, %c1_64] : memref<4x12xf32, #tpu.memory_space<smem>>
    %151 = vector.broadcast %150 : f32 to vector<14x16xf32>
    %152 = arith.mulf %151, %9 : vector<14x16xf32>
    %153 = arith.addf %149, %152 : vector<14x16xf32>
    %c1_65 = arith.constant 1 : index
    %c2_66 = arith.constant 2 : index
    %154 = memref.load %arg4[%c1_65, %c2_66] : memref<4x12xf32, #tpu.memory_space<smem>>
    %155 = vector.broadcast %154 : f32 to vector<14x16xf32>
    %156 = arith.mulf %155, %10 : vector<14x16xf32>
    %157 = arith.addf %153, %156 : vector<14x16xf32>
    %c1_67 = arith.constant 1 : index
    %c0_68 = arith.constant 0 : index
    %158 = memref.load %arg6[%c1_67, %c0_68] : memref<4x12xf32, #tpu.memory_space<smem>>
    %159 = vector.broadcast %158 : f32 to vector<16x14xf32>
    %160 = arith.mulf %159, %20 : vector<16x14xf32>
    %161 = arith.addf %145, %160 : vector<16x14xf32>
    %c1_69 = arith.constant 1 : index
    %c1_70 = arith.constant 1 : index
    %162 = memref.load %arg6[%c1_69, %c1_70] : memref<4x12xf32, #tpu.memory_space<smem>>
    %163 = vector.broadcast %162 : f32 to vector<16x14xf32>
    %164 = arith.mulf %163, %21 : vector<16x14xf32>
    %165 = arith.addf %161, %164 : vector<16x14xf32>
    %c1_71 = arith.constant 1 : index
    %c2_72 = arith.constant 2 : index
    %166 = memref.load %arg6[%c1_71, %c2_72] : memref<4x12xf32, #tpu.memory_space<smem>>
    %167 = vector.broadcast %166 : f32 to vector<16x14xf32>
    %168 = arith.mulf %167, %22 : vector<16x14xf32>
    %169 = arith.addf %165, %168 : vector<16x14xf32>
    %c1_73 = arith.constant 1 : index
    %c3_74 = arith.constant 3 : index
    %170 = memref.load %arg4[%c1_73, %c3_74] : memref<4x12xf32, #tpu.memory_space<smem>>
    %171 = vector.broadcast %170 : f32 to vector<14x16xf32>
    %172 = arith.mulf %171, %11 : vector<14x16xf32>
    %173 = arith.addf %157, %172 : vector<14x16xf32>
    %c1_75 = arith.constant 1 : index
    %c4_76 = arith.constant 4 : index
    %174 = memref.load %arg4[%c1_75, %c4_76] : memref<4x12xf32, #tpu.memory_space<smem>>
    %175 = vector.broadcast %174 : f32 to vector<14x16xf32>
    %176 = arith.mulf %175, %12 : vector<14x16xf32>
    %177 = arith.addf %173, %176 : vector<14x16xf32>
    %c1_77 = arith.constant 1 : index
    %c5_78 = arith.constant 5 : index
    %178 = memref.load %arg4[%c1_77, %c5_78] : memref<4x12xf32, #tpu.memory_space<smem>>
    %179 = vector.broadcast %178 : f32 to vector<14x16xf32>
    %180 = arith.mulf %179, %13 : vector<14x16xf32>
    %181 = arith.addf %177, %180 : vector<14x16xf32>
    %c1_79 = arith.constant 1 : index
    %c3_80 = arith.constant 3 : index
    %182 = memref.load %arg6[%c1_79, %c3_80] : memref<4x12xf32, #tpu.memory_space<smem>>
    %183 = vector.broadcast %182 : f32 to vector<16x14xf32>
    %184 = arith.mulf %183, %23 : vector<16x14xf32>
    %185 = arith.addf %169, %184 : vector<16x14xf32>
    %c1_81 = arith.constant 1 : index
    %c4_82 = arith.constant 4 : index
    %186 = memref.load %arg6[%c1_81, %c4_82] : memref<4x12xf32, #tpu.memory_space<smem>>
    %187 = vector.broadcast %186 : f32 to vector<16x14xf32>
    %188 = arith.mulf %187, %24 : vector<16x14xf32>
    %189 = arith.addf %185, %188 : vector<16x14xf32>
    %c1_83 = arith.constant 1 : index
    %c5_84 = arith.constant 5 : index
    %190 = memref.load %arg6[%c1_83, %c5_84] : memref<4x12xf32, #tpu.memory_space<smem>>
    %191 = vector.broadcast %190 : f32 to vector<16x14xf32>
    %192 = arith.mulf %191, %25 : vector<16x14xf32>
    %193 = arith.addf %189, %192 : vector<16x14xf32>
    %c1_85 = arith.constant 1 : index
    %c6_86 = arith.constant 6 : index
    %194 = memref.load %arg4[%c1_85, %c6_86] : memref<4x12xf32, #tpu.memory_space<smem>>
    %195 = vector.broadcast %194 : f32 to vector<14x16xf32>
    %196 = arith.mulf %195, %14 : vector<14x16xf32>
    %197 = arith.addf %181, %196 : vector<14x16xf32>
    %c1_87 = arith.constant 1 : index
    %c7_88 = arith.constant 7 : index
    %198 = memref.load %arg4[%c1_87, %c7_88] : memref<4x12xf32, #tpu.memory_space<smem>>
    %199 = vector.broadcast %198 : f32 to vector<14x16xf32>
    %200 = arith.mulf %199, %15 : vector<14x16xf32>
    %201 = arith.addf %197, %200 : vector<14x16xf32>
    %c1_89 = arith.constant 1 : index
    %c8_90 = arith.constant 8 : index
    %202 = memref.load %arg4[%c1_89, %c8_90] : memref<4x12xf32, #tpu.memory_space<smem>>
    %203 = vector.broadcast %202 : f32 to vector<14x16xf32>
    %204 = arith.mulf %203, %16 : vector<14x16xf32>
    %205 = arith.addf %201, %204 : vector<14x16xf32>
    %c1_91 = arith.constant 1 : index
    %c6_92 = arith.constant 6 : index
    %206 = memref.load %arg6[%c1_91, %c6_92] : memref<4x12xf32, #tpu.memory_space<smem>>
    %207 = vector.broadcast %206 : f32 to vector<16x14xf32>
    %208 = arith.mulf %207, %26 : vector<16x14xf32>
    %209 = arith.addf %193, %208 : vector<16x14xf32>
    %c1_93 = arith.constant 1 : index
    %c7_94 = arith.constant 7 : index
    %210 = memref.load %arg6[%c1_93, %c7_94] : memref<4x12xf32, #tpu.memory_space<smem>>
    %211 = vector.broadcast %210 : f32 to vector<16x14xf32>
    %212 = arith.mulf %211, %27 : vector<16x14xf32>
    %213 = arith.addf %209, %212 : vector<16x14xf32>
    %c1_95 = arith.constant 1 : index
    %c8_96 = arith.constant 8 : index
    %214 = memref.load %arg6[%c1_95, %c8_96] : memref<4x12xf32, #tpu.memory_space<smem>>
    %215 = vector.broadcast %214 : f32 to vector<16x14xf32>
    %216 = arith.mulf %215, %28 : vector<16x14xf32>
    %217 = arith.addf %213, %216 : vector<16x14xf32>
    %c1_97 = arith.constant 1 : index
    %c9_98 = arith.constant 9 : index
    %218 = memref.load %arg4[%c1_97, %c9_98] : memref<4x12xf32, #tpu.memory_space<smem>>
    %219 = vector.broadcast %218 : f32 to vector<14x16xf32>
    %220 = arith.mulf %219, %17 : vector<14x16xf32>
    %221 = arith.addf %205, %220 : vector<14x16xf32>
    %c1_99 = arith.constant 1 : index
    %c10_100 = arith.constant 10 : index
    %222 = memref.load %arg4[%c1_99, %c10_100] : memref<4x12xf32, #tpu.memory_space<smem>>
    %223 = vector.broadcast %222 : f32 to vector<14x16xf32>
    %224 = arith.mulf %223, %18 : vector<14x16xf32>
    %225 = arith.addf %221, %224 : vector<14x16xf32>
    %c1_101 = arith.constant 1 : index
    %c11_102 = arith.constant 11 : index
    %226 = memref.load %arg4[%c1_101, %c11_102] : memref<4x12xf32, #tpu.memory_space<smem>>
    %227 = vector.broadcast %226 : f32 to vector<14x16xf32>
    %228 = arith.mulf %227, %19 : vector<14x16xf32>
    %229 = arith.addf %225, %228 : vector<14x16xf32>
    %c1_103 = arith.constant 1 : index
    %c9_104 = arith.constant 9 : index
    %230 = memref.load %arg6[%c1_103, %c9_104] : memref<4x12xf32, #tpu.memory_space<smem>>
    %231 = vector.broadcast %230 : f32 to vector<16x14xf32>
    %232 = arith.mulf %231, %29 : vector<16x14xf32>
    %233 = arith.addf %217, %232 : vector<16x14xf32>
    %c1_105 = arith.constant 1 : index
    %c10_106 = arith.constant 10 : index
    %234 = memref.load %arg6[%c1_105, %c10_106] : memref<4x12xf32, #tpu.memory_space<smem>>
    %235 = vector.broadcast %234 : f32 to vector<16x14xf32>
    %236 = arith.mulf %235, %30 : vector<16x14xf32>
    %237 = arith.addf %233, %236 : vector<16x14xf32>
    %c1_107 = arith.constant 1 : index
    %c11_108 = arith.constant 11 : index
    %238 = memref.load %arg6[%c1_107, %c11_108] : memref<4x12xf32, #tpu.memory_space<smem>>
    %239 = vector.broadcast %238 : f32 to vector<16x14xf32>
    %240 = arith.mulf %239, %31 : vector<16x14xf32>
    %241 = arith.addf %237, %240 : vector<16x14xf32>
    %c1_109 = arith.constant 1 : index
    %242 = memref.load %arg5[%c1_109] : memref<4xf32, #tpu.memory_space<smem>>
    %243 = vector.broadcast %242 : f32 to vector<14x16xf32>
    %244 = arith.addf %229, %243 : vector<14x16xf32>
    %cst_110 = arith.constant 0.000000e+00 : f32
    %cst_111 = arith.constant 6.000000e+00 : f32
    %245 = vector.broadcast %cst_110 : f32 to vector<14x16xf32>
    %246 = arith.maximumf %245, %244 : vector<14x16xf32>
    %247 = vector.broadcast %cst_111 : f32 to vector<14x16xf32>
    %248 = arith.minimumf %247, %246 : vector<14x16xf32>
    %c1_112 = arith.constant 1 : index
    %249 = memref.load %arg7[%c1_112] : memref<4xf32, #tpu.memory_space<smem>>
    %250 = vector.broadcast %249 : f32 to vector<16x14xf32>
    %251 = arith.addf %241, %250 : vector<16x14xf32>
    %cst_113 = arith.constant 0.000000e+00 : f32
    %cst_114 = arith.constant 6.000000e+00 : f32
    %252 = vector.broadcast %cst_113 : f32 to vector<16x14xf32>
    %253 = arith.maximumf %252, %251 : vector<16x14xf32>
    %254 = vector.broadcast %cst_114 : f32 to vector<16x14xf32>
    %255 = arith.minimumf %254, %253 : vector<16x14xf32>
    %cst_115 = arith.constant 0.000000e+00 : f32
    %256 = vector.broadcast %cst_115 : f32 to vector<14x16xf32>
    %cst_116 = arith.constant 0.000000e+00 : f32
    %257 = vector.broadcast %cst_116 : f32 to vector<16x14xf32>
    %c2_117 = arith.constant 2 : index
    %c0_118 = arith.constant 0 : index
    %258 = memref.load %arg4[%c2_117, %c0_118] : memref<4x12xf32, #tpu.memory_space<smem>>
    %259 = vector.broadcast %258 : f32 to vector<14x16xf32>
    %260 = arith.mulf %259, %8 : vector<14x16xf32>
    %261 = arith.addf %256, %260 : vector<14x16xf32>
    %c2_119 = arith.constant 2 : index
    %c1_120 = arith.constant 1 : index
    %262 = memref.load %arg4[%c2_119, %c1_120] : memref<4x12xf32, #tpu.memory_space<smem>>
    %263 = vector.broadcast %262 : f32 to vector<14x16xf32>
    %264 = arith.mulf %263, %9 : vector<14x16xf32>
    %265 = arith.addf %261, %264 : vector<14x16xf32>
    %c2_121 = arith.constant 2 : index
    %c2_122 = arith.constant 2 : index
    %266 = memref.load %arg4[%c2_121, %c2_122] : memref<4x12xf32, #tpu.memory_space<smem>>
    %267 = vector.broadcast %266 : f32 to vector<14x16xf32>
    %268 = arith.mulf %267, %10 : vector<14x16xf32>
    %269 = arith.addf %265, %268 : vector<14x16xf32>
    %c2_123 = arith.constant 2 : index
    %c0_124 = arith.constant 0 : index
    %270 = memref.load %arg6[%c2_123, %c0_124] : memref<4x12xf32, #tpu.memory_space<smem>>
    %271 = vector.broadcast %270 : f32 to vector<16x14xf32>
    %272 = arith.mulf %271, %20 : vector<16x14xf32>
    %273 = arith.addf %257, %272 : vector<16x14xf32>
    %c2_125 = arith.constant 2 : index
    %c1_126 = arith.constant 1 : index
    %274 = memref.load %arg6[%c2_125, %c1_126] : memref<4x12xf32, #tpu.memory_space<smem>>
    %275 = vector.broadcast %274 : f32 to vector<16x14xf32>
    %276 = arith.mulf %275, %21 : vector<16x14xf32>
    %277 = arith.addf %273, %276 : vector<16x14xf32>
    %c2_127 = arith.constant 2 : index
    %c2_128 = arith.constant 2 : index
    %278 = memref.load %arg6[%c2_127, %c2_128] : memref<4x12xf32, #tpu.memory_space<smem>>
    %279 = vector.broadcast %278 : f32 to vector<16x14xf32>
    %280 = arith.mulf %279, %22 : vector<16x14xf32>
    %281 = arith.addf %277, %280 : vector<16x14xf32>
    %c2_129 = arith.constant 2 : index
    %c3_130 = arith.constant 3 : index
    %282 = memref.load %arg4[%c2_129, %c3_130] : memref<4x12xf32, #tpu.memory_space<smem>>
    %283 = vector.broadcast %282 : f32 to vector<14x16xf32>
    %284 = arith.mulf %283, %11 : vector<14x16xf32>
    %285 = arith.addf %269, %284 : vector<14x16xf32>
    %c2_131 = arith.constant 2 : index
    %c4_132 = arith.constant 4 : index
    %286 = memref.load %arg4[%c2_131, %c4_132] : memref<4x12xf32, #tpu.memory_space<smem>>
    %287 = vector.broadcast %286 : f32 to vector<14x16xf32>
    %288 = arith.mulf %287, %12 : vector<14x16xf32>
    %289 = arith.addf %285, %288 : vector<14x16xf32>
    %c2_133 = arith.constant 2 : index
    %c5_134 = arith.constant 5 : index
    %290 = memref.load %arg4[%c2_133, %c5_134] : memref<4x12xf32, #tpu.memory_space<smem>>
    %291 = vector.broadcast %290 : f32 to vector<14x16xf32>
    %292 = arith.mulf %291, %13 : vector<14x16xf32>
    %293 = arith.addf %289, %292 : vector<14x16xf32>
    %c2_135 = arith.constant 2 : index
    %c3_136 = arith.constant 3 : index
    %294 = memref.load %arg6[%c2_135, %c3_136] : memref<4x12xf32, #tpu.memory_space<smem>>
    %295 = vector.broadcast %294 : f32 to vector<16x14xf32>
    %296 = arith.mulf %295, %23 : vector<16x14xf32>
    %297 = arith.addf %281, %296 : vector<16x14xf32>
    %c2_137 = arith.constant 2 : index
    %c4_138 = arith.constant 4 : index
    %298 = memref.load %arg6[%c2_137, %c4_138] : memref<4x12xf32, #tpu.memory_space<smem>>
    %299 = vector.broadcast %298 : f32 to vector<16x14xf32>
    %300 = arith.mulf %299, %24 : vector<16x14xf32>
    %301 = arith.addf %297, %300 : vector<16x14xf32>
    %c2_139 = arith.constant 2 : index
    %c5_140 = arith.constant 5 : index
    %302 = memref.load %arg6[%c2_139, %c5_140] : memref<4x12xf32, #tpu.memory_space<smem>>
    %303 = vector.broadcast %302 : f32 to vector<16x14xf32>
    %304 = arith.mulf %303, %25 : vector<16x14xf32>
    %305 = arith.addf %301, %304 : vector<16x14xf32>
    %c2_141 = arith.constant 2 : index
    %c6_142 = arith.constant 6 : index
    %306 = memref.load %arg4[%c2_141, %c6_142] : memref<4x12xf32, #tpu.memory_space<smem>>
    %307 = vector.broadcast %306 : f32 to vector<14x16xf32>
    %308 = arith.mulf %307, %14 : vector<14x16xf32>
    %309 = arith.addf %293, %308 : vector<14x16xf32>
    %c2_143 = arith.constant 2 : index
    %c7_144 = arith.constant 7 : index
    %310 = memref.load %arg4[%c2_143, %c7_144] : memref<4x12xf32, #tpu.memory_space<smem>>
    %311 = vector.broadcast %310 : f32 to vector<14x16xf32>
    %312 = arith.mulf %311, %15 : vector<14x16xf32>
    %313 = arith.addf %309, %312 : vector<14x16xf32>
    %c2_145 = arith.constant 2 : index
    %c8_146 = arith.constant 8 : index
    %314 = memref.load %arg4[%c2_145, %c8_146] : memref<4x12xf32, #tpu.memory_space<smem>>
    %315 = vector.broadcast %314 : f32 to vector<14x16xf32>
    %316 = arith.mulf %315, %16 : vector<14x16xf32>
    %317 = arith.addf %313, %316 : vector<14x16xf32>
    %c2_147 = arith.constant 2 : index
    %c6_148 = arith.constant 6 : index
    %318 = memref.load %arg6[%c2_147, %c6_148] : memref<4x12xf32, #tpu.memory_space<smem>>
    %319 = vector.broadcast %318 : f32 to vector<16x14xf32>
    %320 = arith.mulf %319, %26 : vector<16x14xf32>
    %321 = arith.addf %305, %320 : vector<16x14xf32>
    %c2_149 = arith.constant 2 : index
    %c7_150 = arith.constant 7 : index
    %322 = memref.load %arg6[%c2_149, %c7_150] : memref<4x12xf32, #tpu.memory_space<smem>>
    %323 = vector.broadcast %322 : f32 to vector<16x14xf32>
    %324 = arith.mulf %323, %27 : vector<16x14xf32>
    %325 = arith.addf %321, %324 : vector<16x14xf32>
    %c2_151 = arith.constant 2 : index
    %c8_152 = arith.constant 8 : index
    %326 = memref.load %arg6[%c2_151, %c8_152] : memref<4x12xf32, #tpu.memory_space<smem>>
    %327 = vector.broadcast %326 : f32 to vector<16x14xf32>
    %328 = arith.mulf %327, %28 : vector<16x14xf32>
    %329 = arith.addf %325, %328 : vector<16x14xf32>
    %c2_153 = arith.constant 2 : index
    %c9_154 = arith.constant 9 : index
    %330 = memref.load %arg4[%c2_153, %c9_154] : memref<4x12xf32, #tpu.memory_space<smem>>
    %331 = vector.broadcast %330 : f32 to vector<14x16xf32>
    %332 = arith.mulf %331, %17 : vector<14x16xf32>
    %333 = arith.addf %317, %332 : vector<14x16xf32>
    %c2_155 = arith.constant 2 : index
    %c10_156 = arith.constant 10 : index
    %334 = memref.load %arg4[%c2_155, %c10_156] : memref<4x12xf32, #tpu.memory_space<smem>>
    %335 = vector.broadcast %334 : f32 to vector<14x16xf32>
    %336 = arith.mulf %335, %18 : vector<14x16xf32>
    %337 = arith.addf %333, %336 : vector<14x16xf32>
    %c2_157 = arith.constant 2 : index
    %c11_158 = arith.constant 11 : index
    %338 = memref.load %arg4[%c2_157, %c11_158] : memref<4x12xf32, #tpu.memory_space<smem>>
    %339 = vector.broadcast %338 : f32 to vector<14x16xf32>
    %340 = arith.mulf %339, %19 : vector<14x16xf32>
    %341 = arith.addf %337, %340 : vector<14x16xf32>
    %c2_159 = arith.constant 2 : index
    %c9_160 = arith.constant 9 : index
    %342 = memref.load %arg6[%c2_159, %c9_160] : memref<4x12xf32, #tpu.memory_space<smem>>
    %343 = vector.broadcast %342 : f32 to vector<16x14xf32>
    %344 = arith.mulf %343, %29 : vector<16x14xf32>
    %345 = arith.addf %329, %344 : vector<16x14xf32>
    %c2_161 = arith.constant 2 : index
    %c10_162 = arith.constant 10 : index
    %346 = memref.load %arg6[%c2_161, %c10_162] : memref<4x12xf32, #tpu.memory_space<smem>>
    %347 = vector.broadcast %346 : f32 to vector<16x14xf32>
    %348 = arith.mulf %347, %30 : vector<16x14xf32>
    %349 = arith.addf %345, %348 : vector<16x14xf32>
    %c2_163 = arith.constant 2 : index
    %c11_164 = arith.constant 11 : index
    %350 = memref.load %arg6[%c2_163, %c11_164] : memref<4x12xf32, #tpu.memory_space<smem>>
    %351 = vector.broadcast %350 : f32 to vector<16x14xf32>
    %352 = arith.mulf %351, %31 : vector<16x14xf32>
    %353 = arith.addf %349, %352 : vector<16x14xf32>
    %c2_165 = arith.constant 2 : index
    %354 = memref.load %arg5[%c2_165] : memref<4xf32, #tpu.memory_space<smem>>
    %355 = vector.broadcast %354 : f32 to vector<14x16xf32>
    %356 = arith.addf %341, %355 : vector<14x16xf32>
    %cst_166 = arith.constant 0.000000e+00 : f32
    %cst_167 = arith.constant 6.000000e+00 : f32
    %357 = vector.broadcast %cst_166 : f32 to vector<14x16xf32>
    %358 = arith.maximumf %357, %356 : vector<14x16xf32>
    %359 = vector.broadcast %cst_167 : f32 to vector<14x16xf32>
    %360 = arith.minimumf %359, %358 : vector<14x16xf32>
    %c2_168 = arith.constant 2 : index
    %361 = memref.load %arg7[%c2_168] : memref<4xf32, #tpu.memory_space<smem>>
    %362 = vector.broadcast %361 : f32 to vector<16x14xf32>
    %363 = arith.addf %353, %362 : vector<16x14xf32>
    %cst_169 = arith.constant 0.000000e+00 : f32
    %cst_170 = arith.constant 6.000000e+00 : f32
    %364 = vector.broadcast %cst_169 : f32 to vector<16x14xf32>
    %365 = arith.maximumf %364, %363 : vector<16x14xf32>
    %366 = vector.broadcast %cst_170 : f32 to vector<16x14xf32>
    %367 = arith.minimumf %366, %365 : vector<16x14xf32>
    %cst_171 = arith.constant 0.000000e+00 : f32
    %368 = vector.broadcast %cst_171 : f32 to vector<14x16xf32>
    %cst_172 = arith.constant 0.000000e+00 : f32
    %369 = vector.broadcast %cst_172 : f32 to vector<16x14xf32>
    %c3_173 = arith.constant 3 : index
    %c0_174 = arith.constant 0 : index
    %370 = memref.load %arg4[%c3_173, %c0_174] : memref<4x12xf32, #tpu.memory_space<smem>>
    %371 = vector.broadcast %370 : f32 to vector<14x16xf32>
    %372 = arith.mulf %371, %8 : vector<14x16xf32>
    %373 = arith.addf %368, %372 : vector<14x16xf32>
    %c3_175 = arith.constant 3 : index
    %c1_176 = arith.constant 1 : index
    %374 = memref.load %arg4[%c3_175, %c1_176] : memref<4x12xf32, #tpu.memory_space<smem>>
    %375 = vector.broadcast %374 : f32 to vector<14x16xf32>
    %376 = arith.mulf %375, %9 : vector<14x16xf32>
    %377 = arith.addf %373, %376 : vector<14x16xf32>
    %c3_177 = arith.constant 3 : index
    %c2_178 = arith.constant 2 : index
    %378 = memref.load %arg4[%c3_177, %c2_178] : memref<4x12xf32, #tpu.memory_space<smem>>
    %379 = vector.broadcast %378 : f32 to vector<14x16xf32>
    %380 = arith.mulf %379, %10 : vector<14x16xf32>
    %381 = arith.addf %377, %380 : vector<14x16xf32>
    %c3_179 = arith.constant 3 : index
    %c0_180 = arith.constant 0 : index
    %382 = memref.load %arg6[%c3_179, %c0_180] : memref<4x12xf32, #tpu.memory_space<smem>>
    %383 = vector.broadcast %382 : f32 to vector<16x14xf32>
    %384 = arith.mulf %383, %20 : vector<16x14xf32>
    %385 = arith.addf %369, %384 : vector<16x14xf32>
    %c3_181 = arith.constant 3 : index
    %c1_182 = arith.constant 1 : index
    %386 = memref.load %arg6[%c3_181, %c1_182] : memref<4x12xf32, #tpu.memory_space<smem>>
    %387 = vector.broadcast %386 : f32 to vector<16x14xf32>
    %388 = arith.mulf %387, %21 : vector<16x14xf32>
    %389 = arith.addf %385, %388 : vector<16x14xf32>
    %c3_183 = arith.constant 3 : index
    %c2_184 = arith.constant 2 : index
    %390 = memref.load %arg6[%c3_183, %c2_184] : memref<4x12xf32, #tpu.memory_space<smem>>
    %391 = vector.broadcast %390 : f32 to vector<16x14xf32>
    %392 = arith.mulf %391, %22 : vector<16x14xf32>
    %393 = arith.addf %389, %392 : vector<16x14xf32>
    %c3_185 = arith.constant 3 : index
    %c3_186 = arith.constant 3 : index
    %394 = memref.load %arg4[%c3_185, %c3_186] : memref<4x12xf32, #tpu.memory_space<smem>>
    %395 = vector.broadcast %394 : f32 to vector<14x16xf32>
    %396 = arith.mulf %395, %11 : vector<14x16xf32>
    %397 = arith.addf %381, %396 : vector<14x16xf32>
    %c3_187 = arith.constant 3 : index
    %c4_188 = arith.constant 4 : index
    %398 = memref.load %arg4[%c3_187, %c4_188] : memref<4x12xf32, #tpu.memory_space<smem>>
    %399 = vector.broadcast %398 : f32 to vector<14x16xf32>
    %400 = arith.mulf %399, %12 : vector<14x16xf32>
    %401 = arith.addf %397, %400 : vector<14x16xf32>
    %c3_189 = arith.constant 3 : index
    %c5_190 = arith.constant 5 : index
    %402 = memref.load %arg4[%c3_189, %c5_190] : memref<4x12xf32, #tpu.memory_space<smem>>
    %403 = vector.broadcast %402 : f32 to vector<14x16xf32>
    %404 = arith.mulf %403, %13 : vector<14x16xf32>
    %405 = arith.addf %401, %404 : vector<14x16xf32>
    %c3_191 = arith.constant 3 : index
    %c3_192 = arith.constant 3 : index
    %406 = memref.load %arg6[%c3_191, %c3_192] : memref<4x12xf32, #tpu.memory_space<smem>>
    %407 = vector.broadcast %406 : f32 to vector<16x14xf32>
    %408 = arith.mulf %407, %23 : vector<16x14xf32>
    %409 = arith.addf %393, %408 : vector<16x14xf32>
    %c3_193 = arith.constant 3 : index
    %c4_194 = arith.constant 4 : index
    %410 = memref.load %arg6[%c3_193, %c4_194] : memref<4x12xf32, #tpu.memory_space<smem>>
    %411 = vector.broadcast %410 : f32 to vector<16x14xf32>
    %412 = arith.mulf %411, %24 : vector<16x14xf32>
    %413 = arith.addf %409, %412 : vector<16x14xf32>
    %c3_195 = arith.constant 3 : index
    %c5_196 = arith.constant 5 : index
    %414 = memref.load %arg6[%c3_195, %c5_196] : memref<4x12xf32, #tpu.memory_space<smem>>
    %415 = vector.broadcast %414 : f32 to vector<16x14xf32>
    %416 = arith.mulf %415, %25 : vector<16x14xf32>
    %417 = arith.addf %413, %416 : vector<16x14xf32>
    %c3_197 = arith.constant 3 : index
    %c6_198 = arith.constant 6 : index
    %418 = memref.load %arg4[%c3_197, %c6_198] : memref<4x12xf32, #tpu.memory_space<smem>>
    %419 = vector.broadcast %418 : f32 to vector<14x16xf32>
    %420 = arith.mulf %419, %14 : vector<14x16xf32>
    %421 = arith.addf %405, %420 : vector<14x16xf32>
    %c3_199 = arith.constant 3 : index
    %c7_200 = arith.constant 7 : index
    %422 = memref.load %arg4[%c3_199, %c7_200] : memref<4x12xf32, #tpu.memory_space<smem>>
    %423 = vector.broadcast %422 : f32 to vector<14x16xf32>
    %424 = arith.mulf %423, %15 : vector<14x16xf32>
    %425 = arith.addf %421, %424 : vector<14x16xf32>
    %c3_201 = arith.constant 3 : index
    %c8_202 = arith.constant 8 : index
    %426 = memref.load %arg4[%c3_201, %c8_202] : memref<4x12xf32, #tpu.memory_space<smem>>
    %427 = vector.broadcast %426 : f32 to vector<14x16xf32>
    %428 = arith.mulf %427, %16 : vector<14x16xf32>
    %429 = arith.addf %425, %428 : vector<14x16xf32>
    %c3_203 = arith.constant 3 : index
    %c6_204 = arith.constant 6 : index
    %430 = memref.load %arg6[%c3_203, %c6_204] : memref<4x12xf32, #tpu.memory_space<smem>>
    %431 = vector.broadcast %430 : f32 to vector<16x14xf32>
    %432 = arith.mulf %431, %26 : vector<16x14xf32>
    %433 = arith.addf %417, %432 : vector<16x14xf32>
    %c3_205 = arith.constant 3 : index
    %c7_206 = arith.constant 7 : index
    %434 = memref.load %arg6[%c3_205, %c7_206] : memref<4x12xf32, #tpu.memory_space<smem>>
    %435 = vector.broadcast %434 : f32 to vector<16x14xf32>
    %436 = arith.mulf %435, %27 : vector<16x14xf32>
    %437 = arith.addf %433, %436 : vector<16x14xf32>
    %c3_207 = arith.constant 3 : index
    %c8_208 = arith.constant 8 : index
    %438 = memref.load %arg6[%c3_207, %c8_208] : memref<4x12xf32, #tpu.memory_space<smem>>
    %439 = vector.broadcast %438 : f32 to vector<16x14xf32>
    %440 = arith.mulf %439, %28 : vector<16x14xf32>
    %441 = arith.addf %437, %440 : vector<16x14xf32>
    %c3_209 = arith.constant 3 : index
    %c9_210 = arith.constant 9 : index
    %442 = memref.load %arg4[%c3_209, %c9_210] : memref<4x12xf32, #tpu.memory_space<smem>>
    %443 = vector.broadcast %442 : f32 to vector<14x16xf32>
    %444 = arith.mulf %443, %17 : vector<14x16xf32>
    %445 = arith.addf %429, %444 : vector<14x16xf32>
    %c3_211 = arith.constant 3 : index
    %c10_212 = arith.constant 10 : index
    %446 = memref.load %arg4[%c3_211, %c10_212] : memref<4x12xf32, #tpu.memory_space<smem>>
    %447 = vector.broadcast %446 : f32 to vector<14x16xf32>
    %448 = arith.mulf %447, %18 : vector<14x16xf32>
    %449 = arith.addf %445, %448 : vector<14x16xf32>
    %c3_213 = arith.constant 3 : index
    %c11_214 = arith.constant 11 : index
    %450 = memref.load %arg4[%c3_213, %c11_214] : memref<4x12xf32, #tpu.memory_space<smem>>
    %451 = vector.broadcast %450 : f32 to vector<14x16xf32>
    %452 = arith.mulf %451, %19 : vector<14x16xf32>
    %453 = arith.addf %449, %452 : vector<14x16xf32>
    %c3_215 = arith.constant 3 : index
    %c9_216 = arith.constant 9 : index
    %454 = memref.load %arg6[%c3_215, %c9_216] : memref<4x12xf32, #tpu.memory_space<smem>>
    %455 = vector.broadcast %454 : f32 to vector<16x14xf32>
    %456 = arith.mulf %455, %29 : vector<16x14xf32>
    %457 = arith.addf %441, %456 : vector<16x14xf32>
    %c3_217 = arith.constant 3 : index
    %c10_218 = arith.constant 10 : index
    %458 = memref.load %arg6[%c3_217, %c10_218] : memref<4x12xf32, #tpu.memory_space<smem>>
    %459 = vector.broadcast %458 : f32 to vector<16x14xf32>
    %460 = arith.mulf %459, %30 : vector<16x14xf32>
    %461 = arith.addf %457, %460 : vector<16x14xf32>
    %c3_219 = arith.constant 3 : index
    %c11_220 = arith.constant 11 : index
    %462 = memref.load %arg6[%c3_219, %c11_220] : memref<4x12xf32, #tpu.memory_space<smem>>
    %463 = vector.broadcast %462 : f32 to vector<16x14xf32>
    %464 = arith.mulf %463, %31 : vector<16x14xf32>
    %465 = arith.addf %461, %464 : vector<16x14xf32>
    %c3_221 = arith.constant 3 : index
    %466 = memref.load %arg5[%c3_221] : memref<4xf32, #tpu.memory_space<smem>>
    %467 = vector.broadcast %466 : f32 to vector<14x16xf32>
    %468 = arith.addf %453, %467 : vector<14x16xf32>
    %cst_222 = arith.constant 0.000000e+00 : f32
    %cst_223 = arith.constant 6.000000e+00 : f32
    %469 = vector.broadcast %cst_222 : f32 to vector<14x16xf32>
    %470 = arith.maximumf %469, %468 : vector<14x16xf32>
    %471 = vector.broadcast %cst_223 : f32 to vector<14x16xf32>
    %472 = arith.minimumf %471, %470 : vector<14x16xf32>
    %c3_224 = arith.constant 3 : index
    %473 = memref.load %arg7[%c3_224] : memref<4xf32, #tpu.memory_space<smem>>
    %474 = vector.broadcast %473 : f32 to vector<16x14xf32>
    %475 = arith.addf %465, %474 : vector<16x14xf32>
    %cst_225 = arith.constant 0.000000e+00 : f32
    %cst_226 = arith.constant 6.000000e+00 : f32
    %476 = vector.broadcast %cst_225 : f32 to vector<16x14xf32>
    %477 = arith.maximumf %476, %475 : vector<16x14xf32>
    %478 = vector.broadcast %cst_226 : f32 to vector<16x14xf32>
    %479 = arith.minimumf %478, %477 : vector<16x14xf32>
    %cst_227 = arith.constant dense<0.000000e+00> : vector<16x16xf32>
    %480 = tpu.matmul %143, %136, %cst_227 {dimension_numbers = #tpu.dot_dimension_numbers<[1], [0], [0], [1], [0, 0, 1, 1], [], []>} : vector<16x14xf32>, vector<14x16xf32>, vector<16x16xf32> -> vector<16x16xf32>
    %cst_228 = arith.constant dense<0.000000e+00> : vector<16x16xf32>
    %481 = tpu.matmul %255, %248, %cst_228 {dimension_numbers = #tpu.dot_dimension_numbers<[1], [0], [0], [1], [0, 0, 1, 1], [], []>} : vector<16x14xf32>, vector<14x16xf32>, vector<16x16xf32> -> vector<16x16xf32>
    %482 = arith.addf %480, %481 : vector<16x16xf32>
    %cst_229 = arith.constant dense<0.000000e+00> : vector<16x16xf32>
    %483 = tpu.matmul %367, %360, %cst_229 {dimension_numbers = #tpu.dot_dimension_numbers<[1], [0], [0], [1], [0, 0, 1, 1], [], []>} : vector<16x14xf32>, vector<14x16xf32>, vector<16x16xf32> -> vector<16x16xf32>
    %484 = arith.addf %482, %483 : vector<16x16xf32>
    %cst_230 = arith.constant dense<0.000000e+00> : vector<16x16xf32>
    %485 = tpu.matmul %479, %472, %cst_230 {dimension_numbers = #tpu.dot_dimension_numbers<[1], [0], [0], [1], [0, 0, 1, 1], [], []>} : vector<16x14xf32>, vector<14x16xf32>, vector<16x16xf32> -> vector<16x16xf32>
    %486 = arith.addf %484, %485 : vector<16x16xf32>
    %cst_231 = arith.constant -3.000000e+01 : f32
    %cst_232 = arith.constant 3.000000e+01 : f32
    %487 = vector.broadcast %cst_231 : f32 to vector<16x16xf32>
    %488 = arith.maximumf %487, %486 : vector<16x16xf32>
    %489 = vector.broadcast %cst_232 : f32 to vector<16x16xf32>
    %490 = arith.minimumf %489, %488 : vector<16x16xf32>
    %cst_233 = arith.constant 0.000000e+00 : f32
    %491 = vector.broadcast %cst_233 : f32 to vector<16x16xf32>
    %492 = arith.subf %491, %490 : vector<16x16xf32>
    %493 = math.exp %492 : vector<16x16xf32>
    %cst_234 = arith.constant 1.000000e+00 : f32
    %494 = vector.broadcast %cst_234 : f32 to vector<16x16xf32>
    %495 = arith.addf %494, %493 : vector<16x16xf32>
    %496 = tpu.reciprocal %495 {approx = true} : vector<16x16xf32> -> vector<16x16xf32>
    %c0_235 = arith.constant 0 : index
    %c0_236 = arith.constant 0 : index
    %c0_237 = arith.constant 0 : index
    %c0_238 = arith.constant 0 : index
    %497 = vector.load %arg9[%c0_235, %c0_236, %c0_237, %c0_238] : memref<1x1x16x16xf32, #tpu.memory_space<vmem>>, vector<1x1x16x16xf32>
    %498 = vector.shape_cast %497 : vector<1x1x16x16xf32> to vector<16x16xf32>
    %499 = vector.shape_cast %496 : vector<16x16xf32> to vector<1x1x16x16xf32>
    tpu.vector_store %arg9[%c0_235, %c0_236, %c0_237, %c0_238], %499 {strides = array<i32>} : memref<1x1x16x16xf32, #tpu.memory_space<vmem>>, vector<1x1x16x16xf32>,
    %c0_239 = arith.constant 0 : index
    %c0_240 = arith.constant 0 : index
    %500 = vector.load %arg2[%c0_239, %c0_240] : memref<16x14xf32, #tpu.memory_space<vmem>>, vector<16x14xf32>
    %c0_241 = arith.constant 0 : index
    %c0_242 = arith.constant 0 : index
    %501 = vector.load %arg3[%c0_241, %c0_242] : memref<14x16xf32, #tpu.memory_space<vmem>>, vector<14x16xf32>
    %cst_243 = arith.constant dense<0.000000e+00> : vector<16x16xf32>
    %502 = tpu.matmul %143, %501, %cst_243 {dimension_numbers = #tpu.dot_dimension_numbers<[1], [0], [0], [1], [0, 0, 1, 1], [], []>} : vector<16x14xf32>, vector<14x16xf32>, vector<16x16xf32> -> vector<16x16xf32>
    %cst_244 = arith.constant dense<0.000000e+00> : vector<16x16xf32>
    %503 = tpu.matmul %500, %136, %cst_244 {dimension_numbers = #tpu.dot_dimension_numbers<[1], [0], [0], [1], [0, 0, 1, 1], [], []>} : vector<16x14xf32>, vector<14x16xf32>, vector<16x16xf32> -> vector<16x16xf32>
    %504 = arith.addf %502, %503 : vector<16x16xf32>
    %cst_245 = arith.constant 0.000000e+00 : f32
    %505 = vector.broadcast %cst_245 : f32 to vector<16x16xf32>
    %506 = arith.maximumf %504, %505 : vector<16x16xf32>
    %cst_246 = arith.constant dense<0.000000e+00> : vector<16x16xf32>
    %507 = tpu.matmul %255, %501, %cst_246 {dimension_numbers = #tpu.dot_dimension_numbers<[1], [0], [0], [1], [0, 0, 1, 1], [], []>} : vector<16x14xf32>, vector<14x16xf32>, vector<16x16xf32> -> vector<16x16xf32>
    %cst_247 = arith.constant dense<0.000000e+00> : vector<16x16xf32>
    %508 = tpu.matmul %500, %248, %cst_247 {dimension_numbers = #tpu.dot_dimension_numbers<[1], [0], [0], [1], [0, 0, 1, 1], [], []>} : vector<16x14xf32>, vector<14x16xf32>, vector<16x16xf32> -> vector<16x16xf32>
    %509 = arith.addf %507, %508 : vector<16x16xf32>
    %cst_248 = arith.constant 0.000000e+00 : f32
    %510 = vector.broadcast %cst_248 : f32 to vector<16x16xf32>
    %511 = arith.maximumf %509, %510 : vector<16x16xf32>
    %cst_249 = arith.constant dense<0.000000e+00> : vector<16x16xf32>
    %512 = tpu.matmul %367, %501, %cst_249 {dimension_numbers = #tpu.dot_dimension_numbers<[1], [0], [0], [1], [0, 0, 1, 1], [], []>} : vector<16x14xf32>, vector<14x16xf32>, vector<16x16xf32> -> vector<16x16xf32>
    %cst_250 = arith.constant dense<0.000000e+00> : vector<16x16xf32>
    %513 = tpu.matmul %500, %360, %cst_250 {dimension_numbers = #tpu.dot_dimension_numbers<[1], [0], [0], [1], [0, 0, 1, 1], [], []>} : vector<16x14xf32>, vector<14x16xf32>, vector<16x16xf32> -> vector<16x16xf32>
    %514 = arith.addf %512, %513 : vector<16x16xf32>
    %cst_251 = arith.constant 0.000000e+00 : f32
    %515 = vector.broadcast %cst_251 : f32 to vector<16x16xf32>
    %516 = arith.maximumf %514, %515 : vector<16x16xf32>
    %cst_252 = arith.constant dense<0.000000e+00> : vector<16x16xf32>
    %517 = tpu.matmul %479, %501, %cst_252 {dimension_numbers = #tpu.dot_dimension_numbers<[1], [0], [0], [1], [0, 0, 1, 1], [], []>} : vector<16x14xf32>, vector<14x16xf32>, vector<16x16xf32> -> vector<16x16xf32>
    %cst_253 = arith.constant dense<0.000000e+00> : vector<16x16xf32>
    %518 = tpu.matmul %500, %472, %cst_253 {dimension_numbers = #tpu.dot_dimension_numbers<[1], [0], [0], [1], [0, 0, 1, 1], [], []>} : vector<16x14xf32>, vector<14x16xf32>, vector<16x16xf32> -> vector<16x16xf32>
    %519 = arith.addf %517, %518 : vector<16x16xf32>
    %cst_254 = arith.constant 0.000000e+00 : f32
    %520 = vector.broadcast %cst_254 : f32 to vector<16x16xf32>
    %521 = arith.maximumf %519, %520 : vector<16x16xf32>
    %cst_255 = arith.constant 0.000000e+00 : f32
    %522 = vector.broadcast %cst_255 : f32 to vector<1x16xf32>
    %523 = vector.extract_strided_slice %506 {offsets = [0, 0], sizes = [15, 16], strides = [1, 1]} : vector<16x16xf32> to vector<15x16xf32>
    %524 = tpu.concatenate %522, %523 in 0 : vector<1x16xf32>, vector<15x16xf32> -> vector<16x16xf32>
    %cst_256 = arith.constant 0.000000e+00 : f32
    %525 = vector.broadcast %cst_256 : f32 to vector<1x16xf32>
    %526 = vector.extract_strided_slice %511 {offsets = [0, 0], sizes = [15, 16], strides = [1, 1]} : vector<16x16xf32> to vector<15x16xf32>
    %527 = tpu.concatenate %525, %526 in 0 : vector<1x16xf32>, vector<15x16xf32> -> vector<16x16xf32>
    %cst_257 = arith.constant 0.000000e+00 : f32
    %528 = vector.broadcast %cst_257 : f32 to vector<1x16xf32>
    %529 = vector.extract_strided_slice %516 {offsets = [0, 0], sizes = [15, 16], strides = [1, 1]} : vector<16x16xf32> to vector<15x16xf32>
    %530 = tpu.concatenate %528, %529 in 0 : vector<1x16xf32>, vector<15x16xf32> -> vector<16x16xf32>
    %cst_258 = arith.constant 0.000000e+00 : f32
    %531 = vector.broadcast %cst_258 : f32 to vector<1x16xf32>
    %532 = vector.extract_strided_slice %521 {offsets = [0, 0], sizes = [15, 16], strides = [1, 1]} : vector<16x16xf32> to vector<15x16xf32>
    %533 = tpu.concatenate %531, %532 in 0 : vector<1x16xf32>, vector<15x16xf32> -> vector<16x16xf32>
    %cst_259 = arith.constant 0.000000e+00 : f32
    %534 = vector.broadcast %cst_259 : f32 to vector<16x1xf32>
    %535 = vector.extract_strided_slice %524 {offsets = [0, 0], sizes = [16, 15], strides = [1, 1]} : vector<16x16xf32> to vector<16x15xf32>
    %536 = tpu.concatenate %534, %535 in 1 : vector<16x1xf32>, vector<16x15xf32> -> vector<16x16xf32>
    %cst_260 = arith.constant 0.000000e+00 : f32
    %537 = vector.broadcast %cst_260 : f32 to vector<16x1xf32>
    %538 = vector.extract_strided_slice %527 {offsets = [0, 0], sizes = [16, 15], strides = [1, 1]} : vector<16x16xf32> to vector<16x15xf32>
    %539 = tpu.concatenate %537, %538 in 1 : vector<16x1xf32>, vector<16x15xf32> -> vector<16x16xf32>
    %cst_261 = arith.constant 0.000000e+00 : f32
    %540 = vector.broadcast %cst_261 : f32 to vector<16x1xf32>
    %541 = vector.extract_strided_slice %530 {offsets = [0, 0], sizes = [16, 15], strides = [1, 1]} : vector<16x16xf32> to vector<16x15xf32>
    %542 = tpu.concatenate %540, %541 in 1 : vector<16x1xf32>, vector<16x15xf32> -> vector<16x16xf32>
    %cst_262 = arith.constant 0.000000e+00 : f32
    %543 = vector.broadcast %cst_262 : f32 to vector<16x1xf32>
    %544 = vector.extract_strided_slice %533 {offsets = [0, 0], sizes = [16, 15], strides = [1, 1]} : vector<16x16xf32> to vector<16x15xf32>
    %545 = tpu.concatenate %543, %544 in 1 : vector<16x1xf32>, vector<16x15xf32> -> vector<16x16xf32>
    %546 = vector.extract_strided_slice %524 {offsets = [0, 1], sizes = [16, 15], strides = [1, 1]} : vector<16x16xf32> to vector<16x15xf32>
    %cst_263 = arith.constant 0.000000e+00 : f32
    %547 = vector.broadcast %cst_263 : f32 to vector<16x1xf32>
    %548 = tpu.concatenate %546, %547 in 1 : vector<16x15xf32>, vector<16x1xf32> -> vector<16x16xf32>
    %549 = vector.extract_strided_slice %527 {offsets = [0, 1], sizes = [16, 15], strides = [1, 1]} : vector<16x16xf32> to vector<16x15xf32>
    %cst_264 = arith.constant 0.000000e+00 : f32
    %550 = vector.broadcast %cst_264 : f32 to vector<16x1xf32>
    %551 = tpu.concatenate %549, %550 in 1 : vector<16x15xf32>, vector<16x1xf32> -> vector<16x16xf32>
    %552 = vector.extract_strided_slice %530 {offsets = [0, 1], sizes = [16, 15], strides = [1, 1]} : vector<16x16xf32> to vector<16x15xf32>
    %cst_265 = arith.constant 0.000000e+00 : f32
    %553 = vector.broadcast %cst_265 : f32 to vector<16x1xf32>
    %554 = tpu.concatenate %552, %553 in 1 : vector<16x15xf32>, vector<16x1xf32> -> vector<16x16xf32>
    %555 = vector.extract_strided_slice %533 {offsets = [0, 1], sizes = [16, 15], strides = [1, 1]} : vector<16x16xf32> to vector<16x15xf32>
    %cst_266 = arith.constant 0.000000e+00 : f32
    %556 = vector.broadcast %cst_266 : f32 to vector<16x1xf32>
    %557 = tpu.concatenate %555, %556 in 1 : vector<16x15xf32>, vector<16x1xf32> -> vector<16x16xf32>
    %cst_267 = arith.constant 0.000000e+00 : f32
    %558 = vector.broadcast %cst_267 : f32 to vector<16x1xf32>
    %559 = vector.extract_strided_slice %506 {offsets = [0, 0], sizes = [16, 15], strides = [1, 1]} : vector<16x16xf32> to vector<16x15xf32>
    %560 = tpu.concatenate %558, %559 in 1 : vector<16x1xf32>, vector<16x15xf32> -> vector<16x16xf32>
    %cst_268 = arith.constant 0.000000e+00 : f32
    %561 = vector.broadcast %cst_268 : f32 to vector<16x1xf32>
    %562 = vector.extract_strided_slice %511 {offsets = [0, 0], sizes = [16, 15], strides = [1, 1]} : vector<16x16xf32> to vector<16x15xf32>
    %563 = tpu.concatenate %561, %562 in 1 : vector<16x1xf32>, vector<16x15xf32> -> vector<16x16xf32>
    %cst_269 = arith.constant 0.000000e+00 : f32
    %564 = vector.broadcast %cst_269 : f32 to vector<16x1xf32>
    %565 = vector.extract_strided_slice %516 {offsets = [0, 0], sizes = [16, 15], strides = [1, 1]} : vector<16x16xf32> to vector<16x15xf32>
    %566 = tpu.concatenate %564, %565 in 1 : vector<16x1xf32>, vector<16x15xf32> -> vector<16x16xf32>
    %cst_270 = arith.constant 0.000000e+00 : f32
    %567 = vector.broadcast %cst_270 : f32 to vector<16x1xf32>
    %568 = vector.extract_strided_slice %521 {offsets = [0, 0], sizes = [16, 15], strides = [1, 1]} : vector<16x16xf32> to vector<16x15xf32>
    %569 = tpu.concatenate %567, %568 in 1 : vector<16x1xf32>, vector<16x15xf32> -> vector<16x16xf32>
    %570 = vector.extract_strided_slice %506 {offsets = [0, 1], sizes = [16, 15], strides = [1, 1]} : vector<16x16xf32> to vector<16x15xf32>
    %cst_271 = arith.constant 0.000000e+00 : f32
    %571 = vector.broadcast %cst_271 : f32 to vector<16x1xf32>
    %572 = tpu.concatenate %570, %571 in 1 : vector<16x15xf32>, vector<16x1xf32> -> vector<16x16xf32>
    %573 = vector.extract_strided_slice %511 {offsets = [0, 1], sizes = [16, 15], strides = [1, 1]} : vector<16x16xf32> to vector<16x15xf32>
    %cst_272 = arith.constant 0.000000e+00 : f32
    %574 = vector.broadcast %cst_272 : f32 to vector<16x1xf32>
    %575 = tpu.concatenate %573, %574 in 1 : vector<16x15xf32>, vector<16x1xf32> -> vector<16x16xf32>
    %576 = vector.extract_strided_slice %516 {offsets = [0, 1], sizes = [16, 15], strides = [1, 1]} : vector<16x16xf32> to vector<16x15xf32>
    %cst_273 = arith.constant 0.000000e+00 : f32
    %577 = vector.broadcast %cst_273 : f32 to vector<16x1xf32>
    %578 = tpu.concatenate %576, %577 in 1 : vector<16x15xf32>, vector<16x1xf32> -> vector<16x16xf32>
    %579 = vector.extract_strided_slice %521 {offsets = [0, 1], sizes = [16, 15], strides = [1, 1]} : vector<16x16xf32> to vector<16x15xf32>
    %cst_274 = arith.constant 0.000000e+00 : f32
    %580 = vector.broadcast %cst_274 : f32 to vector<16x1xf32>
    %581 = tpu.concatenate %579, %580 in 1 : vector<16x15xf32>, vector<16x1xf32> -> vector<16x16xf32>
    %582 = vector.extract_strided_slice %506 {offsets = [1, 0], sizes = [15, 16], strides = [1, 1]} : vector<16x16xf32> to vector<15x16xf32>
    %cst_275 = arith.constant 0.000000e+00 : f32
    %583 = vector.broadcast %cst_275 : f32 to vector<1x16xf32>
    %584 = tpu.concatenate %582, %583 in 0 : vector<15x16xf32>, vector<1x16xf32> -> vector<16x16xf32>
    %585 = vector.extract_strided_slice %511 {offsets = [1, 0], sizes = [15, 16], strides = [1, 1]} : vector<16x16xf32> to vector<15x16xf32>
    %cst_276 = arith.constant 0.000000e+00 : f32
    %586 = vector.broadcast %cst_276 : f32 to vector<1x16xf32>
    %587 = tpu.concatenate %585, %586 in 0 : vector<15x16xf32>, vector<1x16xf32> -> vector<16x16xf32>
    %588 = vector.extract_strided_slice %516 {offsets = [1, 0], sizes = [15, 16], strides = [1, 1]} : vector<16x16xf32> to vector<15x16xf32>
    %cst_277 = arith.constant 0.000000e+00 : f32
    %589 = vector.broadcast %cst_277 : f32 to vector<1x16xf32>
    %590 = tpu.concatenate %588, %589 in 0 : vector<15x16xf32>, vector<1x16xf32> -> vector<16x16xf32>
    %591 = vector.extract_strided_slice %521 {offsets = [1, 0], sizes = [15, 16], strides = [1, 1]} : vector<16x16xf32> to vector<15x16xf32>
    %cst_278 = arith.constant 0.000000e+00 : f32
    %592 = vector.broadcast %cst_278 : f32 to vector<1x16xf32>
    %593 = tpu.concatenate %591, %592 in 0 : vector<15x16xf32>, vector<1x16xf32> -> vector<16x16xf32>
    %cst_279 = arith.constant 0.000000e+00 : f32
    %594 = vector.broadcast %cst_279 : f32 to vector<16x1xf32>
    %595 = vector.extract_strided_slice %584 {offsets = [0, 0], sizes = [16, 15], strides = [1, 1]} : vector<16x16xf32> to vector<16x15xf32>
    %596 = tpu.concatenate %594, %595 in 1 : vector<16x1xf32>, vector<16x15xf32> -> vector<16x16xf32>
    %cst_280 = arith.constant 0.000000e+00 : f32
    %597 = vector.broadcast %cst_280 : f32 to vector<16x1xf32>
    %598 = vector.extract_strided_slice %587 {offsets = [0, 0], sizes = [16, 15], strides = [1, 1]} : vector<16x16xf32> to vector<16x15xf32>
    %599 = tpu.concatenate %597, %598 in 1 : vector<16x1xf32>, vector<16x15xf32> -> vector<16x16xf32>
    %cst_281 = arith.constant 0.000000e+00 : f32
    %600 = vector.broadcast %cst_281 : f32 to vector<16x1xf32>
    %601 = vector.extract_strided_slice %590 {offsets = [0, 0], sizes = [16, 15], strides = [1, 1]} : vector<16x16xf32> to vector<16x15xf32>
    %602 = tpu.concatenate %600, %601 in 1 : vector<16x1xf32>, vector<16x15xf32> -> vector<16x16xf32>
    %cst_282 = arith.constant 0.000000e+00 : f32
    %603 = vector.broadcast %cst_282 : f32 to vector<16x1xf32>
    %604 = vector.extract_strided_slice %593 {offsets = [0, 0], sizes = [16, 15], strides = [1, 1]} : vector<16x16xf32> to vector<16x15xf32>
    %605 = tpu.concatenate %603, %604 in 1 : vector<16x1xf32>, vector<16x15xf32> -> vector<16x16xf32>
    %606 = vector.extract_strided_slice %584 {offsets = [0, 1], sizes = [16, 15], strides = [1, 1]} : vector<16x16xf32> to vector<16x15xf32>
    %cst_283 = arith.constant 0.000000e+00 : f32
    %607 = vector.broadcast %cst_283 : f32 to vector<16x1xf32>
    %608 = tpu.concatenate %606, %607 in 1 : vector<16x15xf32>, vector<16x1xf32> -> vector<16x16xf32>
    %609 = vector.extract_strided_slice %587 {offsets = [0, 1], sizes = [16, 15], strides = [1, 1]} : vector<16x16xf32> to vector<16x15xf32>
    %cst_284 = arith.constant 0.000000e+00 : f32
    %610 = vector.broadcast %cst_284 : f32 to vector<16x1xf32>
    %611 = tpu.concatenate %609, %610 in 1 : vector<16x15xf32>, vector<16x1xf32> -> vector<16x16xf32>
    %612 = vector.extract_strided_slice %590 {offsets = [0, 1], sizes = [16, 15], strides = [1, 1]} : vector<16x16xf32> to vector<16x15xf32>
    %cst_285 = arith.constant 0.000000e+00 : f32
    %613 = vector.broadcast %cst_285 : f32 to vector<16x1xf32>
    %614 = tpu.concatenate %612, %613 in 1 : vector<16x15xf32>, vector<16x1xf32> -> vector<16x16xf32>
    %615 = vector.extract_strided_slice %593 {offsets = [0, 1], sizes = [16, 15], strides = [1, 1]} : vector<16x16xf32> to vector<16x15xf32>
    %cst_286 = arith.constant 0.000000e+00 : f32
    %616 = vector.broadcast %cst_286 : f32 to vector<16x1xf32>
    %617 = tpu.concatenate %615, %616 in 1 : vector<16x15xf32>, vector<16x1xf32> -> vector<16x16xf32>
    %c0_287 = arith.constant 0 : index
    %c0_288 = arith.constant 0 : index
    %618 = memref.load %arg8[%c0_287, %c0_288] : memref<4x36xf32, #tpu.memory_space<smem>>
    %619 = vector.broadcast %618 : f32 to vector<16x16xf32>
    %620 = arith.mulf %619, %536 : vector<16x16xf32>
    %621 = arith.addf %1, %620 : vector<16x16xf32>
    %c0_289 = arith.constant 0 : index
    %c1_290 = arith.constant 1 : index
    %622 = memref.load %arg8[%c0_289, %c1_290] : memref<4x36xf32, #tpu.memory_space<smem>>
    %623 = vector.broadcast %622 : f32 to vector<16x16xf32>
    %624 = arith.mulf %623, %539 : vector<16x16xf32>
    %625 = arith.addf %621, %624 : vector<16x16xf32>
    %c0_291 = arith.constant 0 : index
    %c2_292 = arith.constant 2 : index
    %626 = memref.load %arg8[%c0_291, %c2_292] : memref<4x36xf32, #tpu.memory_space<smem>>
    %627 = vector.broadcast %626 : f32 to vector<16x16xf32>
    %628 = arith.mulf %627, %542 : vector<16x16xf32>
    %629 = arith.addf %625, %628 : vector<16x16xf32>
    %c0_293 = arith.constant 0 : index
    %c3_294 = arith.constant 3 : index
    %630 = memref.load %arg8[%c0_293, %c3_294] : memref<4x36xf32, #tpu.memory_space<smem>>
    %631 = vector.broadcast %630 : f32 to vector<16x16xf32>
    %632 = arith.mulf %631, %545 : vector<16x16xf32>
    %633 = arith.addf %629, %632 : vector<16x16xf32>
    %c0_295 = arith.constant 0 : index
    %c4_296 = arith.constant 4 : index
    %634 = memref.load %arg8[%c0_295, %c4_296] : memref<4x36xf32, #tpu.memory_space<smem>>
    %635 = vector.broadcast %634 : f32 to vector<16x16xf32>
    %636 = arith.mulf %635, %524 : vector<16x16xf32>
    %637 = arith.addf %633, %636 : vector<16x16xf32>
    %c0_297 = arith.constant 0 : index
    %c5_298 = arith.constant 5 : index
    %638 = memref.load %arg8[%c0_297, %c5_298] : memref<4x36xf32, #tpu.memory_space<smem>>
    %639 = vector.broadcast %638 : f32 to vector<16x16xf32>
    %640 = arith.mulf %639, %527 : vector<16x16xf32>
    %641 = arith.addf %637, %640 : vector<16x16xf32>
    %c0_299 = arith.constant 0 : index
    %c6_300 = arith.constant 6 : index
    %642 = memref.load %arg8[%c0_299, %c6_300] : memref<4x36xf32, #tpu.memory_space<smem>>
    %643 = vector.broadcast %642 : f32 to vector<16x16xf32>
    %644 = arith.mulf %643, %530 : vector<16x16xf32>
    %645 = arith.addf %641, %644 : vector<16x16xf32>
    %c0_301 = arith.constant 0 : index
    %c7_302 = arith.constant 7 : index
    %646 = memref.load %arg8[%c0_301, %c7_302] : memref<4x36xf32, #tpu.memory_space<smem>>
    %647 = vector.broadcast %646 : f32 to vector<16x16xf32>
    %648 = arith.mulf %647, %533 : vector<16x16xf32>
    %649 = arith.addf %645, %648 : vector<16x16xf32>
    %c0_303 = arith.constant 0 : index
    %c8_304 = arith.constant 8 : index
    %650 = memref.load %arg8[%c0_303, %c8_304] : memref<4x36xf32, #tpu.memory_space<smem>>
    %651 = vector.broadcast %650 : f32 to vector<16x16xf32>
    %652 = arith.mulf %651, %548 : vector<16x16xf32>
    %653 = arith.addf %649, %652 : vector<16x16xf32>
    %c0_305 = arith.constant 0 : index
    %c9_306 = arith.constant 9 : index
    %654 = memref.load %arg8[%c0_305, %c9_306] : memref<4x36xf32, #tpu.memory_space<smem>>
    %655 = vector.broadcast %654 : f32 to vector<16x16xf32>
    %656 = arith.mulf %655, %551 : vector<16x16xf32>
    %657 = arith.addf %653, %656 : vector<16x16xf32>
    %c0_307 = arith.constant 0 : index
    %c10_308 = arith.constant 10 : index
    %658 = memref.load %arg8[%c0_307, %c10_308] : memref<4x36xf32, #tpu.memory_space<smem>>
    %659 = vector.broadcast %658 : f32 to vector<16x16xf32>
    %660 = arith.mulf %659, %554 : vector<16x16xf32>
    %661 = arith.addf %657, %660 : vector<16x16xf32>
    %c0_309 = arith.constant 0 : index
    %c11_310 = arith.constant 11 : index
    %662 = memref.load %arg8[%c0_309, %c11_310] : memref<4x36xf32, #tpu.memory_space<smem>>
    %663 = vector.broadcast %662 : f32 to vector<16x16xf32>
    %664 = arith.mulf %663, %557 : vector<16x16xf32>
    %665 = arith.addf %661, %664 : vector<16x16xf32>
    %c0_311 = arith.constant 0 : index
    %c12 = arith.constant 12 : index
    %666 = memref.load %arg8[%c0_311, %c12] : memref<4x36xf32, #tpu.memory_space<smem>>
    %667 = vector.broadcast %666 : f32 to vector<16x16xf32>
    %668 = arith.mulf %667, %560 : vector<16x16xf32>
    %669 = arith.addf %665, %668 : vector<16x16xf32>
    %c0_312 = arith.constant 0 : index
    %c13 = arith.constant 13 : index
    %670 = memref.load %arg8[%c0_312, %c13] : memref<4x36xf32, #tpu.memory_space<smem>>
    %671 = vector.broadcast %670 : f32 to vector<16x16xf32>
    %672 = arith.mulf %671, %563 : vector<16x16xf32>
    %673 = arith.addf %669, %672 : vector<16x16xf32>
    %c0_313 = arith.constant 0 : index
    %c14 = arith.constant 14 : index
    %674 = memref.load %arg8[%c0_313, %c14] : memref<4x36xf32, #tpu.memory_space<smem>>
    %675 = vector.broadcast %674 : f32 to vector<16x16xf32>
    %676 = arith.mulf %675, %566 : vector<16x16xf32>
    %677 = arith.addf %673, %676 : vector<16x16xf32>
    %c0_314 = arith.constant 0 : index
    %c15 = arith.constant 15 : index
    %678 = memref.load %arg8[%c0_314, %c15] : memref<4x36xf32, #tpu.memory_space<smem>>
    %679 = vector.broadcast %678 : f32 to vector<16x16xf32>
    %680 = arith.mulf %679, %569 : vector<16x16xf32>
    %681 = arith.addf %677, %680 : vector<16x16xf32>
    %c0_315 = arith.constant 0 : index
    %c16 = arith.constant 16 : index
    %682 = memref.load %arg8[%c0_315, %c16] : memref<4x36xf32, #tpu.memory_space<smem>>
    %683 = vector.broadcast %682 : f32 to vector<16x16xf32>
    %684 = arith.mulf %683, %506 : vector<16x16xf32>
    %685 = arith.addf %681, %684 : vector<16x16xf32>
    %c0_316 = arith.constant 0 : index
    %c17 = arith.constant 17 : index
    %686 = memref.load %arg8[%c0_316, %c17] : memref<4x36xf32, #tpu.memory_space<smem>>
    %687 = vector.broadcast %686 : f32 to vector<16x16xf32>
    %688 = arith.mulf %687, %511 : vector<16x16xf32>
    %689 = arith.addf %685, %688 : vector<16x16xf32>
    %c0_317 = arith.constant 0 : index
    %c18 = arith.constant 18 : index
    %690 = memref.load %arg8[%c0_317, %c18] : memref<4x36xf32, #tpu.memory_space<smem>>
    %691 = vector.broadcast %690 : f32 to vector<16x16xf32>
    %692 = arith.mulf %691, %516 : vector<16x16xf32>
    %693 = arith.addf %689, %692 : vector<16x16xf32>
    %c0_318 = arith.constant 0 : index
    %c19 = arith.constant 19 : index
    %694 = memref.load %arg8[%c0_318, %c19] : memref<4x36xf32, #tpu.memory_space<smem>>
    %695 = vector.broadcast %694 : f32 to vector<16x16xf32>
    %696 = arith.mulf %695, %521 : vector<16x16xf32>
    %697 = arith.addf %693, %696 : vector<16x16xf32>
    %c0_319 = arith.constant 0 : index
    %c20 = arith.constant 20 : index
    %698 = memref.load %arg8[%c0_319, %c20] : memref<4x36xf32, #tpu.memory_space<smem>>
    %699 = vector.broadcast %698 : f32 to vector<16x16xf32>
    %700 = arith.mulf %699, %572 : vector<16x16xf32>
    %701 = arith.addf %697, %700 : vector<16x16xf32>
    %c0_320 = arith.constant 0 : index
    %c21 = arith.constant 21 : index
    %702 = memref.load %arg8[%c0_320, %c21] : memref<4x36xf32, #tpu.memory_space<smem>>
    %703 = vector.broadcast %702 : f32 to vector<16x16xf32>
    %704 = arith.mulf %703, %575 : vector<16x16xf32>
    %705 = arith.addf %701, %704 : vector<16x16xf32>
    %c0_321 = arith.constant 0 : index
    %c22 = arith.constant 22 : index
    %706 = memref.load %arg8[%c0_321, %c22] : memref<4x36xf32, #tpu.memory_space<smem>>
    %707 = vector.broadcast %706 : f32 to vector<16x16xf32>
    %708 = arith.mulf %707, %578 : vector<16x16xf32>
    %709 = arith.addf %705, %708 : vector<16x16xf32>
    %c0_322 = arith.constant 0 : index
    %c23 = arith.constant 23 : index
    %710 = memref.load %arg8[%c0_322, %c23] : memref<4x36xf32, #tpu.memory_space<smem>>
    %711 = vector.broadcast %710 : f32 to vector<16x16xf32>
    %712 = arith.mulf %711, %581 : vector<16x16xf32>
    %713 = arith.addf %709, %712 : vector<16x16xf32>
    %c0_323 = arith.constant 0 : index
    %c24 = arith.constant 24 : index
    %714 = memref.load %arg8[%c0_323, %c24] : memref<4x36xf32, #tpu.memory_space<smem>>
    %715 = vector.broadcast %714 : f32 to vector<16x16xf32>
    %716 = arith.mulf %715, %596 : vector<16x16xf32>
    %717 = arith.addf %713, %716 : vector<16x16xf32>
    %c0_324 = arith.constant 0 : index
    %c25 = arith.constant 25 : index
    %718 = memref.load %arg8[%c0_324, %c25] : memref<4x36xf32, #tpu.memory_space<smem>>
    %719 = vector.broadcast %718 : f32 to vector<16x16xf32>
    %720 = arith.mulf %719, %599 : vector<16x16xf32>
    %721 = arith.addf %717, %720 : vector<16x16xf32>
    %c0_325 = arith.constant 0 : index
    %c26 = arith.constant 26 : index
    %722 = memref.load %arg8[%c0_325, %c26] : memref<4x36xf32, #tpu.memory_space<smem>>
    %723 = vector.broadcast %722 : f32 to vector<16x16xf32>
    %724 = arith.mulf %723, %602 : vector<16x16xf32>
    %725 = arith.addf %721, %724 : vector<16x16xf32>
    %c0_326 = arith.constant 0 : index
    %c27 = arith.constant 27 : index
    %726 = memref.load %arg8[%c0_326, %c27] : memref<4x36xf32, #tpu.memory_space<smem>>
    %727 = vector.broadcast %726 : f32 to vector<16x16xf32>
    %728 = arith.mulf %727, %605 : vector<16x16xf32>
    %729 = arith.addf %725, %728 : vector<16x16xf32>
    %c0_327 = arith.constant 0 : index
    %c28 = arith.constant 28 : index
    %730 = memref.load %arg8[%c0_327, %c28] : memref<4x36xf32, #tpu.memory_space<smem>>
    %731 = vector.broadcast %730 : f32 to vector<16x16xf32>
    %732 = arith.mulf %731, %584 : vector<16x16xf32>
    %733 = arith.addf %729, %732 : vector<16x16xf32>
    %c0_328 = arith.constant 0 : index
    %c29 = arith.constant 29 : index
    %734 = memref.load %arg8[%c0_328, %c29] : memref<4x36xf32, #tpu.memory_space<smem>>
    %735 = vector.broadcast %734 : f32 to vector<16x16xf32>
    %736 = arith.mulf %735, %587 : vector<16x16xf32>
    %737 = arith.addf %733, %736 : vector<16x16xf32>
    %c0_329 = arith.constant 0 : index
    %c30 = arith.constant 30 : index
    %738 = memref.load %arg8[%c0_329, %c30] : memref<4x36xf32, #tpu.memory_space<smem>>
    %739 = vector.broadcast %738 : f32 to vector<16x16xf32>
    %740 = arith.mulf %739, %590 : vector<16x16xf32>
    %741 = arith.addf %737, %740 : vector<16x16xf32>
    %c0_330 = arith.constant 0 : index
    %c31 = arith.constant 31 : index
    %742 = memref.load %arg8[%c0_330, %c31] : memref<4x36xf32, #tpu.memory_space<smem>>
    %743 = vector.broadcast %742 : f32 to vector<16x16xf32>
    %744 = arith.mulf %743, %593 : vector<16x16xf32>
    %745 = arith.addf %741, %744 : vector<16x16xf32>
    %c0_331 = arith.constant 0 : index
    %c32 = arith.constant 32 : index
    %746 = memref.load %arg8[%c0_331, %c32] : memref<4x36xf32, #tpu.memory_space<smem>>
    %747 = vector.broadcast %746 : f32 to vector<16x16xf32>
    %748 = arith.mulf %747, %608 : vector<16x16xf32>
    %749 = arith.addf %745, %748 : vector<16x16xf32>
    %c0_332 = arith.constant 0 : index
    %c33 = arith.constant 33 : index
    %750 = memref.load %arg8[%c0_332, %c33] : memref<4x36xf32, #tpu.memory_space<smem>>
    %751 = vector.broadcast %750 : f32 to vector<16x16xf32>
    %752 = arith.mulf %751, %611 : vector<16x16xf32>
    %753 = arith.addf %749, %752 : vector<16x16xf32>
    %c0_333 = arith.constant 0 : index
    %c34 = arith.constant 34 : index
    %754 = memref.load %arg8[%c0_333, %c34] : memref<4x36xf32, #tpu.memory_space<smem>>
    %755 = vector.broadcast %754 : f32 to vector<16x16xf32>
    %756 = arith.mulf %755, %614 : vector<16x16xf32>
    %757 = arith.addf %753, %756 : vector<16x16xf32>
    %c0_334 = arith.constant 0 : index
    %c35 = arith.constant 35 : index
    %758 = memref.load %arg8[%c0_334, %c35] : memref<4x36xf32, #tpu.memory_space<smem>>
    %759 = vector.broadcast %758 : f32 to vector<16x16xf32>
    %760 = arith.mulf %759, %617 : vector<16x16xf32>
    %761 = arith.addf %757, %760 : vector<16x16xf32>
    %c0_335 = arith.constant 0 : index
    %c0_336 = arith.constant 0 : index
    %c0_337 = arith.constant 0 : index
    %c0_338 = arith.constant 0 : index
    %762 = vector.load %arg10[%c0_335, %c0_336, %c0_337, %c0_338] : memref<1x4x16x16xf32, #tpu.memory_space<vmem>>, vector<1x1x16x16xf32>
    %763 = vector.shape_cast %762 : vector<1x1x16x16xf32> to vector<16x16xf32>
    %764 = vector.shape_cast %761 : vector<16x16xf32> to vector<1x1x16x16xf32>
    tpu.vector_store %arg10[%c0_335, %c0_336, %c0_337, %c0_338], %764 {strides = array<i32>} : memref<1x4x16x16xf32, #tpu.memory_space<vmem>>, vector<1x1x16x16xf32>,
    %c1_339 = arith.constant 1 : index
    %c0_340 = arith.constant 0 : index
    %765 = memref.load %arg8[%c1_339, %c0_340] : memref<4x36xf32, #tpu.memory_space<smem>>
    %766 = vector.broadcast %765 : f32 to vector<16x16xf32>
    %767 = arith.mulf %766, %536 : vector<16x16xf32>
    %768 = arith.addf %3, %767 : vector<16x16xf32>
    %c1_341 = arith.constant 1 : index
    %c1_342 = arith.constant 1 : index
    %769 = memref.load %arg8[%c1_341, %c1_342] : memref<4x36xf32, #tpu.memory_space<smem>>
    %770 = vector.broadcast %769 : f32 to vector<16x16xf32>
    %771 = arith.mulf %770, %539 : vector<16x16xf32>
    %772 = arith.addf %768, %771 : vector<16x16xf32>
    %c1_343 = arith.constant 1 : index
    %c2_344 = arith.constant 2 : index
    %773 = memref.load %arg8[%c1_343, %c2_344] : memref<4x36xf32, #tpu.memory_space<smem>>
    %774 = vector.broadcast %773 : f32 to vector<16x16xf32>
    %775 = arith.mulf %774, %542 : vector<16x16xf32>
    %776 = arith.addf %772, %775 : vector<16x16xf32>
    %c1_345 = arith.constant 1 : index
    %c3_346 = arith.constant 3 : index
    %777 = memref.load %arg8[%c1_345, %c3_346] : memref<4x36xf32, #tpu.memory_space<smem>>
    %778 = vector.broadcast %777 : f32 to vector<16x16xf32>
    %779 = arith.mulf %778, %545 : vector<16x16xf32>
    %780 = arith.addf %776, %779 : vector<16x16xf32>
    %c1_347 = arith.constant 1 : index
    %c4_348 = arith.constant 4 : index
    %781 = memref.load %arg8[%c1_347, %c4_348] : memref<4x36xf32, #tpu.memory_space<smem>>
    %782 = vector.broadcast %781 : f32 to vector<16x16xf32>
    %783 = arith.mulf %782, %524 : vector<16x16xf32>
    %784 = arith.addf %780, %783 : vector<16x16xf32>
    %c1_349 = arith.constant 1 : index
    %c5_350 = arith.constant 5 : index
    %785 = memref.load %arg8[%c1_349, %c5_350] : memref<4x36xf32, #tpu.memory_space<smem>>
    %786 = vector.broadcast %785 : f32 to vector<16x16xf32>
    %787 = arith.mulf %786, %527 : vector<16x16xf32>
    %788 = arith.addf %784, %787 : vector<16x16xf32>
    %c1_351 = arith.constant 1 : index
    %c6_352 = arith.constant 6 : index
    %789 = memref.load %arg8[%c1_351, %c6_352] : memref<4x36xf32, #tpu.memory_space<smem>>
    %790 = vector.broadcast %789 : f32 to vector<16x16xf32>
    %791 = arith.mulf %790, %530 : vector<16x16xf32>
    %792 = arith.addf %788, %791 : vector<16x16xf32>
    %c1_353 = arith.constant 1 : index
    %c7_354 = arith.constant 7 : index
    %793 = memref.load %arg8[%c1_353, %c7_354] : memref<4x36xf32, #tpu.memory_space<smem>>
    %794 = vector.broadcast %793 : f32 to vector<16x16xf32>
    %795 = arith.mulf %794, %533 : vector<16x16xf32>
    %796 = arith.addf %792, %795 : vector<16x16xf32>
    %c1_355 = arith.constant 1 : index
    %c8_356 = arith.constant 8 : index
    %797 = memref.load %arg8[%c1_355, %c8_356] : memref<4x36xf32, #tpu.memory_space<smem>>
    %798 = vector.broadcast %797 : f32 to vector<16x16xf32>
    %799 = arith.mulf %798, %548 : vector<16x16xf32>
    %800 = arith.addf %796, %799 : vector<16x16xf32>
    %c1_357 = arith.constant 1 : index
    %c9_358 = arith.constant 9 : index
    %801 = memref.load %arg8[%c1_357, %c9_358] : memref<4x36xf32, #tpu.memory_space<smem>>
    %802 = vector.broadcast %801 : f32 to vector<16x16xf32>
    %803 = arith.mulf %802, %551 : vector<16x16xf32>
    %804 = arith.addf %800, %803 : vector<16x16xf32>
    %c1_359 = arith.constant 1 : index
    %c10_360 = arith.constant 10 : index
    %805 = memref.load %arg8[%c1_359, %c10_360] : memref<4x36xf32, #tpu.memory_space<smem>>
    %806 = vector.broadcast %805 : f32 to vector<16x16xf32>
    %807 = arith.mulf %806, %554 : vector<16x16xf32>
    %808 = arith.addf %804, %807 : vector<16x16xf32>
    %c1_361 = arith.constant 1 : index
    %c11_362 = arith.constant 11 : index
    %809 = memref.load %arg8[%c1_361, %c11_362] : memref<4x36xf32, #tpu.memory_space<smem>>
    %810 = vector.broadcast %809 : f32 to vector<16x16xf32>
    %811 = arith.mulf %810, %557 : vector<16x16xf32>
    %812 = arith.addf %808, %811 : vector<16x16xf32>
    %c1_363 = arith.constant 1 : index
    %c12_364 = arith.constant 12 : index
    %813 = memref.load %arg8[%c1_363, %c12_364] : memref<4x36xf32, #tpu.memory_space<smem>>
    %814 = vector.broadcast %813 : f32 to vector<16x16xf32>
    %815 = arith.mulf %814, %560 : vector<16x16xf32>
    %816 = arith.addf %812, %815 : vector<16x16xf32>
    %c1_365 = arith.constant 1 : index
    %c13_366 = arith.constant 13 : index
    %817 = memref.load %arg8[%c1_365, %c13_366] : memref<4x36xf32, #tpu.memory_space<smem>>
    %818 = vector.broadcast %817 : f32 to vector<16x16xf32>
    %819 = arith.mulf %818, %563 : vector<16x16xf32>
    %820 = arith.addf %816, %819 : vector<16x16xf32>
    %c1_367 = arith.constant 1 : index
    %c14_368 = arith.constant 14 : index
    %821 = memref.load %arg8[%c1_367, %c14_368] : memref<4x36xf32, #tpu.memory_space<smem>>
    %822 = vector.broadcast %821 : f32 to vector<16x16xf32>
    %823 = arith.mulf %822, %566 : vector<16x16xf32>
    %824 = arith.addf %820, %823 : vector<16x16xf32>
    %c1_369 = arith.constant 1 : index
    %c15_370 = arith.constant 15 : index
    %825 = memref.load %arg8[%c1_369, %c15_370] : memref<4x36xf32, #tpu.memory_space<smem>>
    %826 = vector.broadcast %825 : f32 to vector<16x16xf32>
    %827 = arith.mulf %826, %569 : vector<16x16xf32>
    %828 = arith.addf %824, %827 : vector<16x16xf32>
    %c1_371 = arith.constant 1 : index
    %c16_372 = arith.constant 16 : index
    %829 = memref.load %arg8[%c1_371, %c16_372] : memref<4x36xf32, #tpu.memory_space<smem>>
    %830 = vector.broadcast %829 : f32 to vector<16x16xf32>
    %831 = arith.mulf %830, %506 : vector<16x16xf32>
    %832 = arith.addf %828, %831 : vector<16x16xf32>
    %c1_373 = arith.constant 1 : index
    %c17_374 = arith.constant 17 : index
    %833 = memref.load %arg8[%c1_373, %c17_374] : memref<4x36xf32, #tpu.memory_space<smem>>
    %834 = vector.broadcast %833 : f32 to vector<16x16xf32>
    %835 = arith.mulf %834, %511 : vector<16x16xf32>
    %836 = arith.addf %832, %835 : vector<16x16xf32>
    %c1_375 = arith.constant 1 : index
    %c18_376 = arith.constant 18 : index
    %837 = memref.load %arg8[%c1_375, %c18_376] : memref<4x36xf32, #tpu.memory_space<smem>>
    %838 = vector.broadcast %837 : f32 to vector<16x16xf32>
    %839 = arith.mulf %838, %516 : vector<16x16xf32>
    %840 = arith.addf %836, %839 : vector<16x16xf32>
    %c1_377 = arith.constant 1 : index
    %c19_378 = arith.constant 19 : index
    %841 = memref.load %arg8[%c1_377, %c19_378] : memref<4x36xf32, #tpu.memory_space<smem>>
    %842 = vector.broadcast %841 : f32 to vector<16x16xf32>
    %843 = arith.mulf %842, %521 : vector<16x16xf32>
    %844 = arith.addf %840, %843 : vector<16x16xf32>
    %c1_379 = arith.constant 1 : index
    %c20_380 = arith.constant 20 : index
    %845 = memref.load %arg8[%c1_379, %c20_380] : memref<4x36xf32, #tpu.memory_space<smem>>
    %846 = vector.broadcast %845 : f32 to vector<16x16xf32>
    %847 = arith.mulf %846, %572 : vector<16x16xf32>
    %848 = arith.addf %844, %847 : vector<16x16xf32>
    %c1_381 = arith.constant 1 : index
    %c21_382 = arith.constant 21 : index
    %849 = memref.load %arg8[%c1_381, %c21_382] : memref<4x36xf32, #tpu.memory_space<smem>>
    %850 = vector.broadcast %849 : f32 to vector<16x16xf32>
    %851 = arith.mulf %850, %575 : vector<16x16xf32>
    %852 = arith.addf %848, %851 : vector<16x16xf32>
    %c1_383 = arith.constant 1 : index
    %c22_384 = arith.constant 22 : index
    %853 = memref.load %arg8[%c1_383, %c22_384] : memref<4x36xf32, #tpu.memory_space<smem>>
    %854 = vector.broadcast %853 : f32 to vector<16x16xf32>
    %855 = arith.mulf %854, %578 : vector<16x16xf32>
    %856 = arith.addf %852, %855 : vector<16x16xf32>
    %c1_385 = arith.constant 1 : index
    %c23_386 = arith.constant 23 : index
    %857 = memref.load %arg8[%c1_385, %c23_386] : memref<4x36xf32, #tpu.memory_space<smem>>
    %858 = vector.broadcast %857 : f32 to vector<16x16xf32>
    %859 = arith.mulf %858, %581 : vector<16x16xf32>
    %860 = arith.addf %856, %859 : vector<16x16xf32>
    %c1_387 = arith.constant 1 : index
    %c24_388 = arith.constant 24 : index
    %861 = memref.load %arg8[%c1_387, %c24_388] : memref<4x36xf32, #tpu.memory_space<smem>>
    %862 = vector.broadcast %861 : f32 to vector<16x16xf32>
    %863 = arith.mulf %862, %596 : vector<16x16xf32>
    %864 = arith.addf %860, %863 : vector<16x16xf32>
    %c1_389 = arith.constant 1 : index
    %c25_390 = arith.constant 25 : index
    %865 = memref.load %arg8[%c1_389, %c25_390] : memref<4x36xf32, #tpu.memory_space<smem>>
    %866 = vector.broadcast %865 : f32 to vector<16x16xf32>
    %867 = arith.mulf %866, %599 : vector<16x16xf32>
    %868 = arith.addf %864, %867 : vector<16x16xf32>
    %c1_391 = arith.constant 1 : index
    %c26_392 = arith.constant 26 : index
    %869 = memref.load %arg8[%c1_391, %c26_392] : memref<4x36xf32, #tpu.memory_space<smem>>
    %870 = vector.broadcast %869 : f32 to vector<16x16xf32>
    %871 = arith.mulf %870, %602 : vector<16x16xf32>
    %872 = arith.addf %868, %871 : vector<16x16xf32>
    %c1_393 = arith.constant 1 : index
    %c27_394 = arith.constant 27 : index
    %873 = memref.load %arg8[%c1_393, %c27_394] : memref<4x36xf32, #tpu.memory_space<smem>>
    %874 = vector.broadcast %873 : f32 to vector<16x16xf32>
    %875 = arith.mulf %874, %605 : vector<16x16xf32>
    %876 = arith.addf %872, %875 : vector<16x16xf32>
    %c1_395 = arith.constant 1 : index
    %c28_396 = arith.constant 28 : index
    %877 = memref.load %arg8[%c1_395, %c28_396] : memref<4x36xf32, #tpu.memory_space<smem>>
    %878 = vector.broadcast %877 : f32 to vector<16x16xf32>
    %879 = arith.mulf %878, %584 : vector<16x16xf32>
    %880 = arith.addf %876, %879 : vector<16x16xf32>
    %c1_397 = arith.constant 1 : index
    %c29_398 = arith.constant 29 : index
    %881 = memref.load %arg8[%c1_397, %c29_398] : memref<4x36xf32, #tpu.memory_space<smem>>
    %882 = vector.broadcast %881 : f32 to vector<16x16xf32>
    %883 = arith.mulf %882, %587 : vector<16x16xf32>
    %884 = arith.addf %880, %883 : vector<16x16xf32>
    %c1_399 = arith.constant 1 : index
    %c30_400 = arith.constant 30 : index
    %885 = memref.load %arg8[%c1_399, %c30_400] : memref<4x36xf32, #tpu.memory_space<smem>>
    %886 = vector.broadcast %885 : f32 to vector<16x16xf32>
    %887 = arith.mulf %886, %590 : vector<16x16xf32>
    %888 = arith.addf %884, %887 : vector<16x16xf32>
    %c1_401 = arith.constant 1 : index
    %c31_402 = arith.constant 31 : index
    %889 = memref.load %arg8[%c1_401, %c31_402] : memref<4x36xf32, #tpu.memory_space<smem>>
    %890 = vector.broadcast %889 : f32 to vector<16x16xf32>
    %891 = arith.mulf %890, %593 : vector<16x16xf32>
    %892 = arith.addf %888, %891 : vector<16x16xf32>
    %c1_403 = arith.constant 1 : index
    %c32_404 = arith.constant 32 : index
    %893 = memref.load %arg8[%c1_403, %c32_404] : memref<4x36xf32, #tpu.memory_space<smem>>
    %894 = vector.broadcast %893 : f32 to vector<16x16xf32>
    %895 = arith.mulf %894, %608 : vector<16x16xf32>
    %896 = arith.addf %892, %895 : vector<16x16xf32>
    %c1_405 = arith.constant 1 : index
    %c33_406 = arith.constant 33 : index
    %897 = memref.load %arg8[%c1_405, %c33_406] : memref<4x36xf32, #tpu.memory_space<smem>>
    %898 = vector.broadcast %897 : f32 to vector<16x16xf32>
    %899 = arith.mulf %898, %611 : vector<16x16xf32>
    %900 = arith.addf %896, %899 : vector<16x16xf32>
    %c1_407 = arith.constant 1 : index
    %c34_408 = arith.constant 34 : index
    %901 = memref.load %arg8[%c1_407, %c34_408] : memref<4x36xf32, #tpu.memory_space<smem>>
    %902 = vector.broadcast %901 : f32 to vector<16x16xf32>
    %903 = arith.mulf %902, %614 : vector<16x16xf32>
    %904 = arith.addf %900, %903 : vector<16x16xf32>
    %c1_409 = arith.constant 1 : index
    %c35_410 = arith.constant 35 : index
    %905 = memref.load %arg8[%c1_409, %c35_410] : memref<4x36xf32, #tpu.memory_space<smem>>
    %906 = vector.broadcast %905 : f32 to vector<16x16xf32>
    %907 = arith.mulf %906, %617 : vector<16x16xf32>
    %908 = arith.addf %904, %907 : vector<16x16xf32>
    %c0_411 = arith.constant 0 : index
    %c1_412 = arith.constant 1 : index
    %c0_413 = arith.constant 0 : index
    %c0_414 = arith.constant 0 : index
    %909 = vector.load %arg10[%c0_411, %c1_412, %c0_413, %c0_414] : memref<1x4x16x16xf32, #tpu.memory_space<vmem>>, vector<1x1x16x16xf32>
    %910 = vector.shape_cast %909 : vector<1x1x16x16xf32> to vector<16x16xf32>
    %911 = vector.shape_cast %908 : vector<16x16xf32> to vector<1x1x16x16xf32>
    tpu.vector_store %arg10[%c0_411, %c1_412, %c0_413, %c0_414], %911 {strides = array<i32>} : memref<1x4x16x16xf32, #tpu.memory_space<vmem>>, vector<1x1x16x16xf32>,
    %c2_415 = arith.constant 2 : index
    %c0_416 = arith.constant 0 : index
    %912 = memref.load %arg8[%c2_415, %c0_416] : memref<4x36xf32, #tpu.memory_space<smem>>
    %913 = vector.broadcast %912 : f32 to vector<16x16xf32>
    %914 = arith.mulf %913, %536 : vector<16x16xf32>
    %915 = arith.addf %5, %914 : vector<16x16xf32>
    %c2_417 = arith.constant 2 : index
    %c1_418 = arith.constant 1 : index
    %916 = memref.load %arg8[%c2_417, %c1_418] : memref<4x36xf32, #tpu.memory_space<smem>>
    %917 = vector.broadcast %916 : f32 to vector<16x16xf32>
    %918 = arith.mulf %917, %539 : vector<16x16xf32>
    %919 = arith.addf %915, %918 : vector<16x16xf32>
    %c2_419 = arith.constant 2 : index
    %c2_420 = arith.constant 2 : index
    %920 = memref.load %arg8[%c2_419, %c2_420] : memref<4x36xf32, #tpu.memory_space<smem>>
    %921 = vector.broadcast %920 : f32 to vector<16x16xf32>
    %922 = arith.mulf %921, %542 : vector<16x16xf32>
    %923 = arith.addf %919, %922 : vector<16x16xf32>
    %c2_421 = arith.constant 2 : index
    %c3_422 = arith.constant 3 : index
    %924 = memref.load %arg8[%c2_421, %c3_422] : memref<4x36xf32, #tpu.memory_space<smem>>
    %925 = vector.broadcast %924 : f32 to vector<16x16xf32>
    %926 = arith.mulf %925, %545 : vector<16x16xf32>
    %927 = arith.addf %923, %926 : vector<16x16xf32>
    %c2_423 = arith.constant 2 : index
    %c4_424 = arith.constant 4 : index
    %928 = memref.load %arg8[%c2_423, %c4_424] : memref<4x36xf32, #tpu.memory_space<smem>>
    %929 = vector.broadcast %928 : f32 to vector<16x16xf32>
    %930 = arith.mulf %929, %524 : vector<16x16xf32>
    %931 = arith.addf %927, %930 : vector<16x16xf32>
    %c2_425 = arith.constant 2 : index
    %c5_426 = arith.constant 5 : index
    %932 = memref.load %arg8[%c2_425, %c5_426] : memref<4x36xf32, #tpu.memory_space<smem>>
    %933 = vector.broadcast %932 : f32 to vector<16x16xf32>
    %934 = arith.mulf %933, %527 : vector<16x16xf32>
    %935 = arith.addf %931, %934 : vector<16x16xf32>
    %c2_427 = arith.constant 2 : index
    %c6_428 = arith.constant 6 : index
    %936 = memref.load %arg8[%c2_427, %c6_428] : memref<4x36xf32, #tpu.memory_space<smem>>
    %937 = vector.broadcast %936 : f32 to vector<16x16xf32>
    %938 = arith.mulf %937, %530 : vector<16x16xf32>
    %939 = arith.addf %935, %938 : vector<16x16xf32>
    %c2_429 = arith.constant 2 : index
    %c7_430 = arith.constant 7 : index
    %940 = memref.load %arg8[%c2_429, %c7_430] : memref<4x36xf32, #tpu.memory_space<smem>>
    %941 = vector.broadcast %940 : f32 to vector<16x16xf32>
    %942 = arith.mulf %941, %533 : vector<16x16xf32>
    %943 = arith.addf %939, %942 : vector<16x16xf32>
    %c2_431 = arith.constant 2 : index
    %c8_432 = arith.constant 8 : index
    %944 = memref.load %arg8[%c2_431, %c8_432] : memref<4x36xf32, #tpu.memory_space<smem>>
    %945 = vector.broadcast %944 : f32 to vector<16x16xf32>
    %946 = arith.mulf %945, %548 : vector<16x16xf32>
    %947 = arith.addf %943, %946 : vector<16x16xf32>
    %c2_433 = arith.constant 2 : index
    %c9_434 = arith.constant 9 : index
    %948 = memref.load %arg8[%c2_433, %c9_434] : memref<4x36xf32, #tpu.memory_space<smem>>
    %949 = vector.broadcast %948 : f32 to vector<16x16xf32>
    %950 = arith.mulf %949, %551 : vector<16x16xf32>
    %951 = arith.addf %947, %950 : vector<16x16xf32>
    %c2_435 = arith.constant 2 : index
    %c10_436 = arith.constant 10 : index
    %952 = memref.load %arg8[%c2_435, %c10_436] : memref<4x36xf32, #tpu.memory_space<smem>>
    %953 = vector.broadcast %952 : f32 to vector<16x16xf32>
    %954 = arith.mulf %953, %554 : vector<16x16xf32>
    %955 = arith.addf %951, %954 : vector<16x16xf32>
    %c2_437 = arith.constant 2 : index
    %c11_438 = arith.constant 11 : index
    %956 = memref.load %arg8[%c2_437, %c11_438] : memref<4x36xf32, #tpu.memory_space<smem>>
    %957 = vector.broadcast %956 : f32 to vector<16x16xf32>
    %958 = arith.mulf %957, %557 : vector<16x16xf32>
    %959 = arith.addf %955, %958 : vector<16x16xf32>
    %c2_439 = arith.constant 2 : index
    %c12_440 = arith.constant 12 : index
    %960 = memref.load %arg8[%c2_439, %c12_440] : memref<4x36xf32, #tpu.memory_space<smem>>
    %961 = vector.broadcast %960 : f32 to vector<16x16xf32>
    %962 = arith.mulf %961, %560 : vector<16x16xf32>
    %963 = arith.addf %959, %962 : vector<16x16xf32>
    %c2_441 = arith.constant 2 : index
    %c13_442 = arith.constant 13 : index
    %964 = memref.load %arg8[%c2_441, %c13_442] : memref<4x36xf32, #tpu.memory_space<smem>>
    %965 = vector.broadcast %964 : f32 to vector<16x16xf32>
    %966 = arith.mulf %965, %563 : vector<16x16xf32>
    %967 = arith.addf %963, %966 : vector<16x16xf32>
    %c2_443 = arith.constant 2 : index
    %c14_444 = arith.constant 14 : index
    %968 = memref.load %arg8[%c2_443, %c14_444] : memref<4x36xf32, #tpu.memory_space<smem>>
    %969 = vector.broadcast %968 : f32 to vector<16x16xf32>
    %970 = arith.mulf %969, %566 : vector<16x16xf32>
    %971 = arith.addf %967, %970 : vector<16x16xf32>
    %c2_445 = arith.constant 2 : index
    %c15_446 = arith.constant 15 : index
    %972 = memref.load %arg8[%c2_445, %c15_446] : memref<4x36xf32, #tpu.memory_space<smem>>
    %973 = vector.broadcast %972 : f32 to vector<16x16xf32>
    %974 = arith.mulf %973, %569 : vector<16x16xf32>
    %975 = arith.addf %971, %974 : vector<16x16xf32>
    %c2_447 = arith.constant 2 : index
    %c16_448 = arith.constant 16 : index
    %976 = memref.load %arg8[%c2_447, %c16_448] : memref<4x36xf32, #tpu.memory_space<smem>>
    %977 = vector.broadcast %976 : f32 to vector<16x16xf32>
    %978 = arith.mulf %977, %506 : vector<16x16xf32>
    %979 = arith.addf %975, %978 : vector<16x16xf32>
    %c2_449 = arith.constant 2 : index
    %c17_450 = arith.constant 17 : index
    %980 = memref.load %arg8[%c2_449, %c17_450] : memref<4x36xf32, #tpu.memory_space<smem>>
    %981 = vector.broadcast %980 : f32 to vector<16x16xf32>
    %982 = arith.mulf %981, %511 : vector<16x16xf32>
    %983 = arith.addf %979, %982 : vector<16x16xf32>
    %c2_451 = arith.constant 2 : index
    %c18_452 = arith.constant 18 : index
    %984 = memref.load %arg8[%c2_451, %c18_452] : memref<4x36xf32, #tpu.memory_space<smem>>
    %985 = vector.broadcast %984 : f32 to vector<16x16xf32>
    %986 = arith.mulf %985, %516 : vector<16x16xf32>
    %987 = arith.addf %983, %986 : vector<16x16xf32>
    %c2_453 = arith.constant 2 : index
    %c19_454 = arith.constant 19 : index
    %988 = memref.load %arg8[%c2_453, %c19_454] : memref<4x36xf32, #tpu.memory_space<smem>>
    %989 = vector.broadcast %988 : f32 to vector<16x16xf32>
    %990 = arith.mulf %989, %521 : vector<16x16xf32>
    %991 = arith.addf %987, %990 : vector<16x16xf32>
    %c2_455 = arith.constant 2 : index
    %c20_456 = arith.constant 20 : index
    %992 = memref.load %arg8[%c2_455, %c20_456] : memref<4x36xf32, #tpu.memory_space<smem>>
    %993 = vector.broadcast %992 : f32 to vector<16x16xf32>
    %994 = arith.mulf %993, %572 : vector<16x16xf32>
    %995 = arith.addf %991, %994 : vector<16x16xf32>
    %c2_457 = arith.constant 2 : index
    %c21_458 = arith.constant 21 : index
    %996 = memref.load %arg8[%c2_457, %c21_458] : memref<4x36xf32, #tpu.memory_space<smem>>
    %997 = vector.broadcast %996 : f32 to vector<16x16xf32>
    %998 = arith.mulf %997, %575 : vector<16x16xf32>
    %999 = arith.addf %995, %998 : vector<16x16xf32>
    %c2_459 = arith.constant 2 : index
    %c22_460 = arith.constant 22 : index
    %1000 = memref.load %arg8[%c2_459, %c22_460] : memref<4x36xf32, #tpu.memory_space<smem>>
    %1001 = vector.broadcast %1000 : f32 to vector<16x16xf32>
    %1002 = arith.mulf %1001, %578 : vector<16x16xf32>
    %1003 = arith.addf %999, %1002 : vector<16x16xf32>
    %c2_461 = arith.constant 2 : index
    %c23_462 = arith.constant 23 : index
    %1004 = memref.load %arg8[%c2_461, %c23_462] : memref<4x36xf32, #tpu.memory_space<smem>>
    %1005 = vector.broadcast %1004 : f32 to vector<16x16xf32>
    %1006 = arith.mulf %1005, %581 : vector<16x16xf32>
    %1007 = arith.addf %1003, %1006 : vector<16x16xf32>
    %c2_463 = arith.constant 2 : index
    %c24_464 = arith.constant 24 : index
    %1008 = memref.load %arg8[%c2_463, %c24_464] : memref<4x36xf32, #tpu.memory_space<smem>>
    %1009 = vector.broadcast %1008 : f32 to vector<16x16xf32>
    %1010 = arith.mulf %1009, %596 : vector<16x16xf32>
    %1011 = arith.addf %1007, %1010 : vector<16x16xf32>
    %c2_465 = arith.constant 2 : index
    %c25_466 = arith.constant 25 : index
    %1012 = memref.load %arg8[%c2_465, %c25_466] : memref<4x36xf32, #tpu.memory_space<smem>>
    %1013 = vector.broadcast %1012 : f32 to vector<16x16xf32>
    %1014 = arith.mulf %1013, %599 : vector<16x16xf32>
    %1015 = arith.addf %1011, %1014 : vector<16x16xf32>
    %c2_467 = arith.constant 2 : index
    %c26_468 = arith.constant 26 : index
    %1016 = memref.load %arg8[%c2_467, %c26_468] : memref<4x36xf32, #tpu.memory_space<smem>>
    %1017 = vector.broadcast %1016 : f32 to vector<16x16xf32>
    %1018 = arith.mulf %1017, %602 : vector<16x16xf32>
    %1019 = arith.addf %1015, %1018 : vector<16x16xf32>
    %c2_469 = arith.constant 2 : index
    %c27_470 = arith.constant 27 : index
    %1020 = memref.load %arg8[%c2_469, %c27_470] : memref<4x36xf32, #tpu.memory_space<smem>>
    %1021 = vector.broadcast %1020 : f32 to vector<16x16xf32>
    %1022 = arith.mulf %1021, %605 : vector<16x16xf32>
    %1023 = arith.addf %1019, %1022 : vector<16x16xf32>
    %c2_471 = arith.constant 2 : index
    %c28_472 = arith.constant 28 : index
    %1024 = memref.load %arg8[%c2_471, %c28_472] : memref<4x36xf32, #tpu.memory_space<smem>>
    %1025 = vector.broadcast %1024 : f32 to vector<16x16xf32>
    %1026 = arith.mulf %1025, %584 : vector<16x16xf32>
    %1027 = arith.addf %1023, %1026 : vector<16x16xf32>
    %c2_473 = arith.constant 2 : index
    %c29_474 = arith.constant 29 : index
    %1028 = memref.load %arg8[%c2_473, %c29_474] : memref<4x36xf32, #tpu.memory_space<smem>>
    %1029 = vector.broadcast %1028 : f32 to vector<16x16xf32>
    %1030 = arith.mulf %1029, %587 : vector<16x16xf32>
    %1031 = arith.addf %1027, %1030 : vector<16x16xf32>
    %c2_475 = arith.constant 2 : index
    %c30_476 = arith.constant 30 : index
    %1032 = memref.load %arg8[%c2_475, %c30_476] : memref<4x36xf32, #tpu.memory_space<smem>>
    %1033 = vector.broadcast %1032 : f32 to vector<16x16xf32>
    %1034 = arith.mulf %1033, %590 : vector<16x16xf32>
    %1035 = arith.addf %1031, %1034 : vector<16x16xf32>
    %c2_477 = arith.constant 2 : index
    %c31_478 = arith.constant 31 : index
    %1036 = memref.load %arg8[%c2_477, %c31_478] : memref<4x36xf32, #tpu.memory_space<smem>>
    %1037 = vector.broadcast %1036 : f32 to vector<16x16xf32>
    %1038 = arith.mulf %1037, %593 : vector<16x16xf32>
    %1039 = arith.addf %1035, %1038 : vector<16x16xf32>
    %c2_479 = arith.constant 2 : index
    %c32_480 = arith.constant 32 : index
    %1040 = memref.load %arg8[%c2_479, %c32_480] : memref<4x36xf32, #tpu.memory_space<smem>>
    %1041 = vector.broadcast %1040 : f32 to vector<16x16xf32>
    %1042 = arith.mulf %1041, %608 : vector<16x16xf32>
    %1043 = arith.addf %1039, %1042 : vector<16x16xf32>
    %c2_481 = arith.constant 2 : index
    %c33_482 = arith.constant 33 : index
    %1044 = memref.load %arg8[%c2_481, %c33_482] : memref<4x36xf32, #tpu.memory_space<smem>>
    %1045 = vector.broadcast %1044 : f32 to vector<16x16xf32>
    %1046 = arith.mulf %1045, %611 : vector<16x16xf32>
    %1047 = arith.addf %1043, %1046 : vector<16x16xf32>
    %c2_483 = arith.constant 2 : index
    %c34_484 = arith.constant 34 : index
    %1048 = memref.load %arg8[%c2_483, %c34_484] : memref<4x36xf32, #tpu.memory_space<smem>>
    %1049 = vector.broadcast %1048 : f32 to vector<16x16xf32>
    %1050 = arith.mulf %1049, %614 : vector<16x16xf32>
    %1051 = arith.addf %1047, %1050 : vector<16x16xf32>
    %c2_485 = arith.constant 2 : index
    %c35_486 = arith.constant 35 : index
    %1052 = memref.load %arg8[%c2_485, %c35_486] : memref<4x36xf32, #tpu.memory_space<smem>>
    %1053 = vector.broadcast %1052 : f32 to vector<16x16xf32>
    %1054 = arith.mulf %1053, %617 : vector<16x16xf32>
    %1055 = arith.addf %1051, %1054 : vector<16x16xf32>
    %c0_487 = arith.constant 0 : index
    %c2_488 = arith.constant 2 : index
    %c0_489 = arith.constant 0 : index
    %c0_490 = arith.constant 0 : index
    %1056 = vector.load %arg10[%c0_487, %c2_488, %c0_489, %c0_490] : memref<1x4x16x16xf32, #tpu.memory_space<vmem>>, vector<1x1x16x16xf32>
    %1057 = vector.shape_cast %1056 : vector<1x1x16x16xf32> to vector<16x16xf32>
    %1058 = vector.shape_cast %1055 : vector<16x16xf32> to vector<1x1x16x16xf32>
    tpu.vector_store %arg10[%c0_487, %c2_488, %c0_489, %c0_490], %1058 {strides = array<i32>} : memref<1x4x16x16xf32, #tpu.memory_space<vmem>>, vector<1x1x16x16xf32>,
    %c3_491 = arith.constant 3 : index
    %c0_492 = arith.constant 0 : index
    %1059 = memref.load %arg8[%c3_491, %c0_492] : memref<4x36xf32, #tpu.memory_space<smem>>
    %1060 = vector.broadcast %1059 : f32 to vector<16x16xf32>
    %1061 = arith.mulf %1060, %536 : vector<16x16xf32>
    %1062 = arith.addf %7, %1061 : vector<16x16xf32>
    %c3_493 = arith.constant 3 : index
    %c1_494 = arith.constant 1 : index
    %1063 = memref.load %arg8[%c3_493, %c1_494] : memref<4x36xf32, #tpu.memory_space<smem>>
    %1064 = vector.broadcast %1063 : f32 to vector<16x16xf32>
    %1065 = arith.mulf %1064, %539 : vector<16x16xf32>
    %1066 = arith.addf %1062, %1065 : vector<16x16xf32>
    %c3_495 = arith.constant 3 : index
    %c2_496 = arith.constant 2 : index
    %1067 = memref.load %arg8[%c3_495, %c2_496] : memref<4x36xf32, #tpu.memory_space<smem>>
    %1068 = vector.broadcast %1067 : f32 to vector<16x16xf32>
    %1069 = arith.mulf %1068, %542 : vector<16x16xf32>
    %1070 = arith.addf %1066, %1069 : vector<16x16xf32>
    %c3_497 = arith.constant 3 : index
    %c3_498 = arith.constant 3 : index
    %1071 = memref.load %arg8[%c3_497, %c3_498] : memref<4x36xf32, #tpu.memory_space<smem>>
    %1072 = vector.broadcast %1071 : f32 to vector<16x16xf32>
    %1073 = arith.mulf %1072, %545 : vector<16x16xf32>
    %1074 = arith.addf %1070, %1073 : vector<16x16xf32>
    %c3_499 = arith.constant 3 : index
    %c4_500 = arith.constant 4 : index
    %1075 = memref.load %arg8[%c3_499, %c4_500] : memref<4x36xf32, #tpu.memory_space<smem>>
    %1076 = vector.broadcast %1075 : f32 to vector<16x16xf32>
    %1077 = arith.mulf %1076, %524 : vector<16x16xf32>
    %1078 = arith.addf %1074, %1077 : vector<16x16xf32>
    %c3_501 = arith.constant 3 : index
    %c5_502 = arith.constant 5 : index
    %1079 = memref.load %arg8[%c3_501, %c5_502] : memref<4x36xf32, #tpu.memory_space<smem>>
    %1080 = vector.broadcast %1079 : f32 to vector<16x16xf32>
    %1081 = arith.mulf %1080, %527 : vector<16x16xf32>
    %1082 = arith.addf %1078, %1081 : vector<16x16xf32>
    %c3_503 = arith.constant 3 : index
    %c6_504 = arith.constant 6 : index
    %1083 = memref.load %arg8[%c3_503, %c6_504] : memref<4x36xf32, #tpu.memory_space<smem>>
    %1084 = vector.broadcast %1083 : f32 to vector<16x16xf32>
    %1085 = arith.mulf %1084, %530 : vector<16x16xf32>
    %1086 = arith.addf %1082, %1085 : vector<16x16xf32>
    %c3_505 = arith.constant 3 : index
    %c7_506 = arith.constant 7 : index
    %1087 = memref.load %arg8[%c3_505, %c7_506] : memref<4x36xf32, #tpu.memory_space<smem>>
    %1088 = vector.broadcast %1087 : f32 to vector<16x16xf32>
    %1089 = arith.mulf %1088, %533 : vector<16x16xf32>
    %1090 = arith.addf %1086, %1089 : vector<16x16xf32>
    %c3_507 = arith.constant 3 : index
    %c8_508 = arith.constant 8 : index
    %1091 = memref.load %arg8[%c3_507, %c8_508] : memref<4x36xf32, #tpu.memory_space<smem>>
    %1092 = vector.broadcast %1091 : f32 to vector<16x16xf32>
    %1093 = arith.mulf %1092, %548 : vector<16x16xf32>
    %1094 = arith.addf %1090, %1093 : vector<16x16xf32>
    %c3_509 = arith.constant 3 : index
    %c9_510 = arith.constant 9 : index
    %1095 = memref.load %arg8[%c3_509, %c9_510] : memref<4x36xf32, #tpu.memory_space<smem>>
    %1096 = vector.broadcast %1095 : f32 to vector<16x16xf32>
    %1097 = arith.mulf %1096, %551 : vector<16x16xf32>
    %1098 = arith.addf %1094, %1097 : vector<16x16xf32>
    %c3_511 = arith.constant 3 : index
    %c10_512 = arith.constant 10 : index
    %1099 = memref.load %arg8[%c3_511, %c10_512] : memref<4x36xf32, #tpu.memory_space<smem>>
    %1100 = vector.broadcast %1099 : f32 to vector<16x16xf32>
    %1101 = arith.mulf %1100, %554 : vector<16x16xf32>
    %1102 = arith.addf %1098, %1101 : vector<16x16xf32>
    %c3_513 = arith.constant 3 : index
    %c11_514 = arith.constant 11 : index
    %1103 = memref.load %arg8[%c3_513, %c11_514] : memref<4x36xf32, #tpu.memory_space<smem>>
    %1104 = vector.broadcast %1103 : f32 to vector<16x16xf32>
    %1105 = arith.mulf %1104, %557 : vector<16x16xf32>
    %1106 = arith.addf %1102, %1105 : vector<16x16xf32>
    %c3_515 = arith.constant 3 : index
    %c12_516 = arith.constant 12 : index
    %1107 = memref.load %arg8[%c3_515, %c12_516] : memref<4x36xf32, #tpu.memory_space<smem>>
    %1108 = vector.broadcast %1107 : f32 to vector<16x16xf32>
    %1109 = arith.mulf %1108, %560 : vector<16x16xf32>
    %1110 = arith.addf %1106, %1109 : vector<16x16xf32>
    %c3_517 = arith.constant 3 : index
    %c13_518 = arith.constant 13 : index
    %1111 = memref.load %arg8[%c3_517, %c13_518] : memref<4x36xf32, #tpu.memory_space<smem>>
    %1112 = vector.broadcast %1111 : f32 to vector<16x16xf32>
    %1113 = arith.mulf %1112, %563 : vector<16x16xf32>
    %1114 = arith.addf %1110, %1113 : vector<16x16xf32>
    %c3_519 = arith.constant 3 : index
    %c14_520 = arith.constant 14 : index
    %1115 = memref.load %arg8[%c3_519, %c14_520] : memref<4x36xf32, #tpu.memory_space<smem>>
    %1116 = vector.broadcast %1115 : f32 to vector<16x16xf32>
    %1117 = arith.mulf %1116, %566 : vector<16x16xf32>
    %1118 = arith.addf %1114, %1117 : vector<16x16xf32>
    %c3_521 = arith.constant 3 : index
    %c15_522 = arith.constant 15 : index
    %1119 = memref.load %arg8[%c3_521, %c15_522] : memref<4x36xf32, #tpu.memory_space<smem>>
    %1120 = vector.broadcast %1119 : f32 to vector<16x16xf32>
    %1121 = arith.mulf %1120, %569 : vector<16x16xf32>
    %1122 = arith.addf %1118, %1121 : vector<16x16xf32>
    %c3_523 = arith.constant 3 : index
    %c16_524 = arith.constant 16 : index
    %1123 = memref.load %arg8[%c3_523, %c16_524] : memref<4x36xf32, #tpu.memory_space<smem>>
    %1124 = vector.broadcast %1123 : f32 to vector<16x16xf32>
    %1125 = arith.mulf %1124, %506 : vector<16x16xf32>
    %1126 = arith.addf %1122, %1125 : vector<16x16xf32>
    %c3_525 = arith.constant 3 : index
    %c17_526 = arith.constant 17 : index
    %1127 = memref.load %arg8[%c3_525, %c17_526] : memref<4x36xf32, #tpu.memory_space<smem>>
    %1128 = vector.broadcast %1127 : f32 to vector<16x16xf32>
    %1129 = arith.mulf %1128, %511 : vector<16x16xf32>
    %1130 = arith.addf %1126, %1129 : vector<16x16xf32>
    %c3_527 = arith.constant 3 : index
    %c18_528 = arith.constant 18 : index
    %1131 = memref.load %arg8[%c3_527, %c18_528] : memref<4x36xf32, #tpu.memory_space<smem>>
    %1132 = vector.broadcast %1131 : f32 to vector<16x16xf32>
    %1133 = arith.mulf %1132, %516 : vector<16x16xf32>
    %1134 = arith.addf %1130, %1133 : vector<16x16xf32>
    %c3_529 = arith.constant 3 : index
    %c19_530 = arith.constant 19 : index
    %1135 = memref.load %arg8[%c3_529, %c19_530] : memref<4x36xf32, #tpu.memory_space<smem>>
    %1136 = vector.broadcast %1135 : f32 to vector<16x16xf32>
    %1137 = arith.mulf %1136, %521 : vector<16x16xf32>
    %1138 = arith.addf %1134, %1137 : vector<16x16xf32>
    %c3_531 = arith.constant 3 : index
    %c20_532 = arith.constant 20 : index
    %1139 = memref.load %arg8[%c3_531, %c20_532] : memref<4x36xf32, #tpu.memory_space<smem>>
    %1140 = vector.broadcast %1139 : f32 to vector<16x16xf32>
    %1141 = arith.mulf %1140, %572 : vector<16x16xf32>
    %1142 = arith.addf %1138, %1141 : vector<16x16xf32>
    %c3_533 = arith.constant 3 : index
    %c21_534 = arith.constant 21 : index
    %1143 = memref.load %arg8[%c3_533, %c21_534] : memref<4x36xf32, #tpu.memory_space<smem>>
    %1144 = vector.broadcast %1143 : f32 to vector<16x16xf32>
    %1145 = arith.mulf %1144, %575 : vector<16x16xf32>
    %1146 = arith.addf %1142, %1145 : vector<16x16xf32>
    %c3_535 = arith.constant 3 : index
    %c22_536 = arith.constant 22 : index
    %1147 = memref.load %arg8[%c3_535, %c22_536] : memref<4x36xf32, #tpu.memory_space<smem>>
    %1148 = vector.broadcast %1147 : f32 to vector<16x16xf32>
    %1149 = arith.mulf %1148, %578 : vector<16x16xf32>
    %1150 = arith.addf %1146, %1149 : vector<16x16xf32>
    %c3_537 = arith.constant 3 : index
    %c23_538 = arith.constant 23 : index
    %1151 = memref.load %arg8[%c3_537, %c23_538] : memref<4x36xf32, #tpu.memory_space<smem>>
    %1152 = vector.broadcast %1151 : f32 to vector<16x16xf32>
    %1153 = arith.mulf %1152, %581 : vector<16x16xf32>
    %1154 = arith.addf %1150, %1153 : vector<16x16xf32>
    %c3_539 = arith.constant 3 : index
    %c24_540 = arith.constant 24 : index
    %1155 = memref.load %arg8[%c3_539, %c24_540] : memref<4x36xf32, #tpu.memory_space<smem>>
    %1156 = vector.broadcast %1155 : f32 to vector<16x16xf32>
    %1157 = arith.mulf %1156, %596 : vector<16x16xf32>
    %1158 = arith.addf %1154, %1157 : vector<16x16xf32>
    %c3_541 = arith.constant 3 : index
    %c25_542 = arith.constant 25 : index
    %1159 = memref.load %arg8[%c3_541, %c25_542] : memref<4x36xf32, #tpu.memory_space<smem>>
    %1160 = vector.broadcast %1159 : f32 to vector<16x16xf32>
    %1161 = arith.mulf %1160, %599 : vector<16x16xf32>
    %1162 = arith.addf %1158, %1161 : vector<16x16xf32>
    %c3_543 = arith.constant 3 : index
    %c26_544 = arith.constant 26 : index
    %1163 = memref.load %arg8[%c3_543, %c26_544] : memref<4x36xf32, #tpu.memory_space<smem>>
    %1164 = vector.broadcast %1163 : f32 to vector<16x16xf32>
    %1165 = arith.mulf %1164, %602 : vector<16x16xf32>
    %1166 = arith.addf %1162, %1165 : vector<16x16xf32>
    %c3_545 = arith.constant 3 : index
    %c27_546 = arith.constant 27 : index
    %1167 = memref.load %arg8[%c3_545, %c27_546] : memref<4x36xf32, #tpu.memory_space<smem>>
    %1168 = vector.broadcast %1167 : f32 to vector<16x16xf32>
    %1169 = arith.mulf %1168, %605 : vector<16x16xf32>
    %1170 = arith.addf %1166, %1169 : vector<16x16xf32>
    %c3_547 = arith.constant 3 : index
    %c28_548 = arith.constant 28 : index
    %1171 = memref.load %arg8[%c3_547, %c28_548] : memref<4x36xf32, #tpu.memory_space<smem>>
    %1172 = vector.broadcast %1171 : f32 to vector<16x16xf32>
    %1173 = arith.mulf %1172, %584 : vector<16x16xf32>
    %1174 = arith.addf %1170, %1173 : vector<16x16xf32>
    %c3_549 = arith.constant 3 : index
    %c29_550 = arith.constant 29 : index
    %1175 = memref.load %arg8[%c3_549, %c29_550] : memref<4x36xf32, #tpu.memory_space<smem>>
    %1176 = vector.broadcast %1175 : f32 to vector<16x16xf32>
    %1177 = arith.mulf %1176, %587 : vector<16x16xf32>
    %1178 = arith.addf %1174, %1177 : vector<16x16xf32>
    %c3_551 = arith.constant 3 : index
    %c30_552 = arith.constant 30 : index
    %1179 = memref.load %arg8[%c3_551, %c30_552] : memref<4x36xf32, #tpu.memory_space<smem>>
    %1180 = vector.broadcast %1179 : f32 to vector<16x16xf32>
    %1181 = arith.mulf %1180, %590 : vector<16x16xf32>
    %1182 = arith.addf %1178, %1181 : vector<16x16xf32>
    %c3_553 = arith.constant 3 : index
    %c31_554 = arith.constant 31 : index
    %1183 = memref.load %arg8[%c3_553, %c31_554] : memref<4x36xf32, #tpu.memory_space<smem>>
    %1184 = vector.broadcast %1183 : f32 to vector<16x16xf32>
    %1185 = arith.mulf %1184, %593 : vector<16x16xf32>
    %1186 = arith.addf %1182, %1185 : vector<16x16xf32>
    %c3_555 = arith.constant 3 : index
    %c32_556 = arith.constant 32 : index
    %1187 = memref.load %arg8[%c3_555, %c32_556] : memref<4x36xf32, #tpu.memory_space<smem>>
    %1188 = vector.broadcast %1187 : f32 to vector<16x16xf32>
    %1189 = arith.mulf %1188, %608 : vector<16x16xf32>
    %1190 = arith.addf %1186, %1189 : vector<16x16xf32>
    %c3_557 = arith.constant 3 : index
    %c33_558 = arith.constant 33 : index
    %1191 = memref.load %arg8[%c3_557, %c33_558] : memref<4x36xf32, #tpu.memory_space<smem>>
    %1192 = vector.broadcast %1191 : f32 to vector<16x16xf32>
    %1193 = arith.mulf %1192, %611 : vector<16x16xf32>
    %1194 = arith.addf %1190, %1193 : vector<16x16xf32>
    %c3_559 = arith.constant 3 : index
    %c34_560 = arith.constant 34 : index
    %1195 = memref.load %arg8[%c3_559, %c34_560] : memref<4x36xf32, #tpu.memory_space<smem>>
    %1196 = vector.broadcast %1195 : f32 to vector<16x16xf32>
    %1197 = arith.mulf %1196, %614 : vector<16x16xf32>
    %1198 = arith.addf %1194, %1197 : vector<16x16xf32>
    %c3_561 = arith.constant 3 : index
    %c35_562 = arith.constant 35 : index
    %1199 = memref.load %arg8[%c3_561, %c35_562] : memref<4x36xf32, #tpu.memory_space<smem>>
    %1200 = vector.broadcast %1199 : f32 to vector<16x16xf32>
    %1201 = arith.mulf %1200, %617 : vector<16x16xf32>
    %1202 = arith.addf %1198, %1201 : vector<16x16xf32>
    %c0_563 = arith.constant 0 : index
    %c3_564 = arith.constant 3 : index
    %c0_565 = arith.constant 0 : index
    %c0_566 = arith.constant 0 : index
    %1203 = vector.load %arg10[%c0_563, %c3_564, %c0_565, %c0_566] : memref<1x4x16x16xf32, #tpu.memory_space<vmem>>, vector<1x1x16x16xf32>
    %1204 = vector.shape_cast %1203 : vector<1x1x16x16xf32> to vector<16x16xf32>
    %1205 = vector.shape_cast %1202 : vector<16x16xf32> to vector<1x1x16x16xf32>
    tpu.vector_store %arg10[%c0_563, %c3_564, %c0_565, %c0_566], %1205 {strides = array<i32>} : memref<1x4x16x16xf32, #tpu.memory_space<vmem>>, vector<1x1x16x16xf32>,
    return
  }
  func.func @transform_0(%arg0: i32) -> (i32, i32, i32, i32) {
    %c0_i32 = arith.constant 0 : i32
    %c0_i32_0 = arith.constant 0 : i32
    %c0_i32_1 = arith.constant 0 : i32
    %c0_i32_2 = arith.constant 0 : i32
    return %arg0, %c0_i32, %c0_i32_0, %c0_i32_1 : i32, i32, i32, i32
  }
  func.func @transform_1(%arg0: i32) -> (i32, i32) {
    %c0_i32 = arith.constant 0 : i32
    %c0_i32_0 = arith.constant 0 : i32
    %c0_i32_1 = arith.constant 0 : i32
    return %c0_i32, %c0_i32_0 : i32, i32
  }
  func.func @transform_2(%arg0: i32) -> (i32, i32) {
    %c0_i32 = arith.constant 0 : i32
    %c0_i32_0 = arith.constant 0 : i32
    %c0_i32_1 = arith.constant 0 : i32
    return %c0_i32, %c0_i32_0 : i32, i32
  }
  func.func @transform_3(%arg0: i32) -> (i32, i32) {
    %c0_i32 = arith.constant 0 : i32
    %c0_i32_0 = arith.constant 0 : i32
    %c0_i32_1 = arith.constant 0 : i32
    return %c0_i32, %c0_i32_0 : i32, i32
  }
  func.func @transform_4(%arg0: i32) -> i32 {
    %c0_i32 = arith.constant 0 : i32
    %c0_i32_0 = arith.constant 0 : i32
    return %c0_i32 : i32
  }
  func.func @transform_5(%arg0: i32) -> (i32, i32) {
    %c0_i32 = arith.constant 0 : i32
    %c0_i32_0 = arith.constant 0 : i32
    %c0_i32_1 = arith.constant 0 : i32
    return %c0_i32, %c0_i32_0 : i32, i32
  }
  func.func @transform_6(%arg0: i32) -> i32 {
    %c0_i32 = arith.constant 0 : i32
    %c0_i32_0 = arith.constant 0 : i32
    return %c0_i32 : i32
  }
  func.func @transform_7(%arg0: i32) -> (i32, i32) {
    %c0_i32 = arith.constant 0 : i32
    %c0_i32_0 = arith.constant 0 : i32
    %c0_i32_1 = arith.constant 0 : i32
    return %c0_i32, %c0_i32_0 : i32, i32
  }
  func.func @transform_8(%arg0: i32) -> (i32, i32, i32, i32) {
    %c0_i32 = arith.constant 0 : i32
    %c0_i32_0 = arith.constant 0 : i32
    %c0_i32_1 = arith.constant 0 : i32
    %c0_i32_2 = arith.constant 0 : i32
    return %arg0, %c0_i32, %c0_i32_0, %c0_i32_1 : i32, i32, i32, i32
  }
  func.func @transform_9(%arg0: i32) -> (i32, i32, i32, i32) {
    %c0_i32 = arith.constant 0 : i32
    %c0_i32_0 = arith.constant 0 : i32
    %c0_i32_1 = arith.constant 0 : i32
    %c0_i32_2 = arith.constant 0 : i32
    return %arg0, %c0_i32, %c0_i32_0, %c0_i32_1 : i32, i32, i32, i32
  }
}

</mosaic_0001>

<llo_original>
// kernel: orient_forward.1
$region0: #{orient_forward.1}
  #allocation0 [shape = 'u32[]', space=smem, size = 0x4, offset = 0x4, fixed_abs, tag = 'smem constant byte address 0x4 - core index']
  #allocation1 [shape = 'u32[144,128]{1,0:T(1,128)}', space=vmem, size = 0x12000, scoped, tag = 'internal scratch']
  %s0 = inlined_call_operand.vmem [shape: f32[2,4,16,16], index: 0, kind: input, shape index: {}]
  %s1 = inlined_call_operand.vmem [shape: f32[16,14], index: 1, kind: input, shape index: {}]
  %s2 = inlined_call_operand.vmem [shape: f32[14,16], index: 2, kind: input, shape index: {}]
  %s3 = inlined_call_operand.vmem [shape: f32[4,12], index: 3, kind: input, shape index: {}]
  %s4 = inlined_call_operand.vmem [shape: f32[4], index: 4, kind: input, shape index: {}]
  %s5 = inlined_call_operand.vmem [shape: f32[4,12], index: 5, kind: input, shape index: {}]
  %s6 = inlined_call_operand.vmem [shape: f32[4], index: 6, kind: input, shape index: {}]
  %s7 = inlined_call_operand.vmem [shape: f32[4,36], index: 7, kind: input, shape index: {}]
  %s8 = inlined_call_operand.hbm [shape: f32[2,1,16,16], index: 8, kind: output, shape index: {0}]
  %s9 = inlined_call_operand.hbm [shape: f32[2,4,16,16], index: 9, kind: output, shape index: {1}]
  %10 = xla_tuple %s8, %s9
  %s11 = sld [smem:[#allocation0]]
  $region93: #{orient_forward.1} parent=0
    _
  %s13 = ssub.s32 1, %s11
  %s14 = scalar_select 0, %s13, %s11
  $region1: #{orient_forward.1} parent=0
    #allocation2 [shape = 'u8[2048]{0}', space=smem, size = 0x800, scoped, tag = 'input window, operand 3, single buffered']
    #allocation3 [shape = 's32[2]{0}', space=sflag, size = 0x8, scoped, tag = 'scoped memory for orient_forward.1']
    #allocation4 [shape = 's32[2]{0}', space=sflag, size = 0x8, scoped, tag = 'scoped memory for orient_forward.1']
    #allocation5 [shape = 'u8[512]{0}', space=smem, size = 0x200, scoped, tag = 'input window, operand 4, single buffered']
    #allocation6 [shape = 's32[1]{0}', space=sflag, size = 0x4, scoped, tag = 'scoped memory for orient_forward.1']
    #allocation7 [shape = 'u8[2048]{0}', space=smem, size = 0x800, scoped, tag = 'input window, operand 5, single buffered']
    #allocation8 [shape = 'u8[512]{0}', space=smem, size = 0x200, scoped, tag = 'input window, operand 6, single buffered']
    #allocation9 [shape = 's32[1]{0}', space=sflag, size = 0x4, scoped, tag = 'scoped memory for orient_forward.1']
    #allocation10 [shape = 'u8[2048]{0}', space=smem, size = 0x800, scoped, tag = 'input window, operand 7, single buffered']
    #allocation11 [shape = 'u8[16384]{0}', space=vmem, size = 0x4000, scoped, tag = 'output window, operand 0']
    #allocation12 [shape = 'u8[65536]{0}', space=vmem, size = 0x10000, scoped, tag = 'output window, operand 1']
    #allocation13 [shape = 's32[2]{0}', space=sflag, size = 0x8, scoped, tag = 'scoped memory for orient_forward.1']
    %15 = vsyncpa [#allocation4], 0
    %16 = vsyncpa [#allocation6], 0
    %17 = vsyncpa [#allocation9], 0
    %18 = vsyncpa [#allocation3], 0
    %s19 = scalar_lea.sflag [#allocation3], 1
    %20 = vsyncpa %s19, 0
    %21 = vsyncpa [#allocation13], 0
    %s22 = scalar_lea.sflag [#allocation13], 1
    %23 = vsyncpa %s22, 0
    loop: start=0, step=1, limit=4
    $region2: #{orient_forward.1} parent=1 // loop_pre_header
      _
    $region3: #{orient_forward.1} parent=1 // loop_header
      %s25 = sphi 0, %s29
      %p26 = scmp.ge.s32.totalorder %s25, 4
      %s35 = sphi 0, %s37
      %s38 = sphi 0, %s35
      %s39 = sphi 0, %s38
      %s55 = sphi 0, %s39
      %s59 = sphi 0, %s59
      %s61 = sphi 0, %s59
      %s62 = sphi 0, %s61
      %s76 = sphi 0, %s62
      %s80 = sphi 0, %s80
      %s82 = sphi 0, %s80
      %s83 = sphi 0, %s82
      %s97 = sphi 0, %s83
      %s101 = sphi 0, %s101
      %s103 = sphi 0, %s101
      %s104 = sphi 0, %s103
      %s118 = sphi 0, %s104
      %s122 = sphi 0, %s122
      %s124 = sphi 0, %s122
      %s125 = sphi 0, %s124
      %s139 = sphi 0, %s125
      %s143 = sphi 0, %s143
      %s145 = sphi 0, %s143
      %s146 = sphi 0, %s145
      %s160 = sphi 0, %s146
      %s164 = sphi 0, %s164
      %s166 = sphi 0, %s164
      %s167 = sphi 0, %s166
      %s181 = sphi 0, %s167
      %s185 = sphi 0, %s185
      %s187 = sphi 0, %s185
      %s188 = sphi 0, %s187
      %s202 = sphi 0, %s188
      %s208 = sphi 0, %s210
      %s211 = sphi 0, %s208
      %s212 = sphi 0, %s211
      %s228 = sphi 0, %s212
      %s234 = sphi 0, %s236
      %s237 = sphi 0, %s234
      %s238 = sphi 0, %s237
      %s254 = sphi 0, %s238
    $region4: #{orient_forward.1} parent=1 // loop_header_branch
      %28 = sbr.rel (%p26) target = $region8
    $region5: #{orient_forward.1} parent=1 // loop_body
      %s30 = ssub.s32 %s25, 1
      %s31 = ssub.s32 %s25, 2
      %s32 = sadd.s32 %s25, 1
      %s33 = ssub.s32 %s25, %s32
      %p34 = scmp.eq.s32.totalorder %s33, 0
      %s36 = sadd.s32 %s35, 1
      %s37 = scalar_select %p34, %s35, %s36
      %p40 = pneg %p34
      %p41 = scmp.eq.s32.totalorder %s25, 1
      %p42 = por %p40, %p41
      %p43 = scmp.ne.s32.totalorder %s35, %s38
      %p44 = scmp.eq.s32.totalorder %s25, 0
      %p45 = por %p43, %p44
      %p46 = scmp.ne.s32.totalorder %s35, %s38
      %p47 = scmp.eq.s32.totalorder %s30, 1
      %p48 = por %p46, %p47
      %p49 = scmp.ne.s32.totalorder %s38, %s39
      %p50 = scmp.eq.s32.totalorder %s30, 0
      %p51 = por %p49, %p50
      %p52 = scmp.ne.s32.totalorder %s38, %s39
      %p53 = scmp.eq.s32.totalorder %s31, 1
      %p54 = por %p52, %p53
      %p56 = scmp.ne.s32.totalorder %s39, %s55
      %p57 = scmp.eq.s32.totalorder %s31, 0
      %p58 = por %p56, %p57
      %s60 = sadd.s32 %s59, 1
      %p63 = scmp.eq.s32.totalorder %s25, 1
      %p64 = scmp.ne.s32.totalorder %s59, %s61
      %p65 = scmp.eq.s32.totalorder %s25, 0
      %p66 = por %p64, %p65
      %p67 = scmp.ne.s32.totalorder %s59, %s61
      %p68 = scmp.eq.s32.totalorder %s30, 1
      %p69 = por %p67, %p68
      %p70 = scmp.ne.s32.totalorder %s61, %s62
      %p71 = scmp.eq.s32.totalorder %s30, 0
      %p72 = por %p70, %p71
      %p73 = scmp.ne.s32.totalorder %s61, %s62
      %p74 = scmp.eq.s32.totalorder %s31, 1
      %p75 = por %p73, %p74
      %p77 = scmp.ne.s32.totalorder %s62, %s76
      %p78 = scmp.eq.s32.totalorder %s31, 0
      %p79 = por %p77, %p78
      %s81 = sadd.s32 %s80, 1
      %p84 = scmp.eq.s32.totalorder %s25, 1
      %p85 = scmp.ne.s32.totalorder %s80, %s82
      %p86 = scmp.eq.s32.totalorder %s25, 0
      %p87 = por %p85, %p86
      %p88 = scmp.ne.s32.totalorder %s80, %s82
      %p89 = scmp.eq.s32.totalorder %s30, 1
      %p90 = por %p88, %p89
      %p91 = scmp.ne.s32.totalorder %s82, %s83
      %p92 = scmp.eq.s32.totalorder %s30, 0
      %p93 = por %p91, %p92
      %p94 = scmp.ne.s32.totalorder %s82, %s83
      %p95 = scmp.eq.s32.totalorder %s31, 1
      %p96 = por %p94, %p95
      %p98 = scmp.ne.s32.totalorder %s83, %s97
      %p99 = scmp.eq.s32.totalorder %s31, 0
      %p100 = por %p98, %p99
      %s102 = sadd.s32 %s101, 1
      %p105 = scmp.eq.s32.totalorder %s25, 1
      %p106 = scmp.ne.s32.totalorder %s101, %s103
      %p107 = scmp.eq.s32.totalorder %s25, 0
      %p108 = por %p106, %p107
      %p109 = scmp.ne.s32.totalorder %s101, %s103
      %p110 = scmp.eq.s32.totalorder %s30, 1
      %p111 = por %p109, %p110
      %p112 = scmp.ne.s32.totalorder %s103, %s104
      %p113 = scmp.eq.s32.totalorder %s30, 0
      %p114 = por %p112, %p113
      %p115 = scmp.ne.s32.totalorder %s103, %s104
      %p116 = scmp.eq.s32.totalorder %s31, 1
      %p117 = por %p115, %p116
      %p119 = scmp.ne.s32.totalorder %s104, %s118
      %p120 = scmp.eq.s32.totalorder %s31, 0
      %p121 = por %p119, %p120
      %s123 = sadd.s32 %s122, 1
      %p126 = scmp.eq.s32.totalorder %s25, 1
      %p127 = scmp.ne.s32.totalorder %s122, %s124
      %p128 = scmp.eq.s32.totalorder %s25, 0
      %p129 = por %p127, %p128
      %p130 = scmp.ne.s32.totalorder %s122, %s124
      %p131 = scmp.eq.s32.totalorder %s30, 1
      %p132 = por %p130, %p131
      %p133 = scmp.ne.s32.totalorder %s124, %s125
      %p134 = scmp.eq.s32.totalorder %s30, 0
      %p135 = por %p133, %p134
      %p136 = scmp.ne.s32.totalorder %s124, %s125
      %p137 = scmp.eq.s32.totalorder %s31, 1
      %p138 = por %p136, %p137
      %p140 = scmp.ne.s32.totalorder %s125, %s139
      %p141 = scmp.eq.s32.totalorder %s31, 0
      %p142 = por %p140, %p141
      %s144 = sadd.s32 %s143, 1
      %p147 = scmp.eq.s32.totalorder %s25, 1
      %p148 = scmp.ne.s32.totalorder %s143, %s145
      %p149 = scmp.eq.s32.totalorder %s25, 0
      %p150 = por %p148, %p149
      %p151 = scmp.ne.s32.totalorder %s143, %s145
      %p152 = scmp.eq.s32.totalorder %s30, 1
      %p153 = por %p151, %p152
      %p154 = scmp.ne.s32.totalorder %s145, %s146
      %p155 = scmp.eq.s32.totalorder %s30, 0
      %p156 = por %p154, %p155
      %p157 = scmp.ne.s32.totalorder %s145, %s146
      %p158 = scmp.eq.s32.totalorder %s31, 1
      %p159 = por %p157, %p158
      %p161 = scmp.ne.s32.totalorder %s146, %s160
      %p162 = scmp.eq.s32.totalorder %s31, 0
      %p163 = por %p161, %p162
      %s165 = sadd.s32 %s164, 1
      %p168 = scmp.eq.s32.totalorder %s25, 1
      %p169 = scmp.ne.s32.totalorder %s164, %s166
      %p170 = scmp.eq.s32.totalorder %s25, 0
      %p171 = por %p169, %p170
      %p172 = scmp.ne.s32.totalorder %s164, %s166
      %p173 = scmp.eq.s32.totalorder %s30, 1
      %p174 = por %p172, %p173
      %p175 = scmp.ne.s32.totalorder %s166, %s167
      %p176 = scmp.eq.s32.totalorder %s30, 0
      %p177 = por %p175, %p176
      %p178 = scmp.ne.s32.totalorder %s166, %s167
      %p179 = scmp.eq.s32.totalorder %s31, 1
      %p180 = por %p178, %p179
      %p182 = scmp.ne.s32.totalorder %s167, %s181
      %p183 = scmp.eq.s32.totalorder %s31, 0
      %p184 = por %p182, %p183
      %s186 = sadd.s32 %s185, 1
      %p189 = scmp.eq.s32.totalorder %s25, 1
      %p190 = scmp.ne.s32.totalorder %s185, %s187
      %p191 = scmp.eq.s32.totalorder %s25, 0
      %p192 = por %p190, %p191
      %p193 = scmp.ne.s32.totalorder %s185, %s187
      %p194 = scmp.eq.s32.totalorder %s30, 1
      %p195 = por %p193, %p194
      %p196 = scmp.ne.s32.totalorder %s187, %s188
      %p197 = scmp.eq.s32.totalorder %s30, 0
      %p198 = por %p196, %p197
      %p199 = scmp.ne.s32.totalorder %s187, %s188
      %p200 = scmp.eq.s32.totalorder %s31, 1
      %p201 = por %p199, %p200
      %p203 = scmp.ne.s32.totalorder %s188, %s202
      %p204 = scmp.eq.s32.totalorder %s31, 0
      %p205 = por %p203, %p204
      %s206 = ssub.s32 %s25, %s32
      %p207 = scmp.eq.s32.totalorder %s206, 0
      %s209 = sadd.s32 %s208, 1
      %s210 = scalar_select %p207, %s208, %s209
      %p213 = pneg %p207
      %p214 = scmp.eq.s32.totalorder %s25, 1
      %p215 = por %p213, %p214
      %p216 = scmp.ne.s32.totalorder %s208, %s211
      %p217 = scmp.eq.s32.totalorder %s25, 0
      %p218 = por %p216, %p217
      %p219 = scmp.ne.s32.totalorder %s208, %s211
      %p220 = scmp.eq.s32.totalorder %s30, 1
      %p221 = por %p219, %p220
      %p222 = scmp.ne.s32.totalorder %s211, %s212
      %p223 = scmp.eq.s32.totalorder %s30, 0
      %p224 = por %p222, %p223
      %p225 = scmp.ne.s32.totalorder %s211, %s212
      %p226 = scmp.eq.s32.totalorder %s31, 1
      %p227 = por %p225, %p226
      %p229 = scmp.ne.s32.totalorder %s212, %s228
      %p230 = scmp.eq.s32.totalorder %s31, 0
      %p231 = por %p229, %p230
      %s232 = ssub.s32 %s25, %s32
      %p233 = scmp.eq.s32.totalorder %s232, 0
      %s235 = sadd.s32 %s234, 1
      %s236 = scalar_select %p233, %s234, %s235
      %p239 = pneg %p233
      %p240 = scmp.eq.s32.totalorder %s25, 1
      %p241 = por %p239, %p240
      %p242 = scmp.ne.s32.totalorder %s234, %s237
      %p243 = scmp.eq.s32.totalorder %s25, 0
      %p244 = por %p242, %p243
      %p245 = scmp.ne.s32.totalorder %s234, %s237
      %p246 = scmp.eq.s32.totalorder %s30, 1
      %p247 = por %p245, %p246
      %p248 = scmp.ne.s32.totalorder %s237, %s238
      %p249 = scmp.eq.s32.totalorder %s30, 0
      %p250 = por %p248, %p249
      %p251 = scmp.ne.s32.totalorder %s237, %s238
      %p252 = scmp.eq.s32.totalorder %s31, 1
      %p253 = por %p251, %p252
      %p255 = scmp.ne.s32.totalorder %s238, %s254
      %p256 = scmp.eq.s32.totalorder %s31, 0
      %p257 = por %p255, %p256
      %p258 = scmp.le.s32.totalorder 1, %s25
      %p259 = scmp.lt.s32.totalorder %s25, 3
      %p260 = pnand %p258, %p259
      %p261 = pneg %p260
      // Predicated region
      $region9: #{orient_forward.1} parent=5 // pred_check
        _
      $region10: #{orient_forward.1} parent=5 // pred_check_branch
        %263 = sbr.rel (%p260) target = $region12
      $region11: #{orient_forward.1} parent=5 // pred_region
        %s264 = ssub.s32 %s25, 1
        // Predicated region
        $region13: #{orient_forward.1} parent=11 // pred_check
          %p265 = pneg %p72
        $region14: #{orient_forward.1} parent=11 // pred_check_branch
          %267 = sbr.rel (%p265) target = $region16
        $region15: #{orient_forward.1} parent=11 // pred_region
          _
        $region16: #{orient_forward.1} parent=11 // pred_fallthru
          _
        // Predicated region
        $region17: #{orient_forward.1} parent=11 // pred_check
          %p268 = pneg %p93
        $region18: #{orient_forward.1} parent=11 // pred_check_branch
          %270 = sbr.rel (%p268) target = $region20
        $region19: #{orient_forward.1} parent=11 // pred_region
          _
        $region20: #{orient_forward.1} parent=11 // pred_fallthru
          _
        // Predicated region
        $region21: #{orient_forward.1} parent=11 // pred_check
          %p271 = pneg %p114
        $region22: #{orient_forward.1} parent=11 // pred_check_branch
          %273 = sbr.rel (%p271) target = $region24
        $region23: #{orient_forward.1} parent=11 // pred_region
          %s275 = ssub.s32 64, 64
          %276 = vsyncadd [#allocation4], %s275
          %s278 = sshll.u32 %s3, 4
          %s279 = int_to_ptr.vmem [resolvable:$true] %s278
          %281 = dma.vmem_to_smem %s279, 64, [#allocation2], [#allocation4]
        $region24: #{orient_forward.1} parent=11 // pred_fallthru
          _
        // Predicated region
        $region25: #{orient_forward.1} parent=11 // pred_check
          %p282 = pneg %p135
        $region26: #{orient_forward.1} parent=11 // pred_check_branch
          %284 = sbr.rel (%p282) target = $region28
        $region27: #{orient_forward.1} parent=11 // pred_region
          %s286 = ssub.s32 16, 16
          %287 = vsyncadd [#allocation6], %s286
          %s289 = sshll.u32 %s4, 4
          %s290 = int_to_ptr.vmem [resolvable:$true] %s289
          %292 = dma.vmem_to_smem %s290, 16, [#allocation5], [#allocation6]
        $region28: #{orient_forward.1} parent=11 // pred_fallthru
          _
        // Predicated region
        $region29: #{orient_forward.1} parent=11 // pred_check
          %p293 = pneg %p156
        $region30: #{orient_forward.1} parent=11 // pred_check_branch
          %295 = sbr.rel (%p293) target = $region32
        $region31: #{orient_forward.1} parent=11 // pred_region
          %s297 = ssub.s32 64, 64
          %298 = vsyncadd [#allocation6], %s297
          %s300 = sshll.u32 %s5, 4
          %s301 = int_to_ptr.vmem [resolvable:$true] %s300
          %303 = dma.vmem_to_smem %s301, 64, [#allocation7], [#allocation6]
        $region32: #{orient_forward.1} parent=11 // pred_fallthru
          _
        // Predicated region
        $region33: #{orient_forward.1} parent=11 // pred_check
          %p304 = pneg %p177
        $region34: #{orient_forward.1} parent=11 // pred_check_branch
          %306 = sbr.rel (%p304) target = $region36
        $region35: #{orient_forward.1} parent=11 // pred_region
          %s308 = ssub.s32 16, 16
          %309 = vsyncadd [#allocation9], %s308
          %s311 = sshll.u32 %s6, 4
          %s312 = int_to_ptr.vmem [resolvable:$true] %s311
          %314 = dma.vmem_to_smem %s312, 16, [#allocation8], [#allocation9]
        $region36: #{orient_forward.1} parent=11 // pred_fallthru
          _
        // Predicated region
        $region37: #{orient_forward.1} parent=11 // pred_check
          %p315 = pneg %p198
        $region38: #{orient_forward.1} parent=11 // pred_check_branch
          %317 = sbr.rel (%p315) target = $region40
        $region39: #{orient_forward.1} parent=11 // pred_region
          %s319 = ssub.s32 64, 64
          %320 = vsyncadd [#allocation9], %s319
          %s322 = sshll.u32 %s7, 4
          %s323 = int_to_ptr.vmem [resolvable:$true] %s322
          %325 = dma.vmem_to_smem %s323, 64, [#allocation10], [#allocation9]
        $region40: #{orient_forward.1} parent=11 // pred_fallthru
          _
      $region12: #{orient_forward.1} parent=5 // pred_fallthru
        _
      %p326 = scmp.lt.s32.totalorder %s25, 2
      // Predicated region
      $region41: #{orient_forward.1} parent=5 // pred_check
        %p327 = pneg %p326
      $region42: #{orient_forward.1} parent=5 // pred_check_branch
        %329 = sbr.rel (%p327) target = $region44
      $region43: #{orient_forward.1} parent=5 // pred_region
        // Predicated region
        $region45: #{orient_forward.1} parent=43 // pred_check
          %p330 = pneg %p45
        $region46: #{orient_forward.1} parent=43 // pred_check_branch
          %332 = sbr.rel (%p330) target = $region48
        $region47: #{orient_forward.1} parent=43 // pred_region
          %p333 = scmp.lt.s32.totalorder %s25, 1
          %s334 = scalar_select %p333, %s25, 1
          %s335 = smul.addr %s334, 8
          %s336 = smul.addr %s335, 8
          %s337 = scalar_lea.vmem %s0, %s336
        $region48: #{orient_forward.1} parent=43 // pred_fallthru
          _
      $region44: #{orient_forward.1} parent=5 // pred_fallthru
        _
      %p338 = scmp.le.s32.totalorder 1, %s25
      %p339 = scmp.lt.s32.totalorder %s25, 3
      %p340 = pnand %p338, %p339
      %p341 = pneg %p340
      // Predicated region
      $region49: #{orient_forward.1} parent=5 // pred_check
        _
      $region50: #{orient_forward.1} parent=5 // pred_check_branch
        %343 = sbr.rel (%p340) target = $region52
      $region51: #{orient_forward.1} parent=5 // pred_region
        %s344 = ssub.s32 %s25, 1
        // Predicated region
        $region53: #{orient_forward.1} parent=51 // pred_check
          %p345 = pneg %p114
        $region54: #{orient_forward.1} parent=51 // pred_check_branch
          %347 = sbr.rel (%p345) target = $region56
        $region55: #{orient_forward.1} parent=51 // pred_region
          %348 = dma.done [#allocation4], 64
        $region56: #{orient_forward.1} parent=51 // pred_fallthru
          _
        // Predicated region
        $region57: #{orient_forward.1} parent=51 // pred_check
          %p349 = pneg %p135
        $region58: #{orient_forward.1} parent=51 // pred_check_branch
          %351 = sbr.rel (%p349) target = $region60
        $region59: #{orient_forward.1} parent=51 // pred_region
          %352 = dma.done [#allocation6], 16
        $region60: #{orient_forward.1} parent=51 // pred_fallthru
          _
        // Predicated region
        $region61: #{orient_forward.1} parent=51 // pred_check
          %p353 = pneg %p156
        $region62: #{orient_forward.1} parent=51 // pred_check_branch
          %355 = sbr.rel (%p353) target = $region64
        $region63: #{orient_forward.1} parent=51 // pred_region
          %356 = dma.done [#allocation6], 64
        $region64: #{orient_forward.1} parent=51 // pred_fallthru
          _
        // Predicated region
        $region65: #{orient_forward.1} parent=51 // pred_check
          %p357 = pneg %p177
        $region66: #{orient_forward.1} parent=51 // pred_check_branch
          %359 = sbr.rel (%p357) target = $region68
        $region67: #{orient_forward.1} parent=51 // pred_region
          %360 = dma.done [#allocation9], 16
        $region68: #{orient_forward.1} parent=51 // pred_fallthru
          _
        // Predicated region
        $region69: #{orient_forward.1} parent=51 // pred_check
          %p361 = pneg %p198
        $region70: #{orient_forward.1} parent=51 // pred_check_branch
          %363 = sbr.rel (%p361) target = $region72
        $region71: #{orient_forward.1} parent=51 // pred_region
          %364 = dma.done [#allocation9], 64
        $region72: #{orient_forward.1} parent=51 // pred_fallthru
          _
        %365 = sfence
        %p366 = scmp.lt.s32.totalorder %s30, 1
        %s367 = scalar_select %p366, %s30, 1
        %s368 = smul.addr %s367, 8
        %s369 = smul.addr %s368, 8
        %s370 = scalar_lea.vmem %s0, %s369
        %p371 = pneg %p51
        %p372 = pneg %p48
        %p373 = pneg %p72
        %p374 = pneg %p69
        %p375 = pneg %p93
        %p376 = pneg %p90
        %p377 = pneg %p114
        %p378 = pneg %p111
        %p379 = pneg %p135
        %p380 = pneg %p132
        %p381 = pneg %p156
        %p382 = pneg %p153
        %p383 = pneg %p177
        %p384 = pneg %p174
        %p385 = pneg %p198
        %p386 = pneg %p195
        %p387 = pneg %p224
        %p388 = pneg %p221
        %s389 = sand.u32 %s211, 1
        %s390 = scalar_lea.sflag [#allocation3], %s389
        %s391 = sand.u32 %s211, 1
        %s392 = smul.addr %s391, 16
        %s393 = scalar_lea.vmem [#allocation11], %s392
        %p394 = pneg %p250
        %p395 = pneg %p247
        %s396 = sand.u32 %s237, 1
        %s397 = scalar_lea.sflag [#allocation13], %s396
        %s398 = sand.u32 %s237, 1
        %s399 = smul.addr %s398, 64
        %s400 = scalar_lea.vmem [#allocation12], %s399
        %p401 = scmp.lt.s32.totalorder %s30, 1
        %s402 = scalar_select %p401, %s30, 1
        %s403 = smul.addr %s402, 8
        %s404 = smul.addr %s403, 8
        %s405 = scalar_lea.vmem %s0, %s404
        %v406 = vld [vmem:[%s405] sm:$0xff]
        %v407 = vld [vmem:[%s405 + $0x8] sm:$0xff]
        %s408 = scalar_lea.vmem %s405, 16
        %v409 = vld [vmem:[%s408] sm:$0xff]
        %v410 = vld [vmem:[%s408 + $0x8] sm:$0xff]
        %s411 = scalar_lea.vmem %s405, 32
        %v412 = vld [vmem:[%s411] sm:$0xff]
        %v413 = vld [vmem:[%s411 + $0x8] sm:$0xff]
        %s414 = scalar_lea.vmem %s405, 48
        %v415 = vld [vmem:[%s414] sm:$0xff]
        %v416 = vld [vmem:[%s414 + $0x8] sm:$0xff]
        %s417 = sld [smem:[#allocation2]]
        %v418 = vstv %s417
        %v419 = vmul.f32 %v418, %v406
        %v420 = vmul.f32 %v418, %v407
        %v421 = vadd.f32 %v419, 0.0
        %v422 = vadd.f32 %v420, 0.0
        %s423 = sld [smem:[#allocation2 + $0x1]]
        %v424 = vstv %s423
        %v425 = vmul.f32 %v424, %v406
        %v426 = vmul.f32 %v424, %v407
        %vm429 = vcmask 1046528
        %v430 = vrot.slane %v425, 1
        %v431 = vrot.slane %v426, 1
        %v432 = vsel %vm429, %v430, %v431
        %v435 = vadd.f32 %v421, %v432
        %v436 = vadd.f32 %v422, %v431
        %s437 = sld [smem:[#allocation2 + $0x2]]
        %v438 = vstv %s437
        %v439 = vmul.f32 %v438, %v406
        %v440 = vmul.f32 %v438, %v407
        %vm443 = vcmask 1045504
        %v444 = vrot.slane %v439, 2
        %v445 = vrot.slane %v440, 2
        %v446 = vsel %vm443, %v444, %v445
        %v449 = vadd.f32 %v435, %v446
        %v450 = vadd.f32 %v436, %v445
        %s451 = sld [smem:[#allocation7]]
        %v452 = vstv %s451
        %v453 = vmul.f32 %v452, %v406
        %v454 = vmul.f32 %v452, %v407
        %v455 = vadd.f32 %v453, 0.0
        %v456 = vadd.f32 %v454, 0.0
        %s457 = sld [smem:[#allocation7 + $0x1]]
        %v458 = vstv %s457
        %v459 = vmul.f32 %v458, %v406
        %v460 = vmul.f32 %v458, %v407
        %463 = vrot.lane.b32.xlu0 %v459, 127
        %v464 = vpop.permute.xlu0 %463
        %465 = vrot.lane.b32.xlu0 %v460, 127
        %v466 = vpop.permute.xlu0 %465
        %v469 = vadd.f32 %v455, %v464
        %v470 = vadd.f32 %v456, %v466
        %s471 = sld [smem:[#allocation7 + $0x2]]
        %v472 = vstv %s471
        %v473 = vmul.f32 %v472, %v406
        %v474 = vmul.f32 %v472, %v407
        %477 = vrot.lane.b32.xlu0 %v473, 126
        %v478 = vpop.permute.xlu0 %477
        %479 = vrot.lane.b32.xlu0 %v474, 126
        %v480 = vpop.permute.xlu0 %479
        %v483 = vadd.f32 %v469, %v478
        %v484 = vadd.f32 %v470, %v480
        %s485 = sld [smem:[#allocation2 + $0x3]]
        %v486 = vstv %s485
        %v487 = vmul.f32 %v486, %v409
        %v488 = vmul.f32 %v486, %v410
        %v489 = vadd.f32 %v449, %v487
        %v490 = vadd.f32 %v450, %v488
        %s491 = sld [smem:[#allocation2 + $0x4]]
        %v492 = vstv %s491
        %v493 = vmul.f32 %v492, %v409
        %v494 = vmul.f32 %v492, %v410
        %v497 = vrot.slane %v493, 1
        %v498 = vrot.slane %v494, 1
        %v499 = vsel %vm429, %v497, %v498
        %v502 = vadd.f32 %v489, %v499
        %v503 = vadd.f32 %v490, %v498
        %s504 = sld [smem:[#allocation2 + $0x5]]
        %v505 = vstv %s504
        %v506 = vmul.f32 %v505, %v409
        %v507 = vmul.f32 %v505, %v410
        %v510 = vrot.slane %v506, 2
        %v511 = vrot.slane %v507, 2
        %v512 = vsel %vm443, %v510, %v511
        %v515 = vadd.f32 %v502, %v512
        %v516 = vadd.f32 %v503, %v511
        %s517 = sld [smem:[#allocation7 + $0x3]]
        %v518 = vstv %s517
        %v519 = vmul.f32 %v518, %v409
        %v520 = vmul.f32 %v518, %v410
        %v521 = vadd.f32 %v483, %v519
        %v522 = vadd.f32 %v484, %v520
        %s523 = sld [smem:[#allocation7 + $0x4]]
        %v524 = vstv %s523
        %v525 = vmul.f32 %v524, %v409
        %v526 = vmul.f32 %v524, %v410
        %529 = vrot.lane.b32.xlu0 %v525, 127
        %v530 = vpop.permute.xlu0 %529
        %531 = vrot.lane.b32.xlu0 %v526, 127
        %v532 = vpop.permute.xlu0 %531
        %v535 = vadd.f32 %v521, %v530
        %v536 = vadd.f32 %v522, %v532
        %s537 = sld [smem:[#allocation7 + $0x5]]
        %v538 = vstv %s537
        %v539 = vmul.f32 %v538, %v409
        %v540 = vmul.f32 %v538, %v410
        %543 = vrot.lane.b32.xlu0 %v539, 126
        %v544 = vpop.permute.xlu0 %543
        %545 = vrot.lane.b32.xlu0 %v540, 126
        %v546 = vpop.permute.xlu0 %545
        %v549 = vadd.f32 %v535, %v544
        %v550 = vadd.f32 %v536, %v546
        %s551 = sld [smem:[#allocation2 + $0x6]]
        %v552 = vstv %s551
        %v553 = vmul.f32 %v552, %v412
        %v554 = vmul.f32 %v552, %v413
        %v555 = vadd.f32 %v515, %v553
        %v556 = vadd.f32 %v516, %v554
        %s557 = sld [smem:[#allocation2 + $0x7]]
        %v558 = vstv %s557
        %v559 = vmul.f32 %v558, %v412
        %v560 = vmul.f32 %v558, %v413
        %v563 = vrot.slane %v559, 1
        %v564 = vrot.slane %v560, 1
        %v565 = vsel %vm429, %v563, %v564
        %v568 = vadd.f32 %v555, %v565
        %v569 = vadd.f32 %v556, %v564
        %s570 = sld [smem:[#allocation2 + $0x8]]
        %v571 = vstv %s570
        %v572 = vmul.f32 %v571, %v412
        %v573 = vmul.f32 %v571, %v413
        %v576 = vrot.slane %v572, 2
        %v577 = vrot.slane %v573, 2
        %v578 = vsel %vm443, %v576, %v577
        %v581 = vadd.f32 %v568, %v578
        %v582 = vadd.f32 %v569, %v577
        %s583 = sld [smem:[#allocation7 + $0x6]]
        %v584 = vstv %s583
        %v585 = vmul.f32 %v584, %v412
        %v586 = vmul.f32 %v584, %v413
        %v587 = vadd.f32 %v549, %v585
        %v588 = vadd.f32 %v550, %v586
        %s589 = sld [smem:[#allocation7 + $0x7]]
        %v590 = vstv %s589
        %v591 = vmul.f32 %v590, %v412
        %v592 = vmul.f32 %v590, %v413
        %595 = vrot.lane.b32.xlu0 %v591, 127
        %v596 = vpop.permute.xlu0 %595
        %597 = vrot.lane.b32.xlu0 %v592, 127
        %v598 = vpop.permute.xlu0 %597
        %v601 = vadd.f32 %v587, %v596
        %v602 = vadd.f32 %v588, %v598
        %s603 = sld [smem:[#allocation7 + $0x8]]
        %v604 = vstv %s603
        %v605 = vmul.f32 %v604, %v412
        %v606 = vmul.f32 %v604, %v413
        %609 = vrot.lane.b32.xlu0 %v605, 126
        %v610 = vpop.permute.xlu0 %609
        %611 = vrot.lane.b32.xlu0 %v606, 126
        %v612 = vpop.permute.xlu0 %611
        %v615 = vadd.f32 %v601, %v610
        %v616 = vadd.f32 %v602, %v612
        %s617 = sld [smem:[#allocation2 + $0x9]]
        %v618 = vstv %s617
        %v619 = vmul.f32 %v618, %v415
        %v620 = vmul.f32 %v618, %v416
        %v621 = vadd.f32 %v581, %v619
        %v622 = vadd.f32 %v582, %v620
        %s623 = sld [smem:[#allocation2 + $0xa]]
        %v624 = vstv %s623
        %v625 = vmul.f32 %v624, %v415
        %v626 = vmul.f32 %v624, %v416
        %v629 = vrot.slane %v625, 1
        %v630 = vrot.slane %v626, 1
        %v631 = vsel %vm429, %v629, %v630
        %v634 = vadd.f32 %v621, %v631
        %v635 = vadd.f32 %v622, %v630
        %s636 = sld [smem:[#allocation2 + $0xb]]
        %v637 = vstv %s636
        %v638 = vmul.f32 %v637, %v415
        %v639 = vmul.f32 %v637, %v416
        %v642 = vrot.slane %v638, 2
        %v643 = vrot.slane %v639, 2
        %v644 = vsel %vm443, %v642, %v643
        %v647 = vadd.f32 %v634, %v644
        %v648 = vadd.f32 %v635, %v643
        %s649 = sld [smem:[#allocation7 + $0x9]]
        %v650 = vstv %s649
        %v651 = vmul.f32 %v650, %v415
        %v652 = vmul.f32 %v650, %v416
        %v653 = vadd.f32 %v615, %v651
        %v654 = vadd.f32 %v616, %v652
        %s655 = sld [smem:[#allocation7 + $0xa]]
        %v656 = vstv %s655
        %v657 = vmul.f32 %v656, %v415
        %v658 = vmul.f32 %v656, %v416
        %661 = vrot.lane.b32.xlu0 %v657, 127
        %v662 = vpop.permute.xlu0 %661
        %663 = vrot.lane.b32.xlu0 %v658, 127
        %v664 = vpop.permute.xlu0 %663
        %v667 = vadd.f32 %v653, %v662
        %v668 = vadd.f32 %v654, %v664
        %s669 = sld [smem:[#allocation7 + $0xb]]
        %v670 = vstv %s669
        %v671 = vmul.f32 %v670, %v415
        %v672 = vmul.f32 %v670, %v416
        %675 = vrot.lane.b32.xlu0 %v671, 126
        %v676 = vpop.permute.xlu0 %675
        %677 = vrot.lane.b32.xlu0 %v672, 126
        %v678 = vpop.permute.xlu0 %677
        %v681 = vadd.f32 %v667, %v676
        %v682 = vadd.f32 %v668, %v678
        %s683 = sld [smem:[#allocation5]]
        %v684 = vstv %s683
        %v685 = vadd.f32 %v647, %v684
        %v686 = vadd.f32 %v648, %v684
        %v687 = vmax.f32 %v685, 0.0
        %v688 = vmax.f32 %v686, 0.0
        %v689 = vmin.f32 %v687, 6.0
        %v690 = vmin.f32 %v688, 6.0
        %s691 = sld [smem:[#allocation8]]
        %v692 = vstv %s691
        %v693 = vadd.f32 %v681, %v692
        %v694 = vadd.f32 %v682, %v692
        %v695 = vmax.f32 %v693, 0.0
        %v696 = vmax.f32 %v694, 0.0
        %v697 = vmin.f32 %v695, 6.0
        %v698 = vmin.f32 %v696, 6.0
        %s699 = sld [smem:[#allocation2 + $0x80]]
        %v700 = vstv %s699
        %v701 = vmul.f32 %v700, %v406
        %v702 = vmul.f32 %v700, %v407
        %v703 = vadd.f32 %v701, 0.0
        %v704 = vadd.f32 %v702, 0.0
        %s705 = sld [smem:[#allocation2 + $0x81]]
        %v706 = vstv %s705
        %v707 = vmul.f32 %v706, %v406
        %v708 = vmul.f32 %v706, %v407
        %v711 = vrot.slane %v707, 1
        %v712 = vrot.slane %v708, 1
        %v713 = vsel %vm429, %v711, %v712
        %v716 = vadd.f32 %v703, %v713
        %v717 = vadd.f32 %v704, %v712
        %s718 = sld [smem:[#allocation2 + $0x82]]
        %v719 = vstv %s718
        %v720 = vmul.f32 %v719, %v406
        %v721 = vmul.f32 %v719, %v407
        %v724 = vrot.slane %v720, 2
        %v725 = vrot.slane %v721, 2
        %v726 = vsel %vm443, %v724, %v725
        %v729 = vadd.f32 %v716, %v726
        %v730 = vadd.f32 %v717, %v725
        %s731 = sld [smem:[#allocation7 + $0x80]]
        %v732 = vstv %s731
        %v733 = vmul.f32 %v732, %v406
        %v734 = vmul.f32 %v732, %v407
        %v735 = vadd.f32 %v733, 0.0
        %v736 = vadd.f32 %v734, 0.0
        %s737 = sld [smem:[#allocation7 + $0x81]]
        %v738 = vstv %s737
        %v739 = vmul.f32 %v738, %v406
        %v740 = vmul.f32 %v738, %v407
        %743 = vrot.lane.b32.xlu0 %v739, 127
        %v744 = vpop.permute.xlu0 %743
        %745 = vrot.lane.b32.xlu0 %v740, 127
        %v746 = vpop.permute.xlu0 %745
        %v749 = vadd.f32 %v735, %v744
        %v750 = vadd.f32 %v736, %v746
        %s751 = sld [smem:[#allocation7 + $0x82]]
        %v752 = vstv %s751
        %v753 = vmul.f32 %v752, %v406
        %v754 = vmul.f32 %v752, %v407
        %757 = vrot.lane.b32.xlu0 %v753, 126
        %v758 = vpop.permute.xlu0 %757
        %759 = vrot.lane.b32.xlu0 %v754, 126
        %v760 = vpop.permute.xlu0 %759
        %v763 = vadd.f32 %v749, %v758
        %v764 = vadd.f32 %v750, %v760
        %s765 = sld [smem:[#allocation2 + $0x83]]
        %v766 = vstv %s765
        %v767 = vmul.f32 %v766, %v409
        %v768 = vmul.f32 %v766, %v410
        %v769 = vadd.f32 %v729, %v767
        %v770 = vadd.f32 %v730, %v768
        %s771 = sld [smem:[#allocation2 + $0x84]]
        %v772 = vstv %s771
        %v773 = vmul.f32 %v772, %v409
        %v774 = vmul.f32 %v772, %v410
        %v777 = vrot.slane %v773, 1
        %v778 = vrot.slane %v774, 1
        %v779 = vsel %vm429, %v777, %v778
        %v782 = vadd.f32 %v769, %v779
        %v783 = vadd.f32 %v770, %v778
        %s784 = sld [smem:[#allocation2 + $0x85]]
        %v785 = vstv %s784
        %v786 = vmul.f32 %v785, %v409
        %v787 = vmul.f32 %v785, %v410
        %v790 = vrot.slane %v786, 2
        %v791 = vrot.slane %v787, 2
        %v792 = vsel %vm443, %v790, %v791
        %v795 = vadd.f32 %v782, %v792
        %v796 = vadd.f32 %v783, %v791
        %s797 = sld [smem:[#allocation7 + $0x83]]
        %v798 = vstv %s797
        %v799 = vmul.f32 %v798, %v409
        %v800 = vmul.f32 %v798, %v410
        %v801 = vadd.f32 %v763, %v799
        %v802 = vadd.f32 %v764, %v800
        %s803 = sld [smem:[#allocation7 + $0x84]]
        %v804 = vstv %s803
        %v805 = vmul.f32 %v804, %v409
        %v806 = vmul.f32 %v804, %v410
        %809 = vrot.lane.b32.xlu0 %v805, 127
        %v810 = vpop.permute.xlu0 %809
        %811 = vrot.lane.b32.xlu0 %v806, 127
        %v812 = vpop.permute.xlu0 %811
        %v815 = vadd.f32 %v801, %v810
        %v816 = vadd.f32 %v802, %v812
        %s817 = sld [smem:[#allocation7 + $0x85]]
        %v818 = vstv %s817
        %v819 = vmul.f32 %v818, %v409
        %v820 = vmul.f32 %v818, %v410
        %823 = vrot.lane.b32.xlu0 %v819, 126
        %v824 = vpop.permute.xlu0 %823
        %825 = vrot.lane.b32.xlu0 %v820, 126
        %v826 = vpop.permute.xlu0 %825
        %v829 = vadd.f32 %v815, %v824
        %v830 = vadd.f32 %v816, %v826
        %s831 = sld [smem:[#allocation2 + $0x86]]
        %v832 = vstv %s831
        %v833 = vmul.f32 %v832, %v412
        %v834 = vmul.f32 %v832, %v413
        %v835 = vadd.f32 %v795, %v833
        %v836 = vadd.f32 %v796, %v834
        %s837 = sld [smem:[#allocation2 + $0x87]]
        %v838 = vstv %s837
        %v839 = vmul.f32 %v838, %v412
        %v840 = vmul.f32 %v838, %v413
        %v843 = vrot.slane %v839, 1
        %v844 = vrot.slane %v840, 1
        %v845 = vsel %vm429, %v843, %v844
        %v848 = vadd.f32 %v835, %v845
        %v849 = vadd.f32 %v836, %v844
        %s850 = sld [smem:[#allocation2 + $0x88]]
        %v851 = vstv %s850
        %v852 = vmul.f32 %v851, %v412
        %v853 = vmul.f32 %v851, %v413
        %v856 = vrot.slane %v852, 2
        %v857 = vrot.slane %v853, 2
        %v858 = vsel %vm443, %v856, %v857
        %v861 = vadd.f32 %v848, %v858
        %v862 = vadd.f32 %v849, %v857
        %s863 = sld [smem:[#allocation7 + $0x86]]
        %v864 = vstv %s863
        %v865 = vmul.f32 %v864, %v412
        %v866 = vmul.f32 %v864, %v413
        %v867 = vadd.f32 %v829, %v865
        %v868 = vadd.f32 %v830, %v866
        %s869 = sld [smem:[#allocation7 + $0x87]]
        %v870 = vstv %s869
        %v871 = vmul.f32 %v870, %v412
        %v872 = vmul.f32 %v870, %v413
        %875 = vrot.lane.b32.xlu0 %v871, 127
        %v876 = vpop.permute.xlu0 %875
        %877 = vrot.lane.b32.xlu0 %v872, 127
        %v878 = vpop.permute.xlu0 %877
        %v881 = vadd.f32 %v867, %v876
        %v882 = vadd.f32 %v868, %v878
        %s883 = sld [smem:[#allocation7 + $0x88]]
        %v884 = vstv %s883
        %v885 = vmul.f32 %v884, %v412
        %v886 = vmul.f32 %v884, %v413
        %889 = vrot.lane.b32.xlu0 %v885, 126
        %v890 = vpop.permute.xlu0 %889
        %891 = vrot.lane.b32.xlu0 %v886, 126
        %v892 = vpop.permute.xlu0 %891
        %v895 = vadd.f32 %v881, %v890
        %v896 = vadd.f32 %v882, %v892
        %s897 = sld [smem:[#allocation2 + $0x89]]
        %v898 = vstv %s897
        %v899 = vmul.f32 %v898, %v415
        %v900 = vmul.f32 %v898, %v416
        %v901 = vadd.f32 %v861, %v899
        %v902 = vadd.f32 %v862, %v900
        %s903 = sld [smem:[#allocation2 + $0x8a]]
        %v904 = vstv %s903
        %v905 = vmul.f32 %v904, %v415
        %v906 = vmul.f32 %v904, %v416
        %v909 = vrot.slane %v905, 1
        %v910 = vrot.slane %v906, 1
        %v911 = vsel %vm429, %v909, %v910
        %v914 = vadd.f32 %v901, %v911
        %v915 = vadd.f32 %v902, %v910
        %s916 = sld [smem:[#allocation2 + $0x8b]]
        %v917 = vstv %s916
        %v918 = vmul.f32 %v917, %v415
        %v919 = vmul.f32 %v917, %v416
        %v922 = vrot.slane %v918, 2
        %v923 = vrot.slane %v919, 2
        %v924 = vsel %vm443, %v922, %v923
        %v927 = vadd.f32 %v914, %v924
        %v928 = vadd.f32 %v915, %v923
        %s929 = sld [smem:[#allocation7 + $0x89]]
        %v930 = vstv %s929
        %v931 = vmul.f32 %v930, %v415
        %v932 = vmul.f32 %v930, %v416
        %v933 = vadd.f32 %v895, %v931
        %v934 = vadd.f32 %v896, %v932
        %s935 = sld [smem:[#allocation7 + $0x8a]]
        %v936 = vstv %s935
        %v937 = vmul.f32 %v936, %v415
        %v938 = vmul.f32 %v936, %v416
        %941 = vrot.lane.b32.xlu0 %v937, 127
        %v942 = vpop.permute.xlu0 %941
        %943 = vrot.lane.b32.xlu0 %v938, 127
        %v944 = vpop.permute.xlu0 %943
        %v947 = vadd.f32 %v933, %v942
        %v948 = vadd.f32 %v934, %v944
        %s949 = sld [smem:[#allocation7 + $0x8b]]
        %v950 = vstv %s949
        %v951 = vmul.f32 %v950, %v415
        %v952 = vmul.f32 %v950, %v416
        %955 = vrot.lane.b32.xlu0 %v951, 126
        %v956 = vpop.permute.xlu0 %955
        %957 = vrot.lane.b32.xlu0 %v952, 126
        %v958 = vpop.permute.xlu0 %957
        %v961 = vadd.f32 %v947, %v956
        %v962 = vadd.f32 %v948, %v958
        %s963 = sld [smem:[#allocation5 + $0x1]]
        %v964 = vstv %s963
        %v965 = vadd.f32 %v927, %v964
        %v966 = vadd.f32 %v928, %v964
        %v967 = vmax.f32 %v965, 0.0
        %v968 = vmax.f32 %v966, 0.0
        %v969 = vmin.f32 %v967, 6.0
        %v970 = vmin.f32 %v968, 6.0
        %s971 = sld [smem:[#allocation8 + $0x1]]
        %v972 = vstv %s971
        %v973 = vadd.f32 %v961, %v972
        %v974 = vadd.f32 %v962, %v972
        %v975 = vmax.f32 %v973, 0.0
        %v976 = vmax.f32 %v974, 0.0
        %v977 = vmin.f32 %v975, 6.0
        %v978 = vmin.f32 %v976, 6.0
        %s979 = sld [smem:[#allocation2 + $0x100]]
        %v980 = vstv %s979
        %v981 = vmul.f32 %v980, %v406
        %v982 = vmul.f32 %v980, %v407
        %v983 = vadd.f32 %v981, 0.0
        %v984 = vadd.f32 %v982, 0.0
        %s985 = sld [smem:[#allocation2 + $0x101]]
        %v986 = vstv %s985
        %v987 = vmul.f32 %v986, %v406
        %v988 = vmul.f32 %v986, %v407
        %v991 = vrot.slane %v987, 1
        %v992 = vrot.slane %v988, 1
        %v993 = vsel %vm429, %v991, %v992
        %v996 = vadd.f32 %v983, %v993
        %v997 = vadd.f32 %v984, %v992
        %s998 = sld [smem:[#allocation2 + $0x102]]
        %v999 = vstv %s998
        %v1000 = vmul.f32 %v999, %v406
        %v1001 = vmul.f32 %v999, %v407
        %v1004 = vrot.slane %v1000, 2
        %v1005 = vrot.slane %v1001, 2
        %v1006 = vsel %vm443, %v1004, %v1005
        %v1009 = vadd.f32 %v996, %v1006
        %v1010 = vadd.f32 %v997, %v1005
        %s1011 = sld [smem:[#allocation7 + $0x100]]
        %v1012 = vstv %s1011
        %v1013 = vmul.f32 %v1012, %v406
        %v1014 = vmul.f32 %v1012, %v407
        %v1015 = vadd.f32 %v1013, 0.0
        %v1016 = vadd.f32 %v1014, 0.0
        %s1017 = sld [smem:[#allocation7 + $0x101]]
        %v1018 = vstv %s1017
        %v1019 = vmul.f32 %v1018, %v406
        %v1020 = vmul.f32 %v1018, %v407
        %1023 = vrot.lane.b32.xlu0 %v1019, 127
        %v1024 = vpop.permute.xlu0 %1023
        %1025 = vrot.lane.b32.xlu0 %v1020, 127
        %v1026 = vpop.permute.xlu0 %1025
        %v1029 = vadd.f32 %v1015, %v1024
        %v1030 = vadd.f32 %v1016, %v1026
        %s1031 = sld [smem:[#allocation7 + $0x102]]
        %v1032 = vstv %s1031
        %v1033 = vmul.f32 %v1032, %v406
        %v1034 = vmul.f32 %v1032, %v407
        %1037 = vrot.lane.b32.xlu0 %v1033, 126
        %v1038 = vpop.permute.xlu0 %1037
        %1039 = vrot.lane.b32.xlu0 %v1034, 126
        %v1040 = vpop.permute.xlu0 %1039
        %v1043 = vadd.f32 %v1029, %v1038
        %v1044 = vadd.f32 %v1030, %v1040
        %s1045 = sld [smem:[#allocation2 + $0x103]]
        %v1046 = vstv %s1045
        %v1047 = vmul.f32 %v1046, %v409
        %v1048 = vmul.f32 %v1046, %v410
        %v1049 = vadd.f32 %v1009, %v1047
        %v1050 = vadd.f32 %v1010, %v1048
        %s1051 = sld [smem:[#allocation2 + $0x104]]
        %v1052 = vstv %s1051
        %v1053 = vmul.f32 %v1052, %v409
        %v1054 = vmul.f32 %v1052, %v410
        %v1057 = vrot.slane %v1053, 1
        %v1058 = vrot.slane %v1054, 1
        %v1059 = vsel %vm429, %v1057, %v1058
        %v1062 = vadd.f32 %v1049, %v1059
        %v1063 = vadd.f32 %v1050, %v1058
        %s1064 = sld [smem:[#allocation2 + $0x105]]
        %v1065 = vstv %s1064
        %v1066 = vmul.f32 %v1065, %v409
        %v1067 = vmul.f32 %v1065, %v410
        %v1070 = vrot.slane %v1066, 2
        %v1071 = vrot.slane %v1067, 2
        %v1072 = vsel %vm443, %v1070, %v1071
        %v1075 = vadd.f32 %v1062, %v1072
        %v1076 = vadd.f32 %v1063, %v1071
        %s1077 = sld [smem:[#allocation7 + $0x103]]
        %v1078 = vstv %s1077
        %v1079 = vmul.f32 %v1078, %v409
        %v1080 = vmul.f32 %v1078, %v410
        %v1081 = vadd.f32 %v1043, %v1079
        %v1082 = vadd.f32 %v1044, %v1080
        %s1083 = sld [smem:[#allocation7 + $0x104]]
        %v1084 = vstv %s1083
        %v1085 = vmul.f32 %v1084, %v409
        %v1086 = vmul.f32 %v1084, %v410
        %1089 = vrot.lane.b32.xlu0 %v1085, 127
        %v1090 = vpop.permute.xlu0 %1089
        %1091 = vrot.lane.b32.xlu0 %v1086, 127
        %v1092 = vpop.permute.xlu0 %1091
        %v1095 = vadd.f32 %v1081, %v1090
        %v1096 = vadd.f32 %v1082, %v1092
        %s1097 = sld [smem:[#allocation7 + $0x105]]
        %v1098 = vstv %s1097
        %v1099 = vmul.f32 %v1098, %v409
        %v1100 = vmul.f32 %v1098, %v410
        %1103 = vrot.lane.b32.xlu0 %v1099, 126
        %v1104 = vpop.permute.xlu0 %1103
        %1105 = vrot.lane.b32.xlu0 %v1100, 126
        %v1106 = vpop.permute.xlu0 %1105
        %v1109 = vadd.f32 %v1095, %v1104
        %v1110 = vadd.f32 %v1096, %v1106
        %s1111 = sld [smem:[#allocation2 + $0x106]]
        %v1112 = vstv %s1111
        %v1113 = vmul.f32 %v1112, %v412
        %v1114 = vmul.f32 %v1112, %v413
        %v1115 = vadd.f32 %v1075, %v1113
        %v1116 = vadd.f32 %v1076, %v1114
        %s1117 = sld [smem:[#allocation2 + $0x107]]
        %v1118 = vstv %s1117
        %v1119 = vmul.f32 %v1118, %v412
        %v1120 = vmul.f32 %v1118, %v413
        %v1123 = vrot.slane %v1119, 1
        %v1124 = vrot.slane %v1120, 1
        %v1125 = vsel %vm429, %v1123, %v1124
        %v1128 = vadd.f32 %v1115, %v1125
        %v1129 = vadd.f32 %v1116, %v1124
        %s1130 = sld [smem:[#allocation2 + $0x108]]
        %v1131 = vstv %s1130
        %v1132 = vmul.f32 %v1131, %v412
        %v1133 = vmul.f32 %v1131, %v413
        %v1136 = vrot.slane %v1132, 2
        %v1137 = vrot.slane %v1133, 2
        %v1138 = vsel %vm443, %v1136, %v1137
        %v1141 = vadd.f32 %v1128, %v1138
        %v1142 = vadd.f32 %v1129, %v1137
        %s1143 = sld [smem:[#allocation7 + $0x106]]
        %v1144 = vstv %s1143
        %v1145 = vmul.f32 %v1144, %v412
        %v1146 = vmul.f32 %v1144, %v413
        %v1147 = vadd.f32 %v1109, %v1145
        %v1148 = vadd.f32 %v1110, %v1146
        %s1149 = sld [smem:[#allocation7 + $0x107]]
        %v1150 = vstv %s1149
        %v1151 = vmul.f32 %v1150, %v412
        %v1152 = vmul.f32 %v1150, %v413
        %1155 = vrot.lane.b32.xlu0 %v1151, 127
        %v1156 = vpop.permute.xlu0 %1155
        %1157 = vrot.lane.b32.xlu0 %v1152, 127
        %v1158 = vpop.permute.xlu0 %1157
        %v1161 = vadd.f32 %v1147, %v1156
        %v1162 = vadd.f32 %v1148, %v1158
        %s1163 = sld [smem:[#allocation7 + $0x108]]
        %v1164 = vstv %s1163
        %v1165 = vmul.f32 %v1164, %v412
        %v1166 = vmul.f32 %v1164, %v413
        %1169 = vrot.lane.b32.xlu0 %v1165, 126
        %v1170 = vpop.permute.xlu0 %1169
        %1171 = vrot.lane.b32.xlu0 %v1166, 126
        %v1172 = vpop.permute.xlu0 %1171
        %v1175 = vadd.f32 %v1161, %v1170
        %v1176 = vadd.f32 %v1162, %v1172
        %s1177 = sld [smem:[#allocation2 + $0x109]]
        %v1178 = vstv %s1177
        %v1179 = vmul.f32 %v1178, %v415
        %v1180 = vmul.f32 %v1178, %v416
        %v1181 = vadd.f32 %v1141, %v1179
        %v1182 = vadd.f32 %v1142, %v1180
        %s1183 = sld [smem:[#allocation2 + $0x10a]]
        %v1184 = vstv %s1183
        %v1185 = vmul.f32 %v1184, %v415
        %v1186 = vmul.f32 %v1184, %v416
        %v1189 = vrot.slane %v1185, 1
        %v1190 = vrot.slane %v1186, 1
        %v1191 = vsel %vm429, %v1189, %v1190
        %v1194 = vadd.f32 %v1181, %v1191
        %v1195 = vadd.f32 %v1182, %v1190
        %s1196 = sld [smem:[#allocation2 + $0x10b]]
        %v1197 = vstv %s1196
        %v1198 = vmul.f32 %v1197, %v415
        %v1199 = vmul.f32 %v1197, %v416
        %v1202 = vrot.slane %v1198, 2
        %v1203 = vrot.slane %v1199, 2
        %v1204 = vsel %vm443, %v1202, %v1203
        %v1207 = vadd.f32 %v1194, %v1204
        %v1208 = vadd.f32 %v1195, %v1203
        %s1209 = sld [smem:[#allocation7 + $0x109]]
        %v1210 = vstv %s1209
        %v1211 = vmul.f32 %v1210, %v415
        %v1212 = vmul.f32 %v1210, %v416
        %v1213 = vadd.f32 %v1175, %v1211
        %v1214 = vadd.f32 %v1176, %v1212
        %s1215 = sld [smem:[#allocation7 + $0x10a]]
        %v1216 = vstv %s1215
        %v1217 = vmul.f32 %v1216, %v415
        %v1218 = vmul.f32 %v1216, %v416
        %1221 = vrot.lane.b32.xlu0 %v1217, 127
        %v1222 = vpop.permute.xlu0 %1221
        %1223 = vrot.lane.b32.xlu0 %v1218, 127
        %v1224 = vpop.permute.xlu0 %1223
        %v1227 = vadd.f32 %v1213, %v1222
        %v1228 = vadd.f32 %v1214, %v1224
        %s1229 = sld [smem:[#allocation7 + $0x10b]]
        %v1230 = vstv %s1229
        %v1231 = vmul.f32 %v1230, %v415
        %v1232 = vmul.f32 %v1230, %v416
        %1235 = vrot.lane.b32.xlu0 %v1231, 126
        %v1236 = vpop.permute.xlu0 %1235
        %1237 = vrot.lane.b32.xlu0 %v1232, 126
        %v1238 = vpop.permute.xlu0 %1237
        %v1241 = vadd.f32 %v1227, %v1236
        %v1242 = vadd.f32 %v1228, %v1238
        %s1243 = sld [smem:[#allocation5 + $0x2]]
        %v1244 = vstv %s1243
        %v1245 = vadd.f32 %v1207, %v1244
        %v1246 = vadd.f32 %v1208, %v1244
        %v1247 = vmax.f32 %v1245, 0.0
        %v1248 = vmax.f32 %v1246, 0.0
        %v1249 = vmin.f32 %v1247, 6.0
        %v1250 = vmin.f32 %v1248, 6.0
        %s1251 = sld [smem:[#allocation8 + $0x2]]
        %v1252 = vstv %s1251
        %v1253 = vadd.f32 %v1241, %v1252
        %v1254 = vadd.f32 %v1242, %v1252
        %v1255 = vmax.f32 %v1253, 0.0
        %v1256 = vmax.f32 %v1254, 0.0
        %v1257 = vmin.f32 %v1255, 6.0
        %v1258 = vmin.f32 %v1256, 6.0
        %s1259 = sld [smem:[#allocation2 + $0x180]]
        %v1260 = vstv %s1259
        %v1261 = vmul.f32 %v1260, %v406
        %v1262 = vmul.f32 %v1260, %v407
        %v1263 = vadd.f32 %v1261, 0.0
        %v1264 = vadd.f32 %v1262, 0.0
        %s1265 = sld [smem:[#allocation2 + $0x181]]
        %v1266 = vstv %s1265
        %v1267 = vmul.f32 %v1266, %v406
        %v1268 = vmul.f32 %v1266, %v407
        %v1271 = vrot.slane %v1267, 1
        %v1272 = vrot.slane %v1268, 1
        %v1273 = vsel %vm429, %v1271, %v1272
        %v1276 = vadd.f32 %v1263, %v1273
        %v1277 = vadd.f32 %v1264, %v1272
        %s1278 = sld [smem:[#allocation2 + $0x182]]
        %v1279 = vstv %s1278
        %v1280 = vmul.f32 %v1279, %v406
        %v1281 = vmul.f32 %v1279, %v407
        %v1284 = vrot.slane %v1280, 2
        %v1285 = vrot.slane %v1281, 2
        %v1286 = vsel %vm443, %v1284, %v1285
        %v1289 = vadd.f32 %v1276, %v1286
        %v1290 = vadd.f32 %v1277, %v1285
        %s1291 = sld [smem:[#allocation7 + $0x180]]
        %v1292 = vstv %s1291
        %v1293 = vmul.f32 %v1292, %v406
        %v1294 = vmul.f32 %v1292, %v407
        %v1295 = vadd.f32 %v1293, 0.0
        %v1296 = vadd.f32 %v1294, 0.0
        %s1297 = sld [smem:[#allocation7 + $0x181]]
        %v1298 = vstv %s1297
        %v1299 = vmul.f32 %v1298, %v406
        %v1300 = vmul.f32 %v1298, %v407
        %1303 = vrot.lane.b32.xlu0 %v1299, 127
        %v1304 = vpop.permute.xlu0 %1303
        %1305 = vrot.lane.b32.xlu0 %v1300, 127
        %v1306 = vpop.permute.xlu0 %1305
        %v1309 = vadd.f32 %v1295, %v1304
        %v1310 = vadd.f32 %v1296, %v1306
        %s1311 = sld [smem:[#allocation7 + $0x182]]
        %v1312 = vstv %s1311
        %v1313 = vmul.f32 %v1312, %v406
        %v1314 = vmul.f32 %v1312, %v407
        %1317 = vrot.lane.b32.xlu0 %v1313, 126
        %v1318 = vpop.permute.xlu0 %1317
        %1319 = vrot.lane.b32.xlu0 %v1314, 126
        %v1320 = vpop.permute.xlu0 %1319
        %v1323 = vadd.f32 %v1309, %v1318
        %v1324 = vadd.f32 %v1310, %v1320
        %s1325 = sld [smem:[#allocation2 + $0x183]]
        %v1326 = vstv %s1325
        %v1327 = vmul.f32 %v1326, %v409
        %v1328 = vmul.f32 %v1326, %v410
        %v1329 = vadd.f32 %v1289, %v1327
        %v1330 = vadd.f32 %v1290, %v1328
        %s1331 = sld [smem:[#allocation2 + $0x184]]
        %v1332 = vstv %s1331
        %v1333 = vmul.f32 %v1332, %v409
        %v1334 = vmul.f32 %v1332, %v410
        %v1337 = vrot.slane %v1333, 1
        %v1338 = vrot.slane %v1334, 1
        %v1339 = vsel %vm429, %v1337, %v1338
        %v1342 = vadd.f32 %v1329, %v1339
        %v1343 = vadd.f32 %v1330, %v1338
        %s1344 = sld [smem:[#allocation2 + $0x185]]
        %v1345 = vstv %s1344
        %v1346 = vmul.f32 %v1345, %v409
        %v1347 = vmul.f32 %v1345, %v410
        %v1350 = vrot.slane %v1346, 2
        %v1351 = vrot.slane %v1347, 2
        %v1352 = vsel %vm443, %v1350, %v1351
        %v1355 = vadd.f32 %v1342, %v1352
        %v1356 = vadd.f32 %v1343, %v1351
        %s1357 = sld [smem:[#allocation7 + $0x183]]
        %v1358 = vstv %s1357
        %v1359 = vmul.f32 %v1358, %v409
        %v1360 = vmul.f32 %v1358, %v410
        %v1361 = vadd.f32 %v1323, %v1359
        %v1362 = vadd.f32 %v1324, %v1360
        %s1363 = sld [smem:[#allocation7 + $0x184]]
        %v1364 = vstv %s1363
        %v1365 = vmul.f32 %v1364, %v409
        %v1366 = vmul.f32 %v1364, %v410
        %1369 = vrot.lane.b32.xlu0 %v1365, 127
        %v1370 = vpop.permute.xlu0 %1369
        %1371 = vrot.lane.b32.xlu0 %v1366, 127
        %v1372 = vpop.permute.xlu0 %1371
        %v1375 = vadd.f32 %v1361, %v1370
        %v1376 = vadd.f32 %v1362, %v1372
        %s1377 = sld [smem:[#allocation7 + $0x185]]
        %v1378 = vstv %s1377
        %v1379 = vmul.f32 %v1378, %v409
        %v1380 = vmul.f32 %v1378, %v410
        %1383 = vrot.lane.b32.xlu0 %v1379, 126
        %v1384 = vpop.permute.xlu0 %1383
        %1385 = vrot.lane.b32.xlu0 %v1380, 126
        %v1386 = vpop.permute.xlu0 %1385
        %v1389 = vadd.f32 %v1375, %v1384
        %v1390 = vadd.f32 %v1376, %v1386
        %s1391 = sld [smem:[#allocation2 + $0x186]]
        %v1392 = vstv %s1391
        %v1393 = vmul.f32 %v1392, %v412
        %v1394 = vmul.f32 %v1392, %v413
        %v1395 = vadd.f32 %v1355, %v1393
        %v1396 = vadd.f32 %v1356, %v1394
        %s1397 = sld [smem:[#allocation2 + $0x187]]
        %v1398 = vstv %s1397
        %v1399 = vmul.f32 %v1398, %v412
        %v1400 = vmul.f32 %v1398, %v413
        %v1403 = vrot.slane %v1399, 1
        %v1404 = vrot.slane %v1400, 1
        %v1405 = vsel %vm429, %v1403, %v1404
        %v1408 = vadd.f32 %v1395, %v1405
        %v1409 = vadd.f32 %v1396, %v1404
        %s1410 = sld [smem:[#allocation2 + $0x188]]
        %v1411 = vstv %s1410
        %v1412 = vmul.f32 %v1411, %v412
        %v1413 = vmul.f32 %v1411, %v413
        %v1416 = vrot.slane %v1412, 2
        %v1417 = vrot.slane %v1413, 2
        %v1418 = vsel %vm443, %v1416, %v1417
        %v1421 = vadd.f32 %v1408, %v1418
        %v1422 = vadd.f32 %v1409, %v1417
        %s1423 = sld [smem:[#allocation7 + $0x186]]
        %v1424 = vstv %s1423
        %v1425 = vmul.f32 %v1424, %v412
        %v1426 = vmul.f32 %v1424, %v413
        %v1427 = vadd.f32 %v1389, %v1425
        %v1428 = vadd.f32 %v1390, %v1426
        %s1429 = sld [smem:[#allocation7 + $0x187]]
        %v1430 = vstv %s1429
        %v1431 = vmul.f32 %v1430, %v412
        %v1432 = vmul.f32 %v1430, %v413
        %1435 = vrot.lane.b32.xlu0 %v1431, 127
        %v1436 = vpop.permute.xlu0 %1435
        %1437 = vrot.lane.b32.xlu0 %v1432, 127
        %v1438 = vpop.permute.xlu0 %1437
        %v1441 = vadd.f32 %v1427, %v1436
        %v1442 = vadd.f32 %v1428, %v1438
        %s1443 = sld [smem:[#allocation7 + $0x188]]
        %v1444 = vstv %s1443
        %v1445 = vmul.f32 %v1444, %v412
        %v1446 = vmul.f32 %v1444, %v413
        %1449 = vrot.lane.b32.xlu0 %v1445, 126
        %v1450 = vpop.permute.xlu0 %1449
        %1451 = vrot.lane.b32.xlu0 %v1446, 126
        %v1452 = vpop.permute.xlu0 %1451
        %v1455 = vadd.f32 %v1441, %v1450
        %v1456 = vadd.f32 %v1442, %v1452
        %s1457 = sld [smem:[#allocation2 + $0x189]]
        %v1458 = vstv %s1457
        %v1459 = vmul.f32 %v1458, %v415
        %v1460 = vmul.f32 %v1458, %v416
        %v1461 = vadd.f32 %v1421, %v1459
        %v1462 = vadd.f32 %v1422, %v1460
        %s1463 = sld [smem:[#allocation2 + $0x18a]]
        %v1464 = vstv %s1463
        %v1465 = vmul.f32 %v1464, %v415
        %v1466 = vmul.f32 %v1464, %v416
        %v1469 = vrot.slane %v1465, 1
        %v1470 = vrot.slane %v1466, 1
        %v1471 = vsel %vm429, %v1469, %v1470
        %v1474 = vadd.f32 %v1461, %v1471
        %v1475 = vadd.f32 %v1462, %v1470
        %s1476 = sld [smem:[#allocation2 + $0x18b]]
        %v1477 = vstv %s1476
        %v1478 = vmul.f32 %v1477, %v415
        %v1479 = vmul.f32 %v1477, %v416
        %v1482 = vrot.slane %v1478, 2
        %v1483 = vrot.slane %v1479, 2
        %v1484 = vsel %vm443, %v1482, %v1483
        %v1487 = vadd.f32 %v1474, %v1484
        %v1488 = vadd.f32 %v1475, %v1483
        %s1489 = sld [smem:[#allocation7 + $0x189]]
        %v1490 = vstv %s1489
        %v1491 = vmul.f32 %v1490, %v415
        %v1492 = vmul.f32 %v1490, %v416
        %v1493 = vadd.f32 %v1455, %v1491
        %v1494 = vadd.f32 %v1456, %v1492
        %s1495 = sld [smem:[#allocation7 + $0x18a]]
        %v1496 = vstv %s1495
        %v1497 = vmul.f32 %v1496, %v415
        %v1498 = vmul.f32 %v1496, %v416
        %1501 = vrot.lane.b32.xlu0 %v1497, 127
        %v1502 = vpop.permute.xlu0 %1501
        %1503 = vrot.lane.b32.xlu0 %v1498, 127
        %v1504 = vpop.permute.xlu0 %1503
        %v1507 = vadd.f32 %v1493, %v1502
        %v1508 = vadd.f32 %v1494, %v1504
        %s1509 = sld [smem:[#allocation7 + $0x18b]]
        %v1510 = vstv %s1509
        %v1511 = vmul.f32 %v1510, %v415
        %v1512 = vmul.f32 %v1510, %v416
        %1515 = vrot.lane.b32.xlu0 %v1511, 126
        %v1516 = vpop.permute.xlu0 %1515
        %1517 = vrot.lane.b32.xlu0 %v1512, 126
        %v1518 = vpop.permute.xlu0 %1517
        %v1521 = vadd.f32 %v1507, %v1516
        %v1522 = vadd.f32 %v1508, %v1518
        %s1523 = sld [smem:[#allocation5 + $0x3]]
        %v1524 = vstv %s1523
        %v1525 = vadd.f32 %v1487, %v1524
        %v1526 = vadd.f32 %v1488, %v1524
        %v1527 = vmax.f32 %v1525, 0.0
        %v1528 = vmax.f32 %v1526, 0.0
        %v1529 = vmin.f32 %v1527, 6.0
        %v1530 = vmin.f32 %v1528, 6.0
        %s1531 = sld [smem:[#allocation8 + $0x3]]
        %v1532 = vstv %s1531
        %v1533 = vadd.f32 %v1521, %v1532
        %v1534 = vadd.f32 %v1522, %v1532
        %v1535 = vmax.f32 %v1533, 0.0
        %v1536 = vmax.f32 %v1534, 0.0
        %v1537 = vmin.f32 %v1535, 6.0
        %v1538 = vmin.f32 %v1536, 6.0
        %vm1539 = vcmask 113664
        %v1541 = vsel %vm1539, %v977, 0
        %v1544 = vsel %vm1539, %v978, 0
        %v1547 = vsel %vm443, %v970, 0
        %1549 = vmatprep.subr.mxu0 0.0
        %1550 = vmatpush1.msra.mxu0 %v969
        %1551 = vmatprep.subr.mxu0 0.0
        %1552 = vmatpush1.msra.mxu0 %v1547
        %1553 = vmatprep.subr.mxu0 0.0
        %1554 = vmatpush1.msra.mxu0 0.0
        %1555 = vmatprep.subr.mxu0 0.0
        %1556 = vmatpush1.msra.mxu0 0.0
        %1557 = vmatprep.subr.mxu0 0.0
        %1558 = vmatpush1.msra.mxu0 0.0
        %1559 = vmatprep.subr.mxu0 0.0
        %1560 = vmatpush1.msra.mxu0 0.0
        %1561 = vmatprep.subr.mxu0 0.0
        %1562 = vmatpush1.msra.mxu0 0.0
        %1563 = vmatprep.subr.mxu0 0.0
        %1564 = vmatpush1.msra.mxu0 0.0
        %1565 = vmatprep.subr.mxu0 0.0
        %1566 = vmatpush1.msra.mxu0 0.0
        %1567 = vmatprep.subr.mxu0 0.0
        %1568 = vmatpush1.msra.mxu0 0.0
        %1569 = vmatprep.subr.mxu0 0.0
        %1570 = vmatpush1.msra.mxu0 0.0
        %1571 = vmatprep.subr.mxu0 0.0
        %1572 = vmatpush1.msra.mxu0 0.0
        %1573 = vmatprep.subr.mxu0 0.0
        %1574 = vmatpush1.msra.mxu0 0.0
        %1575 = vmatprep.subr.mxu0 0.0
        %1576 = vmatpush1.msra.mxu0 0.0
        %1577 = vmatprep.subr.mxu0 0.0
        %1578 = vmatpush1.msra.mxu0 0.0
        %1579 = vmatprep.subr.mxu0 0.0
        %1580 = vmatpush1.msra.mxu0 0.0
        %1581 = vmatprep.subr.mxu0 0.0
        %1582 = vmatpush1.msra.mxu0 0.0
        %1583 = vmatprep.subr.mxu0 0.0
        %1584 = vmatpush1.msra.mxu0 0.0
        %1585 = vmatprep.subr.mxu0 0.0
        %1586 = vmatpush1.msra.mxu0 0.0
        %1587 = vmatprep.subr.mxu0 0.0
        %1588 = vmatpush1.msra.mxu0 0.0
        %1589 = vmatprep.subr.mxu0 0.0
        %1590 = vmatpush1.msra.mxu0 0.0
        %1591 = vmatprep.subr.mxu0 0.0
        %1592 = vmatpush1.msra.mxu0 0.0
        %1593 = vmatprep.subr.mxu0 0.0
        %1594 = vmatpush1.msra.mxu0 0.0
        %1595 = vmatprep.subr.mxu0 0.0
        %1596 = vmatpush1.msra.mxu0 0.0
        %1597 = vmatprep.subr.mxu0 0.0
        %1598 = vmatpush1.msra.mxu0 0.0
        %1599 = vmatprep.subr.mxu0 0.0
        %1600 = vmatpush1.msra.mxu0 0.0
        %1601 = vmatprep.subr.mxu0 0.0
        %1602 = vmatpush1.msra.mxu0 0.0
        %1603 = vmatprep.subr.mxu0 0.0
        %1604 = vmatpush1.msra.mxu0 0.0
        %1605 = vmatprep.subr.mxu0 0.0
        %1606 = vmatpush1.msra.mxu0 0.0
        %1607 = vmatprep.subr.mxu0 0.0
        %1608 = vmatpush1.msra.mxu0 0.0
        %1609 = vmatprep.subr.mxu0 0.0
        %1610 = vmatpush1.msra.mxu0 0.0
        %1611 = vmatprep.subr.mxu0 0.0
        %1612 = vmatpush1.msra.mxu0 0.0
        %1613 = vmatprep.mubr.f32.mxu0 0.0
        %1614 = vmatmul.mubr.f32.gmra.mrb[0].mxu0 %v1541
        %v1615 = vpop.f32.mrb[0].mxu0
        %v1616 = vadd.f32 0.0, %v1615
        %v1617 = vpop.f32.mrb[0].mxu0
        %1618 = vmatprep.mubr.f32.mxu0 0.0
        %1619 = vmatmul.mubr.f32.gmra.mrb[0].mxu0 %v1544
        %v1620 = vpop.f32.mrb[0].mxu0
        %v1621 = vadd.f32 0.0, %v1620
        %v1622 = vpop.f32.mrb[0].mxu0
        %1623 = vdwg.mxu0
        %v1625 = vsel %vm1539, %v697, 0
        %v1628 = vsel %vm1539, %v698, 0
        %v1631 = vsel %vm443, %v690, 0
        %1633 = vmatprep.subr.mxu0 0.0
        %1634 = vmatpush1.msra.mxu0 %v689
        %1635 = vmatprep.subr.mxu0 0.0
        %1636 = vmatpush1.msra.mxu0 %v1631
        %1637 = vmatprep.subr.mxu0 0.0
        %1638 = vmatpush1.msra.mxu0 0.0
        %1639 = vmatprep.subr.mxu0 0.0
        %1640 = vmatpush1.msra.mxu0 0.0
        %1641 = vmatprep.subr.mxu0 0.0
        %1642 = vmatpush1.msra.mxu0 0.0
        %1643 = vmatprep.subr.mxu0 0.0
        %1644 = vmatpush1.msra.mxu0 0.0
        %1645 = vmatprep.subr.mxu0 0.0
        %1646 = vmatpush1.msra.mxu0 0.0
        %1647 = vmatprep.subr.mxu0 0.0
        %1648 = vmatpush1.msra.mxu0 0.0
        %1649 = vmatprep.subr.mxu0 0.0
        %1650 = vmatpush1.msra.mxu0 0.0
        %1651 = vmatprep.subr.mxu0 0.0
        %1652 = vmatpush1.msra.mxu0 0.0
        %1653 = vmatprep.subr.mxu0 0.0
        %1654 = vmatpush1.msra.mxu0 0.0
        %1655 = vmatprep.subr.mxu0 0.0
        %1656 = vmatpush1.msra.mxu0 0.0
        %1657 = vmatprep.subr.mxu0 0.0
        %1658 = vmatpush1.msra.mxu0 0.0
        %1659 = vmatprep.subr.mxu0 0.0
        %1660 = vmatpush1.msra.mxu0 0.0
        %1661 = vmatprep.subr.mxu0 0.0
        %1662 = vmatpush1.msra.mxu0 0.0
        %1663 = vmatprep.subr.mxu0 0.0
        %1664 = vmatpush1.msra.mxu0 0.0
        %1665 = vmatprep.subr.mxu0 0.0
        %1666 = vmatpush1.msra.mxu0 0.0
        %1667 = vmatprep.subr.mxu0 0.0
        %1668 = vmatpush1.msra.mxu0 0.0
        %1669 = vmatprep.subr.mxu0 0.0
        %1670 = vmatpush1.msra.mxu0 0.0
        %1671 = vmatprep.subr.mxu0 0.0
        %1672 = vmatpush1.msra.mxu0 0.0
        %1673 = vmatprep.subr.mxu0 0.0
        %1674 = vmatpush1.msra.mxu0 0.0
        %1675 = vmatprep.subr.mxu0 0.0
        %1676 = vmatpush1.msra.mxu0 0.0
        %1677 = vmatprep.subr.mxu0 0.0
        %1678 = vmatpush1.msra.mxu0 0.0
        %1679 = vmatprep.subr.mxu0 0.0
        %1680 = vmatpush1.msra.mxu0 0.0
        %1681 = vmatprep.subr.mxu0 0.0
        %1682 = vmatpush1.msra.mxu0 0.0
        %1683 = vmatprep.subr.mxu0 0.0
        %1684 = vmatpush1.msra.mxu0 0.0
        %1685 = vmatprep.subr.mxu0 0.0
        %1686 = vmatpush1.msra.mxu0 0.0
        %1687 = vmatprep.subr.mxu0 0.0
        %1688 = vmatpush1.msra.mxu0 0.0
        %1689 = vmatprep.subr.mxu0 0.0
        %1690 = vmatpush1.msra.mxu0 0.0
        %1691 = vmatprep.subr.mxu0 0.0
        %1692 = vmatpush1.msra.mxu0 0.0
        %1693 = vmatprep.subr.mxu0 0.0
        %1694 = vmatpush1.msra.mxu0 0.0
        %1695 = vmatprep.subr.mxu0 0.0
        %1696 = vmatpush1.msra.mxu0 0.0
        %1697 = vmatprep.mubr.f32.mxu0 0.0
        %1698 = vmatmul.mubr.f32.gmra.mrb[0].mxu0 %v1625
        %v1699 = vpop.f32.mrb[0].mxu0
        %v1700 = vadd.f32 %v1616, %v1699
        %v1701 = vpop.f32.mrb[0].mxu0
        %1702 = vmatprep.mubr.f32.mxu0 0.0
        %1703 = vmatmul.mubr.f32.gmra.mrb[0].mxu0 %v1628
        %v1704 = vpop.f32.mrb[0].mxu0
        %v1705 = vadd.f32 %v1621, %v1704
        %v1706 = vpop.f32.mrb[0].mxu0
        %1707 = vdwg.mxu0
        %v1709 = vsel %vm1539, %v1257, 0
        %v1712 = vsel %vm1539, %v1258, 0
        %v1715 = vsel %vm443, %v1250, 0
        %1717 = vmatprep.subr.mxu0 0.0
        %1718 = vmatpush1.msra.mxu0 %v1249
        %1719 = vmatprep.subr.mxu0 0.0
        %1720 = vmatpush1.msra.mxu0 %v1715
        %1721 = vmatprep.subr.mxu0 0.0
        %1722 = vmatpush1.msra.mxu0 0.0
        %1723 = vmatprep.subr.mxu0 0.0
        %1724 = vmatpush1.msra.mxu0 0.0
        %1725 = vmatprep.subr.mxu0 0.0
        %1726 = vmatpush1.msra.mxu0 0.0
        %1727 = vmatprep.subr.mxu0 0.0
        %1728 = vmatpush1.msra.mxu0 0.0
        %1729 = vmatprep.subr.mxu0 0.0
        %1730 = vmatpush1.msra.mxu0 0.0
        %1731 = vmatprep.subr.mxu0 0.0
        %1732 = vmatpush1.msra.mxu0 0.0
        %1733 = vmatprep.subr.mxu0 0.0
        %1734 = vmatpush1.msra.mxu0 0.0
        %1735 = vmatprep.subr.mxu0 0.0
        %1736 = vmatpush1.msra.mxu0 0.0
        %1737 = vmatprep.subr.mxu0 0.0
        %1738 = vmatpush1.msra.mxu0 0.0
        %1739 = vmatprep.subr.mxu0 0.0
        %1740 = vmatpush1.msra.mxu0 0.0
        %1741 = vmatprep.subr.mxu0 0.0
        %1742 = vmatpush1.msra.mxu0 0.0
        %1743 = vmatprep.subr.mxu0 0.0
        %1744 = vmatpush1.msra.mxu0 0.0
        %1745 = vmatprep.subr.mxu0 0.0
        %1746 = vmatpush1.msra.mxu0 0.0
        %1747 = vmatprep.subr.mxu0 0.0
        %1748 = vmatpush1.msra.mxu0 0.0
        %1749 = vmatprep.subr.mxu0 0.0
        %1750 = vmatpush1.msra.mxu0 0.0
        %1751 = vmatprep.subr.mxu0 0.0
        %1752 = vmatpush1.msra.mxu0 0.0
        %1753 = vmatprep.subr.mxu0 0.0
        %1754 = vmatpush1.msra.mxu0 0.0
        %1755 = vmatprep.subr.mxu0 0.0
        %1756 = vmatpush1.msra.mxu0 0.0
        %1757 = vmatprep.subr.mxu0 0.0
        %1758 = vmatpush1.msra.mxu0 0.0
        %1759 = vmatprep.subr.mxu0 0.0
        %1760 = vmatpush1.msra.mxu0 0.0
        %1761 = vmatprep.subr.mxu0 0.0
        %1762 = vmatpush1.msra.mxu0 0.0
        %1763 = vmatprep.subr.mxu0 0.0
        %1764 = vmatpush1.msra.mxu0 0.0
        %1765 = vmatprep.subr.mxu0 0.0
        %1766 = vmatpush1.msra.mxu0 0.0
        %1767 = vmatprep.subr.mxu0 0.0
        %1768 = vmatpush1.msra.mxu0 0.0
        %1769 = vmatprep.subr.mxu0 0.0
        %1770 = vmatpush1.msra.mxu0 0.0
        %1771 = vmatprep.subr.mxu0 0.0
        %1772 = vmatpush1.msra.mxu0 0.0
        %1773 = vmatprep.subr.mxu0 0.0
        %1774 = vmatpush1.msra.mxu0 0.0
        %1775 = vmatprep.subr.mxu0 0.0
        %1776 = vmatpush1.msra.mxu0 0.0
        %1777 = vmatprep.subr.mxu0 0.0
        %1778 = vmatpush1.msra.mxu0 0.0
        %1779 = vmatprep.subr.mxu0 0.0
        %1780 = vmatpush1.msra.mxu0 0.0
        %1781 = vmatprep.mubr.f32.mxu0 0.0
        %1782 = vmatmul.mubr.f32.gmra.mrb[0].mxu0 %v1709
        %v1783 = vpop.f32.mrb[0].mxu0
        %v1784 = vadd.f32 0.0, %v1783
        %v1785 = vpop.f32.mrb[0].mxu0
        %1786 = vmatprep.mubr.f32.mxu0 0.0
        %1787 = vmatmul.mubr.f32.gmra.mrb[0].mxu0 %v1712
        %v1788 = vpop.f32.mrb[0].mxu0
        %v1789 = vadd.f32 0.0, %v1788
        %v1790 = vpop.f32.mrb[0].mxu0
        %1791 = vdwg.mxu0
        %v1792 = vadd.f32 %v1700, %v1784
        %v1793 = vadd.f32 %v1705, %v1789
        %v1795 = vsel %vm1539, %v1537, 0
        %v1798 = vsel %vm1539, %v1538, 0
        %v1801 = vsel %vm443, %v1530, 0
        %1803 = vmatprep.subr.mxu0 0.0
        %1804 = vmatpush1.msra.mxu0 %v1529
        %1805 = vmatprep.subr.mxu0 0.0
        %1806 = vmatpush1.msra.mxu0 %v1801
        %1807 = vmatprep.subr.mxu0 0.0
        %1808 = vmatpush1.msra.mxu0 0.0
        %1809 = vmatprep.subr.mxu0 0.0
        %1810 = vmatpush1.msra.mxu0 0.0
        %1811 = vmatprep.subr.mxu0 0.0
        %1812 = vmatpush1.msra.mxu0 0.0
        %1813 = vmatprep.subr.mxu0 0.0
        %1814 = vmatpush1.msra.mxu0 0.0
        %1815 = vmatprep.subr.mxu0 0.0
        %1816 = vmatpush1.msra.mxu0 0.0
        %1817 = vmatprep.subr.mxu0 0.0
        %1818 = vmatpush1.msra.mxu0 0.0
        %1819 = vmatprep.subr.mxu0 0.0
        %1820 = vmatpush1.msra.mxu0 0.0
        %1821 = vmatprep.subr.mxu0 0.0
        %1822 = vmatpush1.msra.mxu0 0.0
        %1823 = vmatprep.subr.mxu0 0.0
        %1824 = vmatpush1.msra.mxu0 0.0
        %1825 = vmatprep.subr.mxu0 0.0
        %1826 = vmatpush1.msra.mxu0 0.0
        %1827 = vmatprep.subr.mxu0 0.0
        %1828 = vmatpush1.msra.mxu0 0.0
        %1829 = vmatprep.subr.mxu0 0.0
        %1830 = vmatpush1.msra.mxu0 0.0
        %1831 = vmatprep.subr.mxu0 0.0
        %1832 = vmatpush1.msra.mxu0 0.0
        %1833 = vmatprep.subr.mxu0 0.0
        %1834 = vmatpush1.msra.mxu0 0.0
        %1835 = vmatprep.subr.mxu0 0.0
        %1836 = vmatpush1.msra.mxu0 0.0
        %1837 = vmatprep.subr.mxu0 0.0
        %1838 = vmatpush1.msra.mxu0 0.0
        %1839 = vmatprep.subr.mxu0 0.0
        %1840 = vmatpush1.msra.mxu0 0.0
        %1841 = vmatprep.subr.mxu0 0.0
        %1842 = vmatpush1.msra.mxu0 0.0
        %1843 = vmatprep.subr.mxu0 0.0
        %1844 = vmatpush1.msra.mxu0 0.0
        %1845 = vmatprep.subr.mxu0 0.0
        %1846 = vmatpush1.msra.mxu0 0.0
        %1847 = vmatprep.subr.mxu0 0.0
        %1848 = vmatpush1.msra.mxu0 0.0
        %1849 = vmatprep.subr.mxu0 0.0
        %1850 = vmatpush1.msra.mxu0 0.0
        %1851 = vmatprep.subr.mxu0 0.0
        %1852 = vmatpush1.msra.mxu0 0.0
        %1853 = vmatprep.subr.mxu0 0.0
        %1854 = vmatpush1.msra.mxu0 0.0
        %1855 = vmatprep.subr.mxu0 0.0
        %1856 = vmatpush1.msra.mxu0 0.0
        %1857 = vmatprep.subr.mxu0 0.0
        %1858 = vmatpush1.msra.mxu0 0.0
        %1859 = vmatprep.subr.mxu0 0.0
        %1860 = vmatpush1.msra.mxu0 0.0
        %1861 = vmatprep.subr.mxu0 0.0
        %1862 = vmatpush1.msra.mxu0 0.0
        %1863 = vmatprep.subr.mxu0 0.0
        %1864 = vmatpush1.msra.mxu0 0.0
        %1865 = vmatprep.subr.mxu0 0.0
        %1866 = vmatpush1.msra.mxu0 0.0
        %1867 = vmatprep.mubr.f32.mxu0 0.0
        %1868 = vmatmul.mubr.f32.gmra.mrb[0].mxu0 %v1795
        %v1869 = vpop.f32.mrb[0].mxu0
        %v1870 = vadd.f32 0.0, %v1869
        %v1871 = vpop.f32.mrb[0].mxu0
        %1872 = vmatprep.mubr.f32.mxu0 0.0
        %1873 = vmatmul.mubr.f32.gmra.mrb[0].mxu0 %v1798
        %v1874 = vpop.f32.mrb[0].mxu0
        %v1875 = vadd.f32 0.0, %v1874
        %v1876 = vpop.f32.mrb[0].mxu0
        %1877 = vdwg.mxu0
        %v1878 = vadd.f32 %v1792, %v1870
        %v1879 = vadd.f32 %v1793, %v1875
        %v1880 = vmax.f32 %v1878, -30.0
        %v1881 = vmax.f32 %v1879, -30.0
        %v1882 = vmin.f32 %v1880, 30.0
        %v1883 = vmin.f32 %v1881, 30.0
        %v1884 = vsub.f32 0.0, %v1882
        %v1885 = vsub.f32 0.0, %v1883
        %v1886 = vmul.f32 %v1884, 1.442695
        %v1887 = vpow.pop %v1886
        %v1888 = vmul.f32 %v1885, 1.442695
        %v1889 = vpow.pop %v1888
        %v1890 = vadd.f32 %v1887, 1.0
        %v1891 = vadd.f32 %v1889, 1.0
        %v1892 = vrcp.pop %v1890
        %v1893 = vrcp.pop %v1891
        %vm1894 = vcmask 130048
        %1895 = vst.msk [vmem:[%s393] sm:$0xff] %vm1894, %v1892
        %1896 = vst.msk [vmem:[%s393 + $0x8] sm:$0xff] %vm1894, %v1893
        %v1897 = vld [vmem:[%s1] sm:$0xff]
        %v1898 = vld [vmem:[%s1 + $0x8] sm:$0xff]
        %v1899 = vld [vmem:[%s2] sm:$0xff]
        %v1900 = vld [vmem:[%s2 + $0x8] sm:$0x3f]
        %v1902 = vsel %vm1539, %v1897, 0
        %v1905 = vsel %vm1539, %v1898, 0
        %1907 = vmatprep.subr.mxu0 0.0
        %1908 = vmatpush1.msra.mxu0 %v689
        %1909 = vmatprep.subr.mxu0 0.0
        %1910 = vmatpush1.msra.mxu0 %v1631
        %1911 = vmatprep.subr.mxu0 0.0
        %1912 = vmatpush1.msra.mxu0 0.0
        %1913 = vmatprep.subr.mxu0 0.0
        %1914 = vmatpush1.msra.mxu0 0.0
        %1915 = vmatprep.subr.mxu0 0.0
        %1916 = vmatpush1.msra.mxu0 0.0
        %1917 = vmatprep.subr.mxu0 0.0
        %1918 = vmatpush1.msra.mxu0 0.0
        %1919 = vmatprep.subr.mxu0 0.0
        %1920 = vmatpush1.msra.mxu0 0.0
        %1921 = vmatprep.subr.mxu0 0.0
        %1922 = vmatpush1.msra.mxu0 0.0
        %1923 = vmatprep.subr.mxu0 0.0
        %1924 = vmatpush1.msra.mxu0 0.0
        %1925 = vmatprep.subr.mxu0 0.0
        %1926 = vmatpush1.msra.mxu0 0.0
        %1927 = vmatprep.subr.mxu0 0.0
        %1928 = vmatpush1.msra.mxu0 0.0
        %1929 = vmatprep.subr.mxu0 0.0
        %1930 = vmatpush1.msra.mxu0 0.0
        %1931 = vmatprep.subr.mxu0 0.0
        %1932 = vmatpush1.msra.mxu0 0.0
        %1933 = vmatprep.subr.mxu0 0.0
        %1934 = vmatpush1.msra.mxu0 0.0
        %1935 = vmatprep.subr.mxu0 0.0
        %1936 = vmatpush1.msra.mxu0 0.0
        %1937 = vmatprep.subr.mxu0 0.0
        %1938 = vmatpush1.msra.mxu0 0.0
        %1939 = vmatprep.subr.mxu0 0.0
        %1940 = vmatpush1.msra.mxu0 0.0
        %1941 = vmatprep.subr.mxu0 0.0
        %1942 = vmatpush1.msra.mxu0 0.0
        %1943 = vmatprep.subr.mxu0 0.0
        %1944 = vmatpush1.msra.mxu0 0.0
        %1945 = vmatprep.subr.mxu0 0.0
        %1946 = vmatpush1.msra.mxu0 0.0
        %1947 = vmatprep.subr.mxu0 0.0
        %1948 = vmatpush1.msra.mxu0 0.0
        %1949 = vmatprep.subr.mxu0 0.0
        %1950 = vmatpush1.msra.mxu0 0.0
        %1951 = vmatprep.subr.mxu0 0.0
        %1952 = vmatpush1.msra.mxu0 0.0
        %1953 = vmatprep.subr.mxu0 0.0
        %1954 = vmatpush1.msra.mxu0 0.0
        %1955 = vmatprep.subr.mxu0 0.0
        %1956 = vmatpush1.msra.mxu0 0.0
        %1957 = vmatprep.subr.mxu0 0.0
        %1958 = vmatpush1.msra.mxu0 0.0
        %1959 = vmatprep.subr.mxu0 0.0
        %1960 = vmatpush1.msra.mxu0 0.0
        %1961 = vmatprep.subr.mxu0 0.0
        %1962 = vmatpush1.msra.mxu0 0.0
        %1963 = vmatprep.subr.mxu0 0.0
        %1964 = vmatpush1.msra.mxu0 0.0
        %1965 = vmatprep.subr.mxu0 0.0
        %1966 = vmatpush1.msra.mxu0 0.0
        %1967 = vmatprep.subr.mxu0 0.0
        %1968 = vmatpush1.msra.mxu0 0.0
        %1969 = vmatprep.subr.mxu0 0.0
        %1970 = vmatpush1.msra.mxu0 0.0
        %1971 = vmatprep.mubr.f32.mxu0 0.0
        %1972 = vmatmul.mubr.f32.gmra.mrb[0].mxu0 %v1902
        %v1973 = vpop.f32.mrb[0].mxu0
        %v1974 = vadd.f32 0.0, %v1973
        %v1975 = vpop.f32.mrb[0].mxu0
        %1976 = vmatprep.mubr.f32.mxu0 0.0
        %1977 = vmatmul.mubr.f32.gmra.mrb[0].mxu0 %v1905
        %v1978 = vpop.f32.mrb[0].mxu0
        %v1979 = vadd.f32 0.0, %v1978
        %v1980 = vpop.f32.mrb[0].mxu0
        %1981 = vdwg.mxu0
        %v1983 = vsel %vm443, %v1900, 0
        %1985 = vmatprep.subr.mxu0 0.0
        %1986 = vmatpush1.msra.mxu0 %v1899
        %1987 = vmatprep.subr.mxu0 0.0
        %1988 = vmatpush1.msra.mxu0 %v1983
        %1989 = vmatprep.subr.mxu0 0.0
        %1990 = vmatpush1.msra.mxu0 0.0
        %1991 = vmatprep.subr.mxu0 0.0
        %1992 = vmatpush1.msra.mxu0 0.0
        %1993 = vmatprep.subr.mxu0 0.0
        %1994 = vmatpush1.msra.mxu0 0.0
        %1995 = vmatprep.subr.mxu0 0.0
        %1996 = vmatpush1.msra.mxu0 0.0
        %1997 = vmatprep.subr.mxu0 0.0
        %1998 = vmatpush1.msra.mxu0 0.0
        %1999 = vmatprep.subr.mxu0 0.0
        %2000 = vmatpush1.msra.mxu0 0.0
        %2001 = vmatprep.subr.mxu0 0.0
        %2002 = vmatpush1.msra.mxu0 0.0
        %2003 = vmatprep.subr.mxu0 0.0
        %2004 = vmatpush1.msra.mxu0 0.0
        %2005 = vmatprep.subr.mxu0 0.0
        %2006 = vmatpush1.msra.mxu0 0.0
        %2007 = vmatprep.subr.mxu0 0.0
        %2008 = vmatpush1.msra.mxu0 0.0
        %2009 = vmatprep.subr.mxu0 0.0
        %2010 = vmatpush1.msra.mxu0 0.0
        %2011 = vmatprep.subr.mxu0 0.0
        %2012 = vmatpush1.msra.mxu0 0.0
        %2013 = vmatprep.subr.mxu0 0.0
        %2014 = vmatpush1.msra.mxu0 0.0
        %2015 = vmatprep.subr.mxu0 0.0
        %2016 = vmatpush1.msra.mxu0 0.0
        %2017 = vmatprep.subr.mxu0 0.0
        %2018 = vmatpush1.msra.mxu0 0.0
        %2019 = vmatprep.subr.mxu0 0.0
        %2020 = vmatpush1.msra.mxu0 0.0
        %2021 = vmatprep.subr.mxu0 0.0
        %2022 = vmatpush1.msra.mxu0 0.0
        %2023 = vmatprep.subr.mxu0 0.0
        %2024 = vmatpush1.msra.mxu0 0.0
        %2025 = vmatprep.subr.mxu0 0.0
        %2026 = vmatpush1.msra.mxu0 0.0
        %2027 = vmatprep.subr.mxu0 0.0
        %2028 = vmatpush1.msra.mxu0 0.0
        %2029 = vmatprep.subr.mxu0 0.0
        %2030 = vmatpush1.msra.mxu0 0.0
        %2031 = vmatprep.subr.mxu0 0.0
        %2032 = vmatpush1.msra.mxu0 0.0
        %2033 = vmatprep.subr.mxu0 0.0
        %2034 = vmatpush1.msra.mxu0 0.0
        %2035 = vmatprep.subr.mxu0 0.0
        %2036 = vmatpush1.msra.mxu0 0.0
        %2037 = vmatprep.subr.mxu0 0.0
        %2038 = vmatpush1.msra.mxu0 0.0
        %2039 = vmatprep.subr.mxu0 0.0
        %2040 = vmatpush1.msra.mxu0 0.0
        %2041 = vmatprep.subr.mxu0 0.0
        %2042 = vmatpush1.msra.mxu0 0.0
        %2043 = vmatprep.subr.mxu0 0.0
        %2044 = vmatpush1.msra.mxu0 0.0
        %2045 = vmatprep.subr.mxu0 0.0
        %2046 = vmatpush1.msra.mxu0 0.0
        %2047 = vmatprep.subr.mxu0 0.0
        %2048 = vmatpush1.msra.mxu0 0.0
        %2049 = vmatprep.mubr.f32.mxu0 0.0
        %2050 = vmatmul.mubr.f32.gmra.mrb[0].mxu0 %v1625
        %v2051 = vpop.f32.mrb[0].mxu0
        %v2052 = vadd.f32 %v1974, %v2051
        %v2053 = vpop.f32.mrb[0].mxu0
        %2054 = vmatprep.mubr.f32.mxu0 0.0
        %2055 = vmatmul.mubr.f32.gmra.mrb[0].mxu0 %v1628
        %v2056 = vpop.f32.mrb[0].mxu0
        %v2057 = vadd.f32 %v1979, %v2056
        %v2058 = vpop.f32.mrb[0].mxu0
        %2059 = vdwg.mxu0
        %v2060 = vmax.f32 %v2052, 0.0
        %v2061 = vmax.f32 %v2057, 0.0
        %2062 = vmatprep.subr.mxu0 0.0
        %2063 = vmatpush1.msra.mxu0 %v969
        %2064 = vmatprep.subr.mxu0 0.0
        %2065 = vmatpush1.msra.mxu0 %v1547
        %2066 = vmatprep.subr.mxu0 0.0
        %2067 = vmatpush1.msra.mxu0 0.0
        %2068 = vmatprep.subr.mxu0 0.0
        %2069 = vmatpush1.msra.mxu0 0.0
        %2070 = vmatprep.subr.mxu0 0.0
        %2071 = vmatpush1.msra.mxu0 0.0
        %2072 = vmatprep.subr.mxu0 0.0
        %2073 = vmatpush1.msra.mxu0 0.0
        %2074 = vmatprep.subr.mxu0 0.0
        %2075 = vmatpush1.msra.mxu0 0.0
        %2076 = vmatprep.subr.mxu0 0.0
        %2077 = vmatpush1.msra.mxu0 0.0
        %2078 = vmatprep.subr.mxu0 0.0
        %2079 = vmatpush1.msra.mxu0 0.0
        %2080 = vmatprep.subr.mxu0 0.0
        %2081 = vmatpush1.msra.mxu0 0.0
        %2082 = vmatprep.subr.mxu0 0.0
        %2083 = vmatpush1.msra.mxu0 0.0
        %2084 = vmatprep.subr.mxu0 0.0
        %2085 = vmatpush1.msra.mxu0 0.0
        %2086 = vmatprep.subr.mxu0 0.0
        %2087 = vmatpush1.msra.mxu0 0.0
        %2088 = vmatprep.subr.mxu0 0.0
        %2089 = vmatpush1.msra.mxu0 0.0
        %2090 = vmatprep.subr.mxu0 0.0
        %2091 = vmatpush1.msra.mxu0 0.0
        %2092 = vmatprep.subr.mxu0 0.0
        %2093 = vmatpush1.msra.mxu0 0.0
        %2094 = vmatprep.subr.mxu0 0.0
        %2095 = vmatpush1.msra.mxu0 0.0
        %2096 = vmatprep.subr.mxu0 0.0
        %2097 = vmatpush1.msra.mxu0 0.0
        %2098 = vmatprep.subr.mxu0 0.0
        %2099 = vmatpush1.msra.mxu0 0.0
        %2100 = vmatprep.subr.mxu0 0.0
        %2101 = vmatpush1.msra.mxu0 0.0
        %2102 = vmatprep.subr.mxu0 0.0
        %2103 = vmatpush1.msra.mxu0 0.0
        %2104 = vmatprep.subr.mxu0 0.0
        %2105 = vmatpush1.msra.mxu0 0.0
        %2106 = vmatprep.subr.mxu0 0.0
        %2107 = vmatpush1.msra.mxu0 0.0
        %2108 = vmatprep.subr.mxu0 0.0
        %2109 = vmatpush1.msra.mxu0 0.0
        %2110 = vmatprep.subr.mxu0 0.0
        %2111 = vmatpush1.msra.mxu0 0.0
        %2112 = vmatprep.subr.mxu0 0.0
        %2113 = vmatpush1.msra.mxu0 0.0
        %2114 = vmatprep.subr.mxu0 0.0
        %2115 = vmatpush1.msra.mxu0 0.0
        %2116 = vmatprep.subr.mxu0 0.0
        %2117 = vmatpush1.msra.mxu0 0.0
        %2118 = vmatprep.subr.mxu0 0.0
        %2119 = vmatpush1.msra.mxu0 0.0
        %2120 = vmatprep.subr.mxu0 0.0
        %2121 = vmatpush1.msra.mxu0 0.0
        %2122 = vmatprep.subr.mxu0 0.0
        %2123 = vmatpush1.msra.mxu0 0.0
        %2124 = vmatprep.subr.mxu0 0.0
        %2125 = vmatpush1.msra.mxu0 0.0
        %2126 = vmatprep.mubr.f32.mxu0 0.0
        %2127 = vmatmul.mubr.f32.gmra.mrb[0].mxu0 %v1902
        %v2128 = vpop.f32.mrb[0].mxu0
        %v2129 = vadd.f32 0.0, %v2128
        %v2130 = vpop.f32.mrb[0].mxu0
        %2131 = vmatprep.mubr.f32.mxu0 0.0
        %2132 = vmatmul.mubr.f32.gmra.mrb[0].mxu0 %v1905
        %v2133 = vpop.f32.mrb[0].mxu0
        %v2134 = vadd.f32 0.0, %v2133
        %v2135 = vpop.f32.mrb[0].mxu0
        %2136 = vdwg.mxu0
        %2137 = vmatprep.subr.mxu0 0.0
        %2138 = vmatpush1.msra.mxu0 %v1899
        %2139 = vmatprep.subr.mxu0 0.0
        %2140 = vmatpush1.msra.mxu0 %v1983
        %2141 = vmatprep.subr.mxu0 0.0
        %2142 = vmatpush1.msra.mxu0 0.0
        %2143 = vmatprep.subr.mxu0 0.0
        %2144 = vmatpush1.msra.mxu0 0.0
        %2145 = vmatprep.subr.mxu0 0.0
        %2146 = vmatpush1.msra.mxu0 0.0
        %2147 = vmatprep.subr.mxu0 0.0
        %2148 = vmatpush1.msra.mxu0 0.0
        %2149 = vmatprep.subr.mxu0 0.0
        %2150 = vmatpush1.msra.mxu0 0.0
        %2151 = vmatprep.subr.mxu0 0.0
        %2152 = vmatpush1.msra.mxu0 0.0
        %2153 = vmatprep.subr.mxu0 0.0
        %2154 = vmatpush1.msra.mxu0 0.0
        %2155 = vmatprep.subr.mxu0 0.0
        %2156 = vmatpush1.msra.mxu0 0.0
        %2157 = vmatprep.subr.mxu0 0.0
        %2158 = vmatpush1.msra.mxu0 0.0
        %2159 = vmatprep.subr.mxu0 0.0
        %2160 = vmatpush1.msra.mxu0 0.0
        %2161 = vmatprep.subr.mxu0 0.0
        %2162 = vmatpush1.msra.mxu0 0.0
        %2163 = vmatprep.subr.mxu0 0.0
        %2164 = vmatpush1.msra.mxu0 0.0
        %2165 = vmatprep.subr.mxu0 0.0
        %2166 = vmatpush1.msra.mxu0 0.0
        %2167 = vmatprep.subr.mxu0 0.0
        %2168 = vmatpush1.msra.mxu0 0.0
        %2169 = vmatprep.subr.mxu0 0.0
        %2170 = vmatpush1.msra.mxu0 0.0
        %2171 = vmatprep.subr.mxu0 0.0
        %2172 = vmatpush1.msra.mxu0 0.0
        %2173 = vmatprep.subr.mxu0 0.0
        %2174 = vmatpush1.msra.mxu0 0.0
        %2175 = vmatprep.subr.mxu0 0.0
        %2176 = vmatpush1.msra.mxu0 0.0
        %2177 = vmatprep.subr.mxu0 0.0
        %2178 = vmatpush1.msra.mxu0 0.0
        %2179 = vmatprep.subr.mxu0 0.0
        %2180 = vmatpush1.msra.mxu0 0.0
        %2181 = vmatprep.subr.mxu0 0.0
        %2182 = vmatpush1.msra.mxu0 0.0
        %2183 = vmatprep.subr.mxu0 0.0
        %2184 = vmatpush1.msra.mxu0 0.0
        %2185 = vmatprep.subr.mxu0 0.0
        %2186 = vmatpush1.msra.mxu0 0.0
        %2187 = vmatprep.subr.mxu0 0.0
        %2188 = vmatpush1.msra.mxu0 0.0
        %2189 = vmatprep.subr.mxu0 0.0
        %2190 = vmatpush1.msra.mxu0 0.0
        %2191 = vmatprep.subr.mxu0 0.0
        %2192 = vmatpush1.msra.mxu0 0.0
        %2193 = vmatprep.subr.mxu0 0.0
        %2194 = vmatpush1.msra.mxu0 0.0
        %2195 = vmatprep.subr.mxu0 0.0
        %2196 = vmatpush1.msra.mxu0 0.0
        %2197 = vmatprep.subr.mxu0 0.0
        %2198 = vmatpush1.msra.mxu0 0.0
        %2199 = vmatprep.subr.mxu0 0.0
        %2200 = vmatpush1.msra.mxu0 0.0
        %2201 = vmatprep.mubr.f32.mxu0 0.0
        %2202 = vmatmul.mubr.f32.gmra.mrb[0].mxu0 %v1541
        %v2203 = vpop.f32.mrb[0].mxu0
        %v2204 = vadd.f32 %v2129, %v2203
        %v2205 = vpop.f32.mrb[0].mxu0
        %2206 = vmatprep.mubr.f32.mxu0 0.0
        %2207 = vmatmul.mubr.f32.gmra.mrb[0].mxu0 %v1544
        %v2208 = vpop.f32.mrb[0].mxu0
        %v2209 = vadd.f32 %v2134, %v2208
        %v2210 = vpop.f32.mrb[0].mxu0
        %2211 = vdwg.mxu0
        %v2212 = vmax.f32 %v2204, 0.0
        %v2213 = vmax.f32 %v2209, 0.0
        %2214 = vmatprep.subr.mxu0 0.0
        %2215 = vmatpush1.msra.mxu0 %v1249
        %2216 = vmatprep.subr.mxu0 0.0
        %2217 = vmatpush1.msra.mxu0 %v1715
        %2218 = vmatprep.subr.mxu0 0.0
        %2219 = vmatpush1.msra.mxu0 0.0
        %2220 = vmatprep.subr.mxu0 0.0
        %2221 = vmatpush1.msra.mxu0 0.0
        %2222 = vmatprep.subr.mxu0 0.0
        %2223 = vmatpush1.msra.mxu0 0.0
        %2224 = vmatprep.subr.mxu0 0.0
        %2225 = vmatpush1.msra.mxu0 0.0
        %2226 = vmatprep.subr.mxu0 0.0
        %2227 = vmatpush1.msra.mxu0 0.0
        %2228 = vmatprep.subr.mxu0 0.0
        %2229 = vmatpush1.msra.mxu0 0.0
        %2230 = vmatprep.subr.mxu0 0.0
        %2231 = vmatpush1.msra.mxu0 0.0
        %2232 = vmatprep.subr.mxu0 0.0
        %2233 = vmatpush1.msra.mxu0 0.0
        %2234 = vmatprep.subr.mxu0 0.0
        %2235 = vmatpush1.msra.mxu0 0.0
        %2236 = vmatprep.subr.mxu0 0.0
        %2237 = vmatpush1.msra.mxu0 0.0
        %2238 = vmatprep.subr.mxu0 0.0
        %2239 = vmatpush1.msra.mxu0 0.0
        %2240 = vmatprep.subr.mxu0 0.0
        %2241 = vmatpush1.msra.mxu0 0.0
        %2242 = vmatprep.subr.mxu0 0.0
        %2243 = vmatpush1.msra.mxu0 0.0
        %2244 = vmatprep.subr.mxu0 0.0
        %2245 = vmatpush1.msra.mxu0 0.0
        %2246 = vmatprep.subr.mxu0 0.0
        %2247 = vmatpush1.msra.mxu0 0.0
        %2248 = vmatprep.subr.mxu0 0.0
        %2249 = vmatpush1.msra.mxu0 0.0
        %2250 = vmatprep.subr.mxu0 0.0
        %2251 = vmatpush1.msra.mxu0 0.0
        %2252 = vmatprep.subr.mxu0 0.0
        %2253 = vmatpush1.msra.mxu0 0.0
        %2254 = vmatprep.subr.mxu0 0.0
        %2255 = vmatpush1.msra.mxu0 0.0
        %2256 = vmatprep.subr.mxu0 0.0
        %2257 = vmatpush1.msra.mxu0 0.0
        %2258 = vmatprep.subr.mxu0 0.0
        %2259 = vmatpush1.msra.mxu0 0.0
        %2260 = vmatprep.subr.mxu0 0.0
        %2261 = vmatpush1.msra.mxu0 0.0
        %2262 = vmatprep.subr.mxu0 0.0
        %2263 = vmatpush1.msra.mxu0 0.0
        %2264 = vmatprep.subr.mxu0 0.0
        %2265 = vmatpush1.msra.mxu0 0.0
        %2266 = vmatprep.subr.mxu0 0.0
        %2267 = vmatpush1.msra.mxu0 0.0
        %2268 = vmatprep.subr.mxu0 0.0
        %2269 = vmatpush1.msra.mxu0 0.0
        %2270 = vmatprep.subr.mxu0 0.0
        %2271 = vmatpush1.msra.mxu0 0.0
        %2272 = vmatprep.subr.mxu0 0.0
        %2273 = vmatpush1.msra.mxu0 0.0
        %2274 = vmatprep.subr.mxu0 0.0
        %2275 = vmatpush1.msra.mxu0 0.0
        %2276 = vmatprep.subr.mxu0 0.0
        %2277 = vmatpush1.msra.mxu0 0.0
        %2278 = vmatprep.mubr.f32.mxu0 0.0
        %2279 = vmatmul.mubr.f32.gmra.mrb[0].mxu0 %v1902
        %v2280 = vpop.f32.mrb[0].mxu0
        %v2281 = vadd.f32 0.0, %v2280
        %v2282 = vpop.f32.mrb[0].mxu0
        %2283 = vmatprep.mubr.f32.mxu0 0.0
        %2284 = vmatmul.mubr.f32.gmra.mrb[0].mxu0 %v1905
        %v2285 = vpop.f32.mrb[0].mxu0
        %v2286 = vadd.f32 0.0, %v2285
        %v2287 = vpop.f32.mrb[0].mxu0
        %2288 = vdwg.mxu0
        %2289 = vmatprep.subr.mxu0 0.0
        %2290 = vmatpush1.msra.mxu0 %v1899
        %2291 = vmatprep.subr.mxu0 0.0
        %2292 = vmatpush1.msra.mxu0 %v1983
        %2293 = vmatprep.subr.mxu0 0.0
        %2294 = vmatpush1.msra.mxu0 0.0
        %2295 = vmatprep.subr.mxu0 0.0
        %2296 = vmatpush1.msra.mxu0 0.0
        %2297 = vmatprep.subr.mxu0 0.0
        %2298 = vmatpush1.msra.mxu0 0.0
        %2299 = vmatprep.subr.mxu0 0.0
        %2300 = vmatpush1.msra.mxu0 0.0
        %2301 = vmatprep.subr.mxu0 0.0
        %2302 = vmatpush1.msra.mxu0 0.0
        %2303 = vmatprep.subr.mxu0 0.0
        %2304 = vmatpush1.msra.mxu0 0.0
        %2305 = vmatprep.subr.mxu0 0.0
        %2306 = vmatpush1.msra.mxu0 0.0
        %2307 = vmatprep.subr.mxu0 0.0
        %2308 = vmatpush1.msra.mxu0 0.0
        %2309 = vmatprep.subr.mxu0 0.0
        %2310 = vmatpush1.msra.mxu0 0.0
        %2311 = vmatprep.subr.mxu0 0.0
        %2312 = vmatpush1.msra.mxu0 0.0
        %2313 = vmatprep.subr.mxu0 0.0
        %2314 = vmatpush1.msra.mxu0 0.0
        %2315 = vmatprep.subr.mxu0 0.0
        %2316 = vmatpush1.msra.mxu0 0.0
        %2317 = vmatprep.subr.mxu0 0.0
        %2318 = vmatpush1.msra.mxu0 0.0
        %2319 = vmatprep.subr.mxu0 0.0
        %2320 = vmatpush1.msra.mxu0 0.0
        %2321 = vmatprep.subr.mxu0 0.0
        %2322 = vmatpush1.msra.mxu0 0.0
        %2323 = vmatprep.subr.mxu0 0.0
        %2324 = vmatpush1.msra.mxu0 0.0
        %2325 = vmatprep.subr.mxu0 0.0
        %2326 = vmatpush1.msra.mxu0 0.0
        %2327 = vmatprep.subr.mxu0 0.0
        %2328 = vmatpush1.msra.mxu0 0.0
        %2329 = vmatprep.subr.mxu0 0.0
        %2330 = vmatpush1.msra.mxu0 0.0
        %2331 = vmatprep.subr.mxu0 0.0
        %2332 = vmatpush1.msra.mxu0 0.0
        %2333 = vmatprep.subr.mxu0 0.0
        %2334 = vmatpush1.msra.mxu0 0.0
        %2335 = vmatprep.subr.mxu0 0.0
        %2336 = vmatpush1.msra.mxu0 0.0
        %2337 = vmatprep.subr.mxu0 0.0
        %2338 = vmatpush1.msra.mxu0 0.0
        %2339 = vmatprep.subr.mxu0 0.0
        %2340 = vmatpush1.msra.mxu0 0.0
        %2341 = vmatprep.subr.mxu0 0.0
        %2342 = vmatpush1.msra.mxu0 0.0
        %2343 = vmatprep.subr.mxu0 0.0
        %2344 = vmatpush1.msra.mxu0 0.0
        %2345 = vmatprep.subr.mxu0 0.0
        %2346 = vmatpush1.msra.mxu0 0.0
        %2347 = vmatprep.subr.mxu0 0.0
        %2348 = vmatpush1.msra.mxu0 0.0
        %2349 = vmatprep.subr.mxu0 0.0
        %2350 = vmatpush1.msra.mxu0 0.0
        %2351 = vmatprep.subr.mxu0 0.0
        %2352 = vmatpush1.msra.mxu0 0.0
        %2353 = vmatprep.mubr.f32.mxu0 0.0
        %2354 = vmatmul.mubr.f32.gmra.mrb[0].mxu0 %v1709
        %v2355 = vpop.f32.mrb[0].mxu0
        %v2356 = vadd.f32 %v2281, %v2355
        %v2357 = vpop.f32.mrb[0].mxu0
        %2358 = vmatprep.mubr.f32.mxu0 0.0
        %2359 = vmatmul.mubr.f32.gmra.mrb[0].mxu0 %v1712
        %v2360 = vpop.f32.mrb[0].mxu0
        %v2361 = vadd.f32 %v2286, %v2360
        %v2362 = vpop.f32.mrb[0].mxu0
        %2363 = vdwg.mxu0
        %v2364 = vmax.f32 %v2356, 0.0
        %v2365 = vmax.f32 %v2361, 0.0
        %2366 = vmatprep.subr.mxu0 0.0
        %2367 = vmatpush1.msra.mxu0 %v1529
        %2368 = vmatprep.subr.mxu0 0.0
        %2369 = vmatpush1.msra.mxu0 %v1801
        %2370 = vmatprep.subr.mxu0 0.0
        %2371 = vmatpush1.msra.mxu0 0.0
        %2372 = vmatprep.subr.mxu0 0.0
        %2373 = vmatpush1.msra.mxu0 0.0
        %2374 = vmatprep.subr.mxu0 0.0
        %2375 = vmatpush1.msra.mxu0 0.0
        %2376 = vmatprep.subr.mxu0 0.0
        %2377 = vmatpush1.msra.mxu0 0.0
        %2378 = vmatprep.subr.mxu0 0.0
        %2379 = vmatpush1.msra.mxu0 0.0
        %2380 = vmatprep.subr.mxu0 0.0
        %2381 = vmatpush1.msra.mxu0 0.0
        %2382 = vmatprep.subr.mxu0 0.0
        %2383 = vmatpush1.msra.mxu0 0.0
        %2384 = vmatprep.subr.mxu0 0.0
        %2385 = vmatpush1.msra.mxu0 0.0
        %2386 = vmatprep.subr.mxu0 0.0
        %2387 = vmatpush1.msra.mxu0 0.0
        %2388 = vmatprep.subr.mxu0 0.0
        %2389 = vmatpush1.msra.mxu0 0.0
        %2390 = vmatprep.subr.mxu0 0.0
        %2391 = vmatpush1.msra.mxu0 0.0
        %2392 = vmatprep.subr.mxu0 0.0
        %2393 = vmatpush1.msra.mxu0 0.0
        %2394 = vmatprep.subr.mxu0 0.0
        %2395 = vmatpush1.msra.mxu0 0.0
        %2396 = vmatprep.subr.mxu0 0.0
        %2397 = vmatpush1.msra.mxu0 0.0
        %2398 = vmatprep.subr.mxu0 0.0
        %2399 = vmatpush1.msra.mxu0 0.0
        %2400 = vmatprep.subr.mxu0 0.0
        %2401 = vmatpush1.msra.mxu0 0.0
        %2402 = vmatprep.subr.mxu0 0.0
        %2403 = vmatpush1.msra.mxu0 0.0
        %2404 = vmatprep.subr.mxu0 0.0
        %2405 = vmatpush1.msra.mxu0 0.0
        %2406 = vmatprep.subr.mxu0 0.0
        %2407 = vmatpush1.msra.mxu0 0.0
        %2408 = vmatprep.subr.mxu0 0.0
        %2409 = vmatpush1.msra.mxu0 0.0
        %2410 = vmatprep.subr.mxu0 0.0
        %2411 = vmatpush1.msra.mxu0 0.0
        %2412 = vmatprep.subr.mxu0 0.0
        %2413 = vmatpush1.msra.mxu0 0.0
        %2414 = vmatprep.subr.mxu0 0.0
        %2415 = vmatpush1.msra.mxu0 0.0
        %2416 = vmatprep.subr.mxu0 0.0
        %2417 = vmatpush1.msra.mxu0 0.0
        %2418 = vmatprep.subr.mxu0 0.0
        %2419 = vmatpush1.msra.mxu0 0.0
        %2420 = vmatprep.subr.mxu0 0.0
        %2421 = vmatpush1.msra.mxu0 0.0
        %2422 = vmatprep.subr.mxu0 0.0
        %2423 = vmatpush1.msra.mxu0 0.0
        %2424 = vmatprep.subr.mxu0 0.0
        %2425 = vmatpush1.msra.mxu0 0.0
        %2426 = vmatprep.subr.mxu0 0.0
        %2427 = vmatpush1.msra.mxu0 0.0
        %2428 = vmatprep.subr.mxu0 0.0
        %2429 = vmatpush1.msra.mxu0 0.0
        %2430 = vmatprep.mubr.f32.mxu0 0.0
        %2431 = vmatmul.mubr.f32.gmra.mrb[0].mxu0 %v1902
        %v2432 = vpop.f32.mrb[0].mxu0
        %v2433 = vadd.f32 0.0, %v2432
        %v2434 = vpop.f32.mrb[0].mxu0
        %2435 = vmatprep.mubr.f32.mxu0 0.0
        %2436 = vmatmul.mubr.f32.gmra.mrb[0].mxu0 %v1905
        %v2437 = vpop.f32.mrb[0].mxu0
        %v2438 = vadd.f32 0.0, %v2437
        %v2439 = vpop.f32.mrb[0].mxu0
        %2440 = vdwg.mxu0
        %2441 = vmatprep.subr.mxu0 0.0
        %2442 = vmatpush1.msra.mxu0 %v1899
        %2443 = vmatprep.subr.mxu0 0.0
        %2444 = vmatpush1.msra.mxu0 %v1983
        %2445 = vmatprep.subr.mxu0 0.0
        %2446 = vmatpush1.msra.mxu0 0.0
        %2447 = vmatprep.subr.mxu0 0.0
        %2448 = vmatpush1.msra.mxu0 0.0
        %2449 = vmatprep.subr.mxu0 0.0
        %2450 = vmatpush1.msra.mxu0 0.0
        %2451 = vmatprep.subr.mxu0 0.0
        %2452 = vmatpush1.msra.mxu0 0.0
        %2453 = vmatprep.subr.mxu0 0.0
        %2454 = vmatpush1.msra.mxu0 0.0
        %2455 = vmatprep.subr.mxu0 0.0
        %2456 = vmatpush1.msra.mxu0 0.0
        %2457 = vmatprep.subr.mxu0 0.0
        %2458 = vmatpush1.msra.mxu0 0.0
        %2459 = vmatprep.subr.mxu0 0.0
        %2460 = vmatpush1.msra.mxu0 0.0
        %2461 = vmatprep.subr.mxu0 0.0
        %2462 = vmatpush1.msra.mxu0 0.0
        %2463 = vmatprep.subr.mxu0 0.0
        %2464 = vmatpush1.msra.mxu0 0.0
        %2465 = vmatprep.subr.mxu0 0.0
        %2466 = vmatpush1.msra.mxu0 0.0
        %2467 = vmatprep.subr.mxu0 0.0
        %2468 = vmatpush1.msra.mxu0 0.0
        %2469 = vmatprep.subr.mxu0 0.0
        %2470 = vmatpush1.msra.mxu0 0.0
        %2471 = vmatprep.subr.mxu0 0.0
        %2472 = vmatpush1.msra.mxu0 0.0
        %2473 = vmatprep.subr.mxu0 0.0
        %2474 = vmatpush1.msra.mxu0 0.0
        %2475 = vmatprep.subr.mxu0 0.0
        %2476 = vmatpush1.msra.mxu0 0.0
        %2477 = vmatprep.subr.mxu0 0.0
        %2478 = vmatpush1.msra.mxu0 0.0
        %2479 = vmatprep.subr.mxu0 0.0
        %2480 = vmatpush1.msra.mxu0 0.0
        %2481 = vmatprep.subr.mxu0 0.0
        %2482 = vmatpush1.msra.mxu0 0.0
        %2483 = vmatprep.subr.mxu0 0.0
        %2484 = vmatpush1.msra.mxu0 0.0
        %2485 = vmatprep.subr.mxu0 0.0
        %2486 = vmatpush1.msra.mxu0 0.0
        %2487 = vmatprep.subr.mxu0 0.0
        %2488 = vmatpush1.msra.mxu0 0.0
        %2489 = vmatprep.subr.mxu0 0.0
        %2490 = vmatpush1.msra.mxu0 0.0
        %2491 = vmatprep.subr.mxu0 0.0
        %2492 = vmatpush1.msra.mxu0 0.0
        %2493 = vmatprep.subr.mxu0 0.0
        %2494 = vmatpush1.msra.mxu0 0.0
        %2495 = vmatprep.subr.mxu0 0.0
        %2496 = vmatpush1.msra.mxu0 0.0
        %2497 = vmatprep.subr.mxu0 0.0
        %2498 = vmatpush1.msra.mxu0 0.0
        %2499 = vmatprep.subr.mxu0 0.0
        %2500 = vmatpush1.msra.mxu0 0.0
        %2501 = vmatprep.subr.mxu0 0.0
        %2502 = vmatpush1.msra.mxu0 0.0
        %2503 = vmatprep.subr.mxu0 0.0
        %2504 = vmatpush1.msra.mxu0 0.0
        %2505 = vmatprep.mubr.f32.mxu0 0.0
        %2506 = vmatmul.mubr.f32.gmra.mrb[0].mxu0 %v1795
        %v2507 = vpop.f32.mrb[0].mxu0
        %v2508 = vadd.f32 %v2433, %v2507
        %v2509 = vpop.f32.mrb[0].mxu0
        %2510 = vmatprep.mubr.f32.mxu0 0.0
        %2511 = vmatmul.mubr.f32.gmra.mrb[0].mxu0 %v1798
        %v2512 = vpop.f32.mrb[0].mxu0
        %v2513 = vadd.f32 %v2438, %v2512
        %v2514 = vpop.f32.mrb[0].mxu0
        %2515 = vdwg.mxu0
        %v2516 = vmax.f32 %v2508, 0.0
        %v2517 = vmax.f32 %v2513, 0.0
        %vm2520 = vcmask 1040384
        %v2521 = vrot.slane %v2060, 7
        %v2522 = vrot.slane %v2061, 7
        %v2523 = vsel %vm2520, %v2521, %v2522
        %v2526 = vsel %vm2520, 0.0, %v2521
        %v2529 = vrot.slane %v2212, 7
        %v2530 = vrot.slane %v2213, 7
        %v2531 = vsel %vm2520, %v2529, %v2530
        %v2534 = vsel %vm2520, 0.0, %v2529
        %v2537 = vrot.slane %v2364, 7
        %v2538 = vrot.slane %v2365, 7
        %v2539 = vsel %vm2520, %v2537, %v2538
        %v2542 = vsel %vm2520, 0.0, %v2537
        %v2545 = vrot.slane %v2516, 7
        %v2546 = vrot.slane %v2517, 7
        %v2547 = vsel %vm2520, %v2545, %v2546
        %v2550 = vsel %vm2520, 0.0, %v2545
        %2552 = vrot.lane.b32.xlu0 %v2526, 1
        %v2553 = vpop.permute.xlu0 %2552
        %2554 = vrot.lane.b32.xlu0 %v2523, 1
        %v2555 = vpop.permute.xlu0 %2554
        %vm2558 = vcmask 7168
        %v2559 = vsel %vm2558, 0.0, %v2553
        %v2560 = vsel %vm2558, 0.0, %v2555
        %2562 = vrot.lane.b32.xlu0 %v2534, 1
        %v2563 = vpop.permute.xlu0 %2562
        %2564 = vrot.lane.b32.xlu0 %v2531, 1
        %v2565 = vpop.permute.xlu0 %2564
        %v2568 = vsel %vm2558, 0.0, %v2563
        %v2569 = vsel %vm2558, 0.0, %v2565
        %2571 = vrot.lane.b32.xlu0 %v2542, 1
        %v2572 = vpop.permute.xlu0 %2571
        %2573 = vrot.lane.b32.xlu0 %v2539, 1
        %v2574 = vpop.permute.xlu0 %2573
        %v2577 = vsel %vm2558, 0.0, %v2572
        %v2578 = vsel %vm2558, 0.0, %v2574
        %2580 = vrot.lane.b32.xlu0 %v2550, 1
        %v2581 = vpop.permute.xlu0 %2580
        %2582 = vrot.lane.b32.xlu0 %v2547, 1
        %v2583 = vpop.permute.xlu0 %2582
        %v2586 = vsel %vm2558, 0.0, %v2581
        %v2587 = vsel %vm2558, 0.0, %v2583
        %2588 = vrot.lane.b32.xlu0 %v2526, 127
        %v2589 = vpop.permute.xlu0 %2588
        %2590 = vrot.lane.b32.xlu0 %v2523, 127
        %v2591 = vpop.permute.xlu0 %2590
        %vm2594 = vcmask 121856
        %v2595 = vsel %vm2594, %v2589, 0.0
        %v2596 = vsel %vm2594, %v2591, 0.0
        %2597 = vrot.lane.b32.xlu0 %v2534, 127
        %v2598 = vpop.permute.xlu0 %2597
        %2599 = vrot.lane.b32.xlu0 %v2531, 127
        %v2600 = vpop.permute.xlu0 %2599
        %v2603 = vsel %vm2594, %v2598, 0.0
        %v2604 = vsel %vm2594, %v2600, 0.0
        %2605 = vrot.lane.b32.xlu0 %v2542, 127
        %v2606 = vpop.permute.xlu0 %2605
        %2607 = vrot.lane.b32.xlu0 %v2539, 127
        %v2608 = vpop.permute.xlu0 %2607
        %v2611 = vsel %vm2594, %v2606, 0.0
        %v2612 = vsel %vm2594, %v2608, 0.0
        %2613 = vrot.lane.b32.xlu0 %v2550, 127
        %v2614 = vpop.permute.xlu0 %2613
        %2615 = vrot.lane.b32.xlu0 %v2547, 127
        %v2616 = vpop.permute.xlu0 %2615
        %v2619 = vsel %vm2594, %v2614, 0.0
        %v2620 = vsel %vm2594, %v2616, 0.0
        %2621 = vrot.lane.b32.xlu0 %v2060, 1
        %v2622 = vpop.permute.xlu0 %2621
        %2623 = vrot.lane.b32.xlu0 %v2061, 1
        %v2624 = vpop.permute.xlu0 %2623
        %v2627 = vsel %vm2558, 0.0, %v2622
        %v2628 = vsel %vm2558, 0.0, %v2624
        %2629 = vrot.lane.b32.xlu0 %v2212, 1
        %v2630 = vpop.permute.xlu0 %2629
        %2631 = vrot.lane.b32.xlu0 %v2213, 1
        %v2632 = vpop.permute.xlu0 %2631
        %v2635 = vsel %vm2558, 0.0, %v2630
        %v2636 = vsel %vm2558, 0.0, %v2632
        %2637 = vrot.lane.b32.xlu0 %v2364, 1
        %v2638 = vpop.permute.xlu0 %2637
        %2639 = vrot.lane.b32.xlu0 %v2365, 1
        %v2640 = vpop.permute.xlu0 %2639
        %v2643 = vsel %vm2558, 0.0, %v2638
        %v2644 = vsel %vm2558, 0.0, %v2640
        %2645 = vrot.lane.b32.xlu0 %v2516, 1
        %v2646 = vpop.permute.xlu0 %2645
        %2647 = vrot.lane.b32.xlu0 %v2517, 1
        %v2648 = vpop.permute.xlu0 %2647
        %v2651 = vsel %vm2558, 0.0, %v2646
        %v2652 = vsel %vm2558, 0.0, %v2648
        %2653 = vrot.lane.b32.xlu0 %v2060, 127
        %v2654 = vpop.permute.xlu0 %2653
        %2655 = vrot.lane.b32.xlu0 %v2061, 127
        %v2656 = vpop.permute.xlu0 %2655
        %v2659 = vsel %vm2594, %v2654, 0.0
        %v2660 = vsel %vm2594, %v2656, 0.0
        %2661 = vrot.lane.b32.xlu0 %v2212, 127
        %v2662 = vpop.permute.xlu0 %2661
        %2663 = vrot.lane.b32.xlu0 %v2213, 127
        %v2664 = vpop.permute.xlu0 %2663
        %v2667 = vsel %vm2594, %v2662, 0.0
        %v2668 = vsel %vm2594, %v2664, 0.0
        %2669 = vrot.lane.b32.xlu0 %v2364, 127
        %v2670 = vpop.permute.xlu0 %2669
        %2671 = vrot.lane.b32.xlu0 %v2365, 127
        %v2672 = vpop.permute.xlu0 %2671
        %v2675 = vsel %vm2594, %v2670, 0.0
        %v2676 = vsel %vm2594, %v2672, 0.0
        %2677 = vrot.lane.b32.xlu0 %v2516, 127
        %v2678 = vpop.permute.xlu0 %2677
        %2679 = vrot.lane.b32.xlu0 %v2517, 127
        %v2680 = vpop.permute.xlu0 %2679
        %v2683 = vsel %vm2594, %v2678, 0.0
        %v2684 = vsel %vm2594, %v2680, 0.0
        %v2685 = vrot.slane %v2060, 1
        %v2686 = vrot.slane %v2061, 1
        %v2687 = vsel %vm429, %v2685, %v2686
        %v2690 = vsel %vm429, %v2686, 0.0
        %v2691 = vrot.slane %v2212, 1
        %v2692 = vrot.slane %v2213, 1
        %v2693 = vsel %vm429, %v2691, %v2692
        %v2696 = vsel %vm429, %v2692, 0.0
        %v2697 = vrot.slane %v2364, 1
        %v2698 = vrot.slane %v2365, 1
        %v2699 = vsel %vm429, %v2697, %v2698
        %v2702 = vsel %vm429, %v2698, 0.0
        %v2703 = vrot.slane %v2516, 1
        %v2704 = vrot.slane %v2517, 1
        %v2705 = vsel %vm429, %v2703, %v2704
        %v2708 = vsel %vm429, %v2704, 0.0
        %2710 = vrot.lane.b32.xlu0 %v2687, 1
        %v2711 = vpop.permute.xlu0 %2710
        %2712 = vrot.lane.b32.xlu0 %v2690, 1
        %v2713 = vpop.permute.xlu0 %2712
        %v2716 = vsel %vm2558, 0.0, %v2711
        %v2717 = vsel %vm2558, 0.0, %v2713
        %2719 = vrot.lane.b32.xlu0 %v2693, 1
        %v2720 = vpop.permute.xlu0 %2719
        %2721 = vrot.lane.b32.xlu0 %v2696, 1
        %v2722 = vpop.permute.xlu0 %2721
        %v2725 = vsel %vm2558, 0.0, %v2720
        %v2726 = vsel %vm2558, 0.0, %v2722
        %2728 = vrot.lane.b32.xlu0 %v2699, 1
        %v2729 = vpop.permute.xlu0 %2728
        %2730 = vrot.lane.b32.xlu0 %v2702, 1
        %v2731 = vpop.permute.xlu0 %2730
        %v2734 = vsel %vm2558, 0.0, %v2729
        %v2735 = vsel %vm2558, 0.0, %v2731
        %2737 = vrot.lane.b32.xlu0 %v2705, 1
        %v2738 = vpop.permute.xlu0 %2737
        %2739 = vrot.lane.b32.xlu0 %v2708, 1
        %v2740 = vpop.permute.xlu0 %2739
        %v2743 = vsel %vm2558, 0.0, %v2738
        %v2744 = vsel %vm2558, 0.0, %v2740
        %2745 = vrot.lane.b32.xlu0 %v2687, 127
        %v2746 = vpop.permute.xlu0 %2745
        %2747 = vrot.lane.b32.xlu0 %v2690, 127
        %v2748 = vpop.permute.xlu0 %2747
        %v2751 = vsel %vm2594, %v2746, 0.0
        %v2752 = vsel %vm2594, %v2748, 0.0
        %2753 = vrot.lane.b32.xlu0 %v2693, 127
        %v2754 = vpop.permute.xlu0 %2753
        %2755 = vrot.lane.b32.xlu0 %v2696, 127
        %v2756 = vpop.permute.xlu0 %2755
        %v2759 = vsel %vm2594, %v2754, 0.0
        %v2760 = vsel %vm2594, %v2756, 0.0
        %2761 = vrot.lane.b32.xlu0 %v2699, 127
        %v2762 = vpop.permute.xlu0 %2761
        %2763 = vrot.lane.b32.xlu0 %v2702, 127
        %v2764 = vpop.permute.xlu0 %2763
        %v2767 = vsel %vm2594, %v2762, 0.0
        %v2768 = vsel %vm2594, %v2764, 0.0
        %2769 = vrot.lane.b32.xlu0 %v2705, 127
        %v2770 = vpop.permute.xlu0 %2769
        %2771 = vrot.lane.b32.xlu0 %v2708, 127
        %v2772 = vpop.permute.xlu0 %2771
        %v2775 = vsel %vm2594, %v2770, 0.0
        %v2776 = vsel %vm2594, %v2772, 0.0
        %s2777 = sld [smem:[#allocation10]]
        %v2778 = vstv %s2777
        %v2779 = vmul.f32 %v2778, %v2559
        %v2780 = vmul.f32 %v2778, %v2560
        %v2781 = vadd.f32 %v406, %v2779
        %v2782 = vadd.f32 %v407, %v2780
        %s2783 = sld [smem:[#allocation10 + $0x1]]
        %v2784 = vstv %s2783
        %v2785 = vmul.f32 %v2784, %v2568
        %v2786 = vmul.f32 %v2784, %v2569
        %v2787 = vadd.f32 %v2781, %v2785
        %v2788 = vadd.f32 %v2782, %v2786
        %s2789 = sld [smem:[#allocation10 + $0x2]]
        %v2790 = vstv %s2789
        %v2791 = vmul.f32 %v2790, %v2577
        %v2792 = vmul.f32 %v2790, %v2578
        %v2793 = vadd.f32 %v2787, %v2791
        %v2794 = vadd.f32 %v2788, %v2792
        %s2795 = sld [smem:[#allocation10 + $0x3]]
        %v2796 = vstv %s2795
        %v2797 = vmul.f32 %v2796, %v2586
        %v2798 = vmul.f32 %v2796, %v2587
        %v2799 = vadd.f32 %v2793, %v2797
        %v2800 = vadd.f32 %v2794, %v2798
        %s2801 = sld [smem:[#allocation10 + $0x4]]
        %v2802 = vstv %s2801
        %v2803 = vmul.f32 %v2802, %v2526
        %v2804 = vmul.f32 %v2802, %v2523
        %v2805 = vadd.f32 %v2799, %v2803
        %v2806 = vadd.f32 %v2800, %v2804
        %s2807 = sld [smem:[#allocation10 + $0x5]]
        %v2808 = vstv %s2807
        %v2809 = vmul.f32 %v2808, %v2534
        %v2810 = vmul.f32 %v2808, %v2531
        %v2811 = vadd.f32 %v2805, %v2809
        %v2812 = vadd.f32 %v2806, %v2810
        %s2813 = sld [smem:[#allocation10 + $0x6]]
        %v2814 = vstv %s2813
        %v2815 = vmul.f32 %v2814, %v2542
        %v2816 = vmul.f32 %v2814, %v2539
        %v2817 = vadd.f32 %v2811, %v2815
        %v2818 = vadd.f32 %v2812, %v2816
        %s2819 = sld [smem:[#allocation10 + $0x7]]
        %v2820 = vstv %s2819
        %v2821 = vmul.f32 %v2820, %v2550
        %v2822 = vmul.f32 %v2820, %v2547
        %v2823 = vadd.f32 %v2817, %v2821
        %v2824 = vadd.f32 %v2818, %v2822
        %s2825 = sld [smem:[#allocation10 + $0x8]]
        %v2826 = vstv %s2825
        %v2827 = vmul.f32 %v2826, %v2595
        %v2828 = vmul.f32 %v2826, %v2596
        %v2829 = vadd.f32 %v2823, %v2827
        %v2830 = vadd.f32 %v2824, %v2828
        %s2831 = sld [smem:[#allocation10 + $0x9]]
        %v2832 = vstv %s2831
        %v2833 = vmul.f32 %v2832, %v2603
        %v2834 = vmul.f32 %v2832, %v2604
        %v2835 = vadd.f32 %v2829, %v2833
        %v2836 = vadd.f32 %v2830, %v2834
        %s2837 = sld [smem:[#allocation10 + $0xa]]
        %v2838 = vstv %s2837
        %v2839 = vmul.f32 %v2838, %v2611
        %v2840 = vmul.f32 %v2838, %v2612
        %v2841 = vadd.f32 %v2835, %v2839
        %v2842 = vadd.f32 %v2836, %v2840
        %s2843 = sld [smem:[#allocation10 + $0xb]]
        %v2844 = vstv %s2843
        %v2845 = vmul.f32 %v2844, %v2619
        %v2846 = vmul.f32 %v2844, %v2620
        %v2847 = vadd.f32 %v2841, %v2845
        %v2848 = vadd.f32 %v2842, %v2846
        %s2849 = sld [smem:[#allocation10 + $0xc]]
        %v2850 = vstv %s2849
        %v2851 = vmul.f32 %v2850, %v2627
        %v2852 = vmul.f32 %v2850, %v2628
        %v2853 = vadd.f32 %v2847, %v2851
        %v2854 = vadd.f32 %v2848, %v2852
        %s2855 = sld [smem:[#allocation10 + $0xd]]
        %v2856 = vstv %s2855
        %v2857 = vmul.f32 %v2856, %v2635
        %v2858 = vmul.f32 %v2856, %v2636
        %v2859 = vadd.f32 %v2853, %v2857
        %v2860 = vadd.f32 %v2854, %v2858
        %s2861 = sld [smem:[#allocation10 + $0xe]]
        %v2862 = vstv %s2861
        %v2863 = vmul.f32 %v2862, %v2643
        %v2864 = vmul.f32 %v2862, %v2644
        %v2865 = vadd.f32 %v2859, %v2863
        %v2866 = vadd.f32 %v2860, %v2864
        %s2867 = sld [smem:[#allocation10 + $0xf]]
        %v2868 = vstv %s2867
        %v2869 = vmul.f32 %v2868, %v2651
        %v2870 = vmul.f32 %v2868, %v2652
        %v2871 = vadd.f32 %v2865, %v2869
        %v2872 = vadd.f32 %v2866, %v2870
        %s2873 = sld [smem:[#allocation10 + $0x10]]
        %v2874 = vstv %s2873
        %v2875 = vmul.f32 %v2874, %v2060
        %v2876 = vmul.f32 %v2874, %v2061
        %v2877 = vadd.f32 %v2871, %v2875
        %v2878 = vadd.f32 %v2872, %v2876
        %s2879 = sld [smem:[#allocation10 + $0x11]]
        %v2880 = vstv %s2879
        %v2881 = vmul.f32 %v2880, %v2212
        %v2882 = vmul.f32 %v2880, %v2213
        %v2883 = vadd.f32 %v2877, %v2881
        %v2884 = vadd.f32 %v2878, %v2882
        %s2885 = sld [smem:[#allocation10 + $0x12]]
        %v2886 = vstv %s2885
        %v2887 = vmul.f32 %v2886, %v2364
        %v2888 = vmul.f32 %v2886, %v2365
        %v2889 = vadd.f32 %v2883, %v2887
        %v2890 = vadd.f32 %v2884, %v2888
        %s2891 = sld [smem:[#allocation10 + $0x13]]
        %v2892 = vstv %s2891
        %v2893 = vmul.f32 %v2892, %v2516
        %v2894 = vmul.f32 %v2892, %v2517
        %v2895 = vadd.f32 %v2889, %v2893
        %v2896 = vadd.f32 %v2890, %v2894
        %s2897 = sld [smem:[#allocation10 + $0x14]]
        %v2898 = vstv %s2897
        %v2899 = vmul.f32 %v2898, %v2659
        %v2900 = vmul.f32 %v2898, %v2660
        %v2901 = vadd.f32 %v2895, %v2899
        %v2902 = vadd.f32 %v2896, %v2900
        %s2903 = sld [smem:[#allocation10 + $0x15]]
        %v2904 = vstv %s2903
        %v2905 = vmul.f32 %v2904, %v2667
        %v2906 = vmul.f32 %v2904, %v2668
        %v2907 = vadd.f32 %v2901, %v2905
        %v2908 = vadd.f32 %v2902, %v2906
        %s2909 = sld [smem:[#allocation10 + $0x16]]
        %v2910 = vstv %s2909
        %v2911 = vmul.f32 %v2910, %v2675
        %v2912 = vmul.f32 %v2910, %v2676
        %v2913 = vadd.f32 %v2907, %v2911
        %v2914 = vadd.f32 %v2908, %v2912
        %s2915 = sld [smem:[#allocation10 + $0x17]]
        %v2916 = vstv %s2915
        %v2917 = vmul.f32 %v2916, %v2683
        %v2918 = vmul.f32 %v2916, %v2684
        %v2919 = vadd.f32 %v2913, %v2917
        %v2920 = vadd.f32 %v2914, %v2918
        %s2921 = sld [smem:[#allocation10 + $0x18]]
        %v2922 = vstv %s2921
        %v2923 = vmul.f32 %v2922, %v2716
        %v2924 = vmul.f32 %v2922, %v2717
        %v2925 = vadd.f32 %v2919, %v2923
        %v2926 = vadd.f32 %v2920, %v2924
        %s2927 = sld [smem:[#allocation10 + $0x19]]
        %v2928 = vstv %s2927
        %v2929 = vmul.f32 %v2928, %v2725
        %v2930 = vmul.f32 %v2928, %v2726
        %v2931 = vadd.f32 %v2925, %v2929
        %v2932 = vadd.f32 %v2926, %v2930
        %s2933 = sld [smem:[#allocation10 + $0x1a]]
        %v2934 = vstv %s2933
        %v2935 = vmul.f32 %v2934, %v2734
        %v2936 = vmul.f32 %v2934, %v2735
        %v2937 = vadd.f32 %v2931, %v2935
        %v2938 = vadd.f32 %v2932, %v2936
        %s2939 = sld [smem:[#allocation10 + $0x1b]]
        %v2940 = vstv %s2939
        %v2941 = vmul.f32 %v2940, %v2743
        %v2942 = vmul.f32 %v2940, %v2744
        %v2943 = vadd.f32 %v2937, %v2941
        %v2944 = vadd.f32 %v2938, %v2942
        %s2945 = sld [smem:[#allocation10 + $0x1c]]
        %v2946 = vstv %s2945
        %v2947 = vmul.f32 %v2946, %v2687
        %v2948 = vmul.f32 %v2946, %v2690
        %v2949 = vadd.f32 %v2943, %v2947
        %v2950 = vadd.f32 %v2944, %v2948
        %s2951 = sld [smem:[#allocation10 + $0x1d]]
        %v2952 = vstv %s2951
        %v2953 = vmul.f32 %v2952, %v2693
        %v2954 = vmul.f32 %v2952, %v2696
        %v2955 = vadd.f32 %v2949, %v2953
        %v2956 = vadd.f32 %v2950, %v2954
        %s2957 = sld [smem:[#allocation10 + $0x1e]]
        %v2958 = vstv %s2957
        %v2959 = vmul.f32 %v2958, %v2699
        %v2960 = vmul.f32 %v2958, %v2702
        %v2961 = vadd.f32 %v2955, %v2959
        %v2962 = vadd.f32 %v2956, %v2960
        %s2963 = sld [smem:[#allocation10 + $0x1f]]
        %v2964 = vstv %s2963
        %v2965 = vmul.f32 %v2964, %v2705
        %v2966 = vmul.f32 %v2964, %v2708
        %v2967 = vadd.f32 %v2961, %v2965
        %v2968 = vadd.f32 %v2962, %v2966
        %s2969 = sld [smem:[#allocation10 + $0x20]]
        %v2970 = vstv %s2969
        %v2971 = vmul.f32 %v2970, %v2751
        %v2972 = vmul.f32 %v2970, %v2752
        %v2973 = vadd.f32 %v2967, %v2971
        %v2974 = vadd.f32 %v2968, %v2972
        %s2975 = sld [smem:[#allocation10 + $0x21]]
        %v2976 = vstv %s2975
        %v2977 = vmul.f32 %v2976, %v2759
        %v2978 = vmul.f32 %v2976, %v2760
        %v2979 = vadd.f32 %v2973, %v2977
        %v2980 = vadd.f32 %v2974, %v2978
        %s2981 = sld [smem:[#allocation10 + $0x22]]
        %v2982 = vstv %s2981
        %v2983 = vmul.f32 %v2982, %v2767
        %v2984 = vmul.f32 %v2982, %v2768
        %v2985 = vadd.f32 %v2979, %v2983
        %v2986 = vadd.f32 %v2980, %v2984
        %s2987 = sld [smem:[#allocation10 + $0x23]]
        %v2988 = vstv %s2987
        %v2989 = vmul.f32 %v2988, %v2775
        %v2990 = vmul.f32 %v2988, %v2776
        %v2991 = vadd.f32 %v2985, %v2989
        %v2992 = vadd.f32 %v2986, %v2990
        %2993 = vst.msk [vmem:[%s400] sm:$0xff] %vm1894, %v2991
        %2994 = vst.msk [vmem:[%s400 + $0x8] sm:$0xff] %vm1894, %v2992
        %s2995 = sld [smem:[#allocation10 + $0x80]]
        %v2996 = vstv %s2995
        %v2997 = vmul.f32 %v2996, %v2559
        %v2998 = vmul.f32 %v2996, %v2560
        %v2999 = vadd.f32 %v409, %v2997
        %v3000 = vadd.f32 %v410, %v2998
        %s3001 = sld [smem:[#allocation10 + $0x81]]
        %v3002 = vstv %s3001
        %v3003 = vmul.f32 %v3002, %v2568
        %v3004 = vmul.f32 %v3002, %v2569
        %v3005 = vadd.f32 %v2999, %v3003
        %v3006 = vadd.f32 %v3000, %v3004
        %s3007 = sld [smem:[#allocation10 + $0x82]]
        %v3008 = vstv %s3007
        %v3009 = vmul.f32 %v3008, %v2577
        %v3010 = vmul.f32 %v3008, %v2578
        %v3011 = vadd.f32 %v3005, %v3009
        %v3012 = vadd.f32 %v3006, %v3010
        %s3013 = sld [smem:[#allocation10 + $0x83]]
        %v3014 = vstv %s3013
        %v3015 = vmul.f32 %v3014, %v2586
        %v3016 = vmul.f32 %v3014, %v2587
        %v3017 = vadd.f32 %v3011, %v3015
        %v3018 = vadd.f32 %v3012, %v3016
        %s3019 = sld [smem:[#allocation10 + $0x84]]
        %v3020 = vstv %s3019
        %v3021 = vmul.f32 %v3020, %v2526
        %v3022 = vmul.f32 %v3020, %v2523
        %v3023 = vadd.f32 %v3017, %v3021
        %v3024 = vadd.f32 %v3018, %v3022
        %s3025 = sld [smem:[#allocation10 + $0x85]]
        %v3026 = vstv %s3025
        %v3027 = vmul.f32 %v3026, %v2534
        %v3028 = vmul.f32 %v3026, %v2531
        %v3029 = vadd.f32 %v3023, %v3027
        %v3030 = vadd.f32 %v3024, %v3028
        %s3031 = sld [smem:[#allocation10 + $0x86]]
        %v3032 = vstv %s3031
        %v3033 = vmul.f32 %v3032, %v2542
        %v3034 = vmul.f32 %v3032, %v2539
        %v3035 = vadd.f32 %v3029, %v3033
        %v3036 = vadd.f32 %v3030, %v3034
        %s3037 = sld [smem:[#allocation10 + $0x87]]
        %v3038 = vstv %s3037
        %v3039 = vmul.f32 %v3038, %v2550
        %v3040 = vmul.f32 %v3038, %v2547
        %v3041 = vadd.f32 %v3035, %v3039
        %v3042 = vadd.f32 %v3036, %v3040
        %s3043 = sld [smem:[#allocation10 + $0x88]]
        %v3044 = vstv %s3043
        %v3045 = vmul.f32 %v3044, %v2595
        %v3046 = vmul.f32 %v3044, %v2596
        %v3047 = vadd.f32 %v3041, %v3045
        %v3048 = vadd.f32 %v3042, %v3046
        %s3049 = sld [smem:[#allocation10 + $0x89]]
        %v3050 = vstv %s3049
        %v3051 = vmul.f32 %v3050, %v2603
        %v3052 = vmul.f32 %v3050, %v2604
        %v3053 = vadd.f32 %v3047, %v3051
        %v3054 = vadd.f32 %v3048, %v3052
        %s3055 = sld [smem:[#allocation10 + $0x8a]]
        %v3056 = vstv %s3055
        %v3057 = vmul.f32 %v3056, %v2611
        %v3058 = vmul.f32 %v3056, %v2612
        %v3059 = vadd.f32 %v3053, %v3057
        %v3060 = vadd.f32 %v3054, %v3058
        %s3061 = sld [smem:[#allocation10 + $0x8b]]
        %v3062 = vstv %s3061
        %v3063 = vmul.f32 %v3062, %v2619
        %v3064 = vmul.f32 %v3062, %v2620
        %v3065 = vadd.f32 %v3059, %v3063
        %v3066 = vadd.f32 %v3060, %v3064
        %s3067 = sld [smem:[#allocation10 + $0x8c]]
        %v3068 = vstv %s3067
        %v3069 = vmul.f32 %v3068, %v2627
        %v3070 = vmul.f32 %v3068, %v2628
        %v3071 = vadd.f32 %v3065, %v3069
        %v3072 = vadd.f32 %v3066, %v3070
        %s3073 = sld [smem:[#allocation10 + $0x8d]]
        %v3074 = vstv %s3073
        %v3075 = vmul.f32 %v3074, %v2635
        %v3076 = vmul.f32 %v3074, %v2636
        %v3077 = vadd.f32 %v3071, %v3075
        %v3078 = vadd.f32 %v3072, %v3076
        %s3079 = sld [smem:[#allocation10 + $0x8e]]
        %v3080 = vstv %s3079
        %v3081 = vmul.f32 %v3080, %v2643
        %v3082 = vmul.f32 %v3080, %v2644
        %v3083 = vadd.f32 %v3077, %v3081
        %v3084 = vadd.f32 %v3078, %v3082
        %s3085 = sld [smem:[#allocation10 + $0x8f]]
        %v3086 = vstv %s3085
        %v3087 = vmul.f32 %v3086, %v2651
        %v3088 = vmul.f32 %v3086, %v2652
        %v3089 = vadd.f32 %v3083, %v3087
        %v3090 = vadd.f32 %v3084, %v3088
        %s3091 = sld [smem:[#allocation10 + $0x90]]
        %v3092 = vstv %s3091
        %v3093 = vmul.f32 %v3092, %v2060
        %v3094 = vmul.f32 %v3092, %v2061
        %v3095 = vadd.f32 %v3089, %v3093
        %v3096 = vadd.f32 %v3090, %v3094
        %s3097 = sld [smem:[#allocation10 + $0x91]]
        %v3098 = vstv %s3097
        %v3099 = vmul.f32 %v3098, %v2212
        %v3100 = vmul.f32 %v3098, %v2213
        %v3101 = vadd.f32 %v3095, %v3099
        %v3102 = vadd.f32 %v3096, %v3100
        %s3103 = sld [smem:[#allocation10 + $0x92]]
        %v3104 = vstv %s3103
        %v3105 = vmul.f32 %v3104, %v2364
        %v3106 = vmul.f32 %v3104, %v2365
        %v3107 = vadd.f32 %v3101, %v3105
        %v3108 = vadd.f32 %v3102, %v3106
        %s3109 = sld [smem:[#allocation10 + $0x93]]
        %v3110 = vstv %s3109
        %v3111 = vmul.f32 %v3110, %v2516
        %v3112 = vmul.f32 %v3110, %v2517
        %v3113 = vadd.f32 %v3107, %v3111
        %v3114 = vadd.f32 %v3108, %v3112
        %s3115 = sld [smem:[#allocation10 + $0x94]]
        %v3116 = vstv %s3115
        %v3117 = vmul.f32 %v3116, %v2659
        %v3118 = vmul.f32 %v3116, %v2660
        %v3119 = vadd.f32 %v3113, %v3117
        %v3120 = vadd.f32 %v3114, %v3118
        %s3121 = sld [smem:[#allocation10 + $0x95]]
        %v3122 = vstv %s3121
        %v3123 = vmul.f32 %v3122, %v2667
        %v3124 = vmul.f32 %v3122, %v2668
        %v3125 = vadd.f32 %v3119, %v3123
        %v3126 = vadd.f32 %v3120, %v3124
        %s3127 = sld [smem:[#allocation10 + $0x96]]
        %v3128 = vstv %s3127
        %v3129 = vmul.f32 %v3128, %v2675
        %v3130 = vmul.f32 %v3128, %v2676
        %v3131 = vadd.f32 %v3125, %v3129
        %v3132 = vadd.f32 %v3126, %v3130
        %s3133 = sld [smem:[#allocation10 + $0x97]]
        %v3134 = vstv %s3133
        %v3135 = vmul.f32 %v3134, %v2683
        %v3136 = vmul.f32 %v3134, %v2684
        %v3137 = vadd.f32 %v3131, %v3135
        %v3138 = vadd.f32 %v3132, %v3136
        %s3139 = sld [smem:[#allocation10 + $0x98]]
        %v3140 = vstv %s3139
        %v3141 = vmul.f32 %v3140, %v2716
        %v3142 = vmul.f32 %v3140, %v2717
        %v3143 = vadd.f32 %v3137, %v3141
        %v3144 = vadd.f32 %v3138, %v3142
        %s3145 = sld [smem:[#allocation10 + $0x99]]
        %v3146 = vstv %s3145
        %v3147 = vmul.f32 %v3146, %v2725
        %v3148 = vmul.f32 %v3146, %v2726
        %v3149 = vadd.f32 %v3143, %v3147
        %v3150 = vadd.f32 %v3144, %v3148
        %s3151 = sld [smem:[#allocation10 + $0x9a]]
        %v3152 = vstv %s3151
        %v3153 = vmul.f32 %v3152, %v2734
        %v3154 = vmul.f32 %v3152, %v2735
        %v3155 = vadd.f32 %v3149, %v3153
        %v3156 = vadd.f32 %v3150, %v3154
        %s3157 = sld [smem:[#allocation10 + $0x9b]]
        %v3158 = vstv %s3157
        %v3159 = vmul.f32 %v3158, %v2743
        %v3160 = vmul.f32 %v3158, %v2744
        %v3161 = vadd.f32 %v3155, %v3159
        %v3162 = vadd.f32 %v3156, %v3160
        %s3163 = sld [smem:[#allocation10 + $0x9c]]
        %v3164 = vstv %s3163
        %v3165 = vmul.f32 %v3164, %v2687
        %v3166 = vmul.f32 %v3164, %v2690
        %v3167 = vadd.f32 %v3161, %v3165
        %v3168 = vadd.f32 %v3162, %v3166
        %s3169 = sld [smem:[#allocation10 + $0x9d]]
        %v3170 = vstv %s3169
        %v3171 = vmul.f32 %v3170, %v2693
        %v3172 = vmul.f32 %v3170, %v2696
        %v3173 = vadd.f32 %v3167, %v3171
        %v3174 = vadd.f32 %v3168, %v3172
        %s3175 = sld [smem:[#allocation10 + $0x9e]]
        %v3176 = vstv %s3175
        %v3177 = vmul.f32 %v3176, %v2699
        %v3178 = vmul.f32 %v3176, %v2702
        %v3179 = vadd.f32 %v3173, %v3177
        %v3180 = vadd.f32 %v3174, %v3178
        %s3181 = sld [smem:[#allocation10 + $0x9f]]
        %v3182 = vstv %s3181
        %v3183 = vmul.f32 %v3182, %v2705
        %v3184 = vmul.f32 %v3182, %v2708
        %v3185 = vadd.f32 %v3179, %v3183
        %v3186 = vadd.f32 %v3180, %v3184
        %s3187 = sld [smem:[#allocation10 + $0xa0]]
        %v3188 = vstv %s3187
        %v3189 = vmul.f32 %v3188, %v2751
        %v3190 = vmul.f32 %v3188, %v2752
        %v3191 = vadd.f32 %v3185, %v3189
        %v3192 = vadd.f32 %v3186, %v3190
        %s3193 = sld [smem:[#allocation10 + $0xa1]]
        %v3194 = vstv %s3193
        %v3195 = vmul.f32 %v3194, %v2759
        %v3196 = vmul.f32 %v3194, %v2760
        %v3197 = vadd.f32 %v3191, %v3195
        %v3198 = vadd.f32 %v3192, %v3196
        %s3199 = sld [smem:[#allocation10 + $0xa2]]
        %v3200 = vstv %s3199
        %v3201 = vmul.f32 %v3200, %v2767
        %v3202 = vmul.f32 %v3200, %v2768
        %v3203 = vadd.f32 %v3197, %v3201
        %v3204 = vadd.f32 %v3198, %v3202
        %s3205 = sld [smem:[#allocation10 + $0xa3]]
        %v3206 = vstv %s3205
        %v3207 = vmul.f32 %v3206, %v2775
        %v3208 = vmul.f32 %v3206, %v2776
        %v3209 = vadd.f32 %v3203, %v3207
        %v3210 = vadd.f32 %v3204, %v3208
        %s3211 = scalar_lea.vmem %s400, 16 [#allocation12]
        %3212 = vst.msk [vmem:[%s3211] sm:$0xff] %vm1894, %v3209
        %3213 = vst.msk [vmem:[%s3211 + $0x8] sm:$0xff] %vm1894, %v3210
        %s3214 = sld [smem:[#allocation10 + $0x100]]
        %v3215 = vstv %s3214
        %v3216 = vmul.f32 %v3215, %v2559
        %v3217 = vmul.f32 %v3215, %v2560
        %v3218 = vadd.f32 %v412, %v3216
        %v3219 = vadd.f32 %v413, %v3217
        %s3220 = sld [smem:[#allocation10 + $0x101]]
        %v3221 = vstv %s3220
        %v3222 = vmul.f32 %v3221, %v2568
        %v3223 = vmul.f32 %v3221, %v2569
        %v3224 = vadd.f32 %v3218, %v3222
        %v3225 = vadd.f32 %v3219, %v3223
        %s3226 = sld [smem:[#allocation10 + $0x102]]
        %v3227 = vstv %s3226
        %v3228 = vmul.f32 %v3227, %v2577
        %v3229 = vmul.f32 %v3227, %v2578
        %v3230 = vadd.f32 %v3224, %v3228
        %v3231 = vadd.f32 %v3225, %v3229
        %s3232 = sld [smem:[#allocation10 + $0x103]]
        %v3233 = vstv %s3232
        %v3234 = vmul.f32 %v3233, %v2586
        %v3235 = vmul.f32 %v3233, %v2587
        %v3236 = vadd.f32 %v3230, %v3234
        %v3237 = vadd.f32 %v3231, %v3235
        %s3238 = sld [smem:[#allocation10 + $0x104]]
        %v3239 = vstv %s3238
        %v3240 = vmul.f32 %v3239, %v2526
        %v3241 = vmul.f32 %v3239, %v2523
        %v3242 = vadd.f32 %v3236, %v3240
        %v3243 = vadd.f32 %v3237, %v3241
        %s3244 = sld [smem:[#allocation10 + $0x105]]
        %v3245 = vstv %s3244
        %v3246 = vmul.f32 %v3245, %v2534
        %v3247 = vmul.f32 %v3245, %v2531
        %v3248 = vadd.f32 %v3242, %v3246
        %v3249 = vadd.f32 %v3243, %v3247
        %s3250 = sld [smem:[#allocation10 + $0x106]]
        %v3251 = vstv %s3250
        %v3252 = vmul.f32 %v3251, %v2542
        %v3253 = vmul.f32 %v3251, %v2539
        %v3254 = vadd.f32 %v3248, %v3252
        %v3255 = vadd.f32 %v3249, %v3253
        %s3256 = sld [smem:[#allocation10 + $0x107]]
        %v3257 = vstv %s3256
        %v3258 = vmul.f32 %v3257, %v2550
        %v3259 = vmul.f32 %v3257, %v2547
        %v3260 = vadd.f32 %v3254, %v3258
        %v3261 = vadd.f32 %v3255, %v3259
        %s3262 = sld [smem:[#allocation10 + $0x108]]
        %v3263 = vstv %s3262
        %v3264 = vmul.f32 %v3263, %v2595
        %v3265 = vmul.f32 %v3263, %v2596
        %v3266 = vadd.f32 %v3260, %v3264
        %v3267 = vadd.f32 %v3261, %v3265
        %s3268 = sld [smem:[#allocation10 + $0x109]]
        %v3269 = vstv %s3268
        %v3270 = vmul.f32 %v3269, %v2603
        %v3271 = vmul.f32 %v3269, %v2604
        %v3272 = vadd.f32 %v3266, %v3270
        %v3273 = vadd.f32 %v3267, %v3271
        %s3274 = sld [smem:[#allocation10 + $0x10a]]
        %v3275 = vstv %s3274
        %v3276 = vmul.f32 %v3275, %v2611
        %v3277 = vmul.f32 %v3275, %v2612
        %v3278 = vadd.f32 %v3272, %v3276
        %v3279 = vadd.f32 %v3273, %v3277
        %s3280 = sld [smem:[#allocation10 + $0x10b]]
        %v3281 = vstv %s3280
        %v3282 = vmul.f32 %v3281, %v2619
        %v3283 = vmul.f32 %v3281, %v2620
        %v3284 = vadd.f32 %v3278, %v3282
        %v3285 = vadd.f32 %v3279, %v3283
        %s3286 = sld [smem:[#allocation10 + $0x10c]]
        %v3287 = vstv %s3286
        %v3288 = vmul.f32 %v3287, %v2627
        %v3289 = vmul.f32 %v3287, %v2628
        %v3290 = vadd.f32 %v3284, %v3288
        %v3291 = vadd.f32 %v3285, %v3289
        %s3292 = sld [smem:[#allocation10 + $0x10d]]
        %v3293 = vstv %s3292
        %v3294 = vmul.f32 %v3293, %v2635
        %v3295 = vmul.f32 %v3293, %v2636
        %v3296 = vadd.f32 %v3290, %v3294
        %v3297 = vadd.f32 %v3291, %v3295
        %s3298 = sld [smem:[#allocation10 + $0x10e]]
        %v3299 = vstv %s3298
        %v3300 = vmul.f32 %v3299, %v2643
        %v3301 = vmul.f32 %v3299, %v2644
        %v3302 = vadd.f32 %v3296, %v3300
        %v3303 = vadd.f32 %v3297, %v3301
        %s3304 = sld [smem:[#allocation10 + $0x10f]]
        %v3305 = vstv %s3304
        %v3306 = vmul.f32 %v3305, %v2651
        %v3307 = vmul.f32 %v3305, %v2652
        %v3308 = vadd.f32 %v3302, %v3306
        %v3309 = vadd.f32 %v3303, %v3307
        %s3310 = sld [smem:[#allocation10 + $0x110]]
        %v3311 = vstv %s3310
        %v3312 = vmul.f32 %v3311, %v2060
        %v3313 = vmul.f32 %v3311, %v2061
        %v3314 = vadd.f32 %v3308, %v3312
        %v3315 = vadd.f32 %v3309, %v3313
        %s3316 = sld [smem:[#allocation10 + $0x111]]
        %v3317 = vstv %s3316
        %v3318 = vmul.f32 %v3317, %v2212
        %v3319 = vmul.f32 %v3317, %v2213
        %v3320 = vadd.f32 %v3314, %v3318
        %v3321 = vadd.f32 %v3315, %v3319
        %s3322 = sld [smem:[#allocation10 + $0x112]]
        %v3323 = vstv %s3322
        %v3324 = vmul.f32 %v3323, %v2364
        %v3325 = vmul.f32 %v3323, %v2365
        %v3326 = vadd.f32 %v3320, %v3324
        %v3327 = vadd.f32 %v3321, %v3325
        %s3328 = sld [smem:[#allocation10 + $0x113]]
        %v3329 = vstv %s3328
        %v3330 = vmul.f32 %v3329, %v2516
        %v3331 = vmul.f32 %v3329, %v2517
        %v3332 = vadd.f32 %v3326, %v3330
        %v3333 = vadd.f32 %v3327, %v3331
        %s3334 = sld [smem:[#allocation10 + $0x114]]
        %v3335 = vstv %s3334
        %v3336 = vmul.f32 %v3335, %v2659
        %v3337 = vmul.f32 %v3335, %v2660
        %v3338 = vadd.f32 %v3332, %v3336
        %v3339 = vadd.f32 %v3333, %v3337
        %s3340 = sld [smem:[#allocation10 + $0x115]]
        %v3341 = vstv %s3340
        %v3342 = vmul.f32 %v3341, %v2667
        %v3343 = vmul.f32 %v3341, %v2668
        %v3344 = vadd.f32 %v3338, %v3342
        %v3345 = vadd.f32 %v3339, %v3343
        %s3346 = sld [smem:[#allocation10 + $0x116]]
        %v3347 = vstv %s3346
        %v3348 = vmul.f32 %v3347, %v2675
        %v3349 = vmul.f32 %v3347, %v2676
        %v3350 = vadd.f32 %v3344, %v3348
        %v3351 = vadd.f32 %v3345, %v3349
        %s3352 = sld [smem:[#allocation10 + $0x117]]
        %v3353 = vstv %s3352
        %v3354 = vmul.f32 %v3353, %v2683
        %v3355 = vmul.f32 %v3353, %v2684
        %v3356 = vadd.f32 %v3350, %v3354
        %v3357 = vadd.f32 %v3351, %v3355
        %s3358 = sld [smem:[#allocation10 + $0x118]]
        %v3359 = vstv %s3358
        %v3360 = vmul.f32 %v3359, %v2716
        %v3361 = vmul.f32 %v3359, %v2717
        %v3362 = vadd.f32 %v3356, %v3360
        %v3363 = vadd.f32 %v3357, %v3361
        %s3364 = sld [smem:[#allocation10 + $0x119]]
        %v3365 = vstv %s3364
        %v3366 = vmul.f32 %v3365, %v2725
        %v3367 = vmul.f32 %v3365, %v2726
        %v3368 = vadd.f32 %v3362, %v3366
        %v3369 = vadd.f32 %v3363, %v3367
        %s3370 = sld [smem:[#allocation10 + $0x11a]]
        %v3371 = vstv %s3370
        %v3372 = vmul.f32 %v3371, %v2734
        %v3373 = vmul.f32 %v3371, %v2735
        %v3374 = vadd.f32 %v3368, %v3372
        %v3375 = vadd.f32 %v3369, %v3373
        %s3376 = sld [smem:[#allocation10 + $0x11b]]
        %v3377 = vstv %s3376
        %v3378 = vmul.f32 %v3377, %v2743
        %v3379 = vmul.f32 %v3377, %v2744
        %v3380 = vadd.f32 %v3374, %v3378
        %v3381 = vadd.f32 %v3375, %v3379
        %s3382 = sld [smem:[#allocation10 + $0x11c]]
        %v3383 = vstv %s3382
        %v3384 = vmul.f32 %v3383, %v2687
        %v3385 = vmul.f32 %v3383, %v2690
        %v3386 = vadd.f32 %v3380, %v3384
        %v3387 = vadd.f32 %v3381, %v3385
        %s3388 = sld [smem:[#allocation10 + $0x11d]]
        %v3389 = vstv %s3388
        %v3390 = vmul.f32 %v3389, %v2693
        %v3391 = vmul.f32 %v3389, %v2696
        %v3392 = vadd.f32 %v3386, %v3390
        %v3393 = vadd.f32 %v3387, %v3391
        %s3394 = sld [smem:[#allocation10 + $0x11e]]
        %v3395 = vstv %s3394
        %v3396 = vmul.f32 %v3395, %v2699
        %v3397 = vmul.f32 %v3395, %v2702
        %v3398 = vadd.f32 %v3392, %v3396
        %v3399 = vadd.f32 %v3393, %v3397
        %s3400 = sld [smem:[#allocation10 + $0x11f]]
        %v3401 = vstv %s3400
        %v3402 = vmul.f32 %v3401, %v2705
        %v3403 = vmul.f32 %v3401, %v2708
        %v3404 = vadd.f32 %v3398, %v3402
        %v3405 = vadd.f32 %v3399, %v3403
        %s3406 = sld [smem:[#allocation10 + $0x120]]
        %v3407 = vstv %s3406
        %v3408 = vmul.f32 %v3407, %v2751
        %v3409 = vmul.f32 %v3407, %v2752
        %v3410 = vadd.f32 %v3404, %v3408
        %v3411 = vadd.f32 %v3405, %v3409
        %s3412 = sld [smem:[#allocation10 + $0x121]]
        %v3413 = vstv %s3412
        %v3414 = vmul.f32 %v3413, %v2759
        %v3415 = vmul.f32 %v3413, %v2760
        %v3416 = vadd.f32 %v3410, %v3414
        %v3417 = vadd.f32 %v3411, %v3415
        %s3418 = sld [smem:[#allocation10 + $0x122]]
        %v3419 = vstv %s3418
        %v3420 = vmul.f32 %v3419, %v2767
        %v3421 = vmul.f32 %v3419, %v2768
        %v3422 = vadd.f32 %v3416, %v3420
        %v3423 = vadd.f32 %v3417, %v3421
        %s3424 = sld [smem:[#allocation10 + $0x123]]
        %v3425 = vstv %s3424
        %v3426 = vmul.f32 %v3425, %v2775
        %v3427 = vmul.f32 %v3425, %v2776
        %v3428 = vadd.f32 %v3422, %v3426
        %v3429 = vadd.f32 %v3423, %v3427
        %s3430 = scalar_lea.vmem %s400, 32 [#allocation12]
        %3431 = vst.msk [vmem:[%s3430] sm:$0xff] %vm1894, %v3428
        %3432 = vst.msk [vmem:[%s3430 + $0x8] sm:$0xff] %vm1894, %v3429
        %s3433 = sld [smem:[#allocation10 + $0x180]]
        %v3434 = vstv %s3433
        %v3435 = vmul.f32 %v3434, %v2559
        %v3436 = vmul.f32 %v3434, %v2560
        %v3437 = vadd.f32 %v415, %v3435
        %v3438 = vadd.f32 %v416, %v3436
        %s3439 = sld [smem:[#allocation10 + $0x181]]
        %v3440 = vstv %s3439
        %v3441 = vmul.f32 %v3440, %v2568
        %v3442 = vmul.f32 %v3440, %v2569
        %v3443 = vadd.f32 %v3437, %v3441
        %v3444 = vadd.f32 %v3438, %v3442
        %s3445 = sld [smem:[#allocation10 + $0x182]]
        %v3446 = vstv %s3445
        %v3447 = vmul.f32 %v3446, %v2577
        %v3448 = vmul.f32 %v3446, %v2578
        %v3449 = vadd.f32 %v3443, %v3447
        %v3450 = vadd.f32 %v3444, %v3448
        %s3451 = sld [smem:[#allocation10 + $0x183]]
        %v3452 = vstv %s3451
        %v3453 = vmul.f32 %v3452, %v2586
        %v3454 = vmul.f32 %v3452, %v2587
        %v3455 = vadd.f32 %v3449, %v3453
        %v3456 = vadd.f32 %v3450, %v3454
        %s3457 = sld [smem:[#allocation10 + $0x184]]
        %v3458 = vstv %s3457
        %v3459 = vmul.f32 %v3458, %v2526
        %v3460 = vmul.f32 %v3458, %v2523
        %v3461 = vadd.f32 %v3455, %v3459
        %v3462 = vadd.f32 %v3456, %v3460
        %s3463 = sld [smem:[#allocation10 + $0x185]]
        %v3464 = vstv %s3463
        %v3465 = vmul.f32 %v3464, %v2534
        %v3466 = vmul.f32 %v3464, %v2531
        %v3467 = vadd.f32 %v3461, %v3465
        %v3468 = vadd.f32 %v3462, %v3466
        %s3469 = sld [smem:[#allocation10 + $0x186]]
        %v3470 = vstv %s3469
        %v3471 = vmul.f32 %v3470, %v2542
        %v3472 = vmul.f32 %v3470, %v2539
        %v3473 = vadd.f32 %v3467, %v3471
        %v3474 = vadd.f32 %v3468, %v3472
        %s3475 = sld [smem:[#allocation10 + $0x187]]
        %v3476 = vstv %s3475
        %v3477 = vmul.f32 %v3476, %v2550
        %v3478 = vmul.f32 %v3476, %v2547
        %v3479 = vadd.f32 %v3473, %v3477
        %v3480 = vadd.f32 %v3474, %v3478
        %s3481 = sld [smem:[#allocation10 + $0x188]]
        %v3482 = vstv %s3481
        %v3483 = vmul.f32 %v3482, %v2595
        %v3484 = vmul.f32 %v3482, %v2596
        %v3485 = vadd.f32 %v3479, %v3483
        %v3486 = vadd.f32 %v3480, %v3484
        %s3487 = sld [smem:[#allocation10 + $0x189]]
        %v3488 = vstv %s3487
        %v3489 = vmul.f32 %v3488, %v2603
        %v3490 = vmul.f32 %v3488, %v2604
        %v3491 = vadd.f32 %v3485, %v3489
        %v3492 = vadd.f32 %v3486, %v3490
        %s3493 = sld [smem:[#allocation10 + $0x18a]]
        %v3494 = vstv %s3493
        %v3495 = vmul.f32 %v3494, %v2611
        %v3496 = vmul.f32 %v3494, %v2612
        %v3497 = vadd.f32 %v3491, %v3495
        %v3498 = vadd.f32 %v3492, %v3496
        %s3499 = sld [smem:[#allocation10 + $0x18b]]
        %v3500 = vstv %s3499
        %v3501 = vmul.f32 %v3500, %v2619
        %v3502 = vmul.f32 %v3500, %v2620
        %v3503 = vadd.f32 %v3497, %v3501
        %v3504 = vadd.f32 %v3498, %v3502
        %s3505 = sld [smem:[#allocation10 + $0x18c]]
        %v3506 = vstv %s3505
        %v3507 = vmul.f32 %v3506, %v2627
        %v3508 = vmul.f32 %v3506, %v2628
        %v3509 = vadd.f32 %v3503, %v3507
        %v3510 = vadd.f32 %v3504, %v3508
        %s3511 = sld [smem:[#allocation10 + $0x18d]]
        %v3512 = vstv %s3511
        %v3513 = vmul.f32 %v3512, %v2635
        %v3514 = vmul.f32 %v3512, %v2636
        %v3515 = vadd.f32 %v3509, %v3513
        %v3516 = vadd.f32 %v3510, %v3514
        %s3517 = sld [smem:[#allocation10 + $0x18e]]
        %v3518 = vstv %s3517
        %v3519 = vmul.f32 %v3518, %v2643
        %v3520 = vmul.f32 %v3518, %v2644
        %v3521 = vadd.f32 %v3515, %v3519
        %v3522 = vadd.f32 %v3516, %v3520
        %s3523 = sld [smem:[#allocation10 + $0x18f]]
        %v3524 = vstv %s3523
        %v3525 = vmul.f32 %v3524, %v2651
        %v3526 = vmul.f32 %v3524, %v2652
        %v3527 = vadd.f32 %v3521, %v3525
        %v3528 = vadd.f32 %v3522, %v3526
        %s3529 = sld [smem:[#allocation10 + $0x190]]
        %v3530 = vstv %s3529
        %v3531 = vmul.f32 %v3530, %v2060
        %v3532 = vmul.f32 %v3530, %v2061
        %v3533 = vadd.f32 %v3527, %v3531
        %v3534 = vadd.f32 %v3528, %v3532
        %s3535 = sld [smem:[#allocation10 + $0x191]]
        %v3536 = vstv %s3535
        %v3537 = vmul.f32 %v3536, %v2212
        %v3538 = vmul.f32 %v3536, %v2213
        %v3539 = vadd.f32 %v3533, %v3537
        %v3540 = vadd.f32 %v3534, %v3538
        %s3541 = sld [smem:[#allocation10 + $0x192]]
        %v3542 = vstv %s3541
        %v3543 = vmul.f32 %v3542, %v2364
        %v3544 = vmul.f32 %v3542, %v2365
        %v3545 = vadd.f32 %v3539, %v3543
        %v3546 = vadd.f32 %v3540, %v3544
        %s3547 = sld [smem:[#allocation10 + $0x193]]
        %v3548 = vstv %s3547
        %v3549 = vmul.f32 %v3548, %v2516
        %v3550 = vmul.f32 %v3548, %v2517
        %v3551 = vadd.f32 %v3545, %v3549
        %v3552 = vadd.f32 %v3546, %v3550
        %s3553 = sld [smem:[#allocation10 + $0x194]]
        %v3554 = vstv %s3553
        %v3555 = vmul.f32 %v3554, %v2659
        %v3556 = vmul.f32 %v3554, %v2660
        %v3557 = vadd.f32 %v3551, %v3555
        %v3558 = vadd.f32 %v3552, %v3556
        %s3559 = sld [smem:[#allocation10 + $0x195]]
        %v3560 = vstv %s3559
        %v3561 = vmul.f32 %v3560, %v2667
        %v3562 = vmul.f32 %v3560, %v2668
        %v3563 = vadd.f32 %v3557, %v3561
        %v3564 = vadd.f32 %v3558, %v3562
        %s3565 = sld [smem:[#allocation10 + $0x196]]
        %v3566 = vstv %s3565
        %v3567 = vmul.f32 %v3566, %v2675
        %v3568 = vmul.f32 %v3566, %v2676
        %v3569 = vadd.f32 %v3563, %v3567
        %v3570 = vadd.f32 %v3564, %v3568
        %s3571 = sld [smem:[#allocation10 + $0x197]]
        %v3572 = vstv %s3571
        %v3573 = vmul.f32 %v3572, %v2683
        %v3574 = vmul.f32 %v3572, %v2684
        %v3575 = vadd.f32 %v3569, %v3573
        %v3576 = vadd.f32 %v3570, %v3574
        %s3577 = sld [smem:[#allocation10 + $0x198]]
        %v3578 = vstv %s3577
        %v3579 = vmul.f32 %v3578, %v2716
        %v3580 = vmul.f32 %v3578, %v2717
        %v3581 = vadd.f32 %v3575, %v3579
        %v3582 = vadd.f32 %v3576, %v3580
        %s3583 = sld [smem:[#allocation10 + $0x199]]
        %v3584 = vstv %s3583
        %v3585 = vmul.f32 %v3584, %v2725
        %v3586 = vmul.f32 %v3584, %v2726
        %v3587 = vadd.f32 %v3581, %v3585
        %v3588 = vadd.f32 %v3582, %v3586
        %s3589 = sld [smem:[#allocation10 + $0x19a]]
        %v3590 = vstv %s3589
        %v3591 = vmul.f32 %v3590, %v2734
        %v3592 = vmul.f32 %v3590, %v2735
        %v3593 = vadd.f32 %v3587, %v3591
        %v3594 = vadd.f32 %v3588, %v3592
        %s3595 = sld [smem:[#allocation10 + $0x19b]]
        %v3596 = vstv %s3595
        %v3597 = vmul.f32 %v3596, %v2743
        %v3598 = vmul.f32 %v3596, %v2744
        %v3599 = vadd.f32 %v3593, %v3597
        %v3600 = vadd.f32 %v3594, %v3598
        %s3601 = sld [smem:[#allocation10 + $0x19c]]
        %v3602 = vstv %s3601
        %v3603 = vmul.f32 %v3602, %v2687
        %v3604 = vmul.f32 %v3602, %v2690
        %v3605 = vadd.f32 %v3599, %v3603
        %v3606 = vadd.f32 %v3600, %v3604
        %s3607 = sld [smem:[#allocation10 + $0x19d]]
        %v3608 = vstv %s3607
        %v3609 = vmul.f32 %v3608, %v2693
        %v3610 = vmul.f32 %v3608, %v2696
        %v3611 = vadd.f32 %v3605, %v3609
        %v3612 = vadd.f32 %v3606, %v3610
        %s3613 = sld [smem:[#allocation10 + $0x19e]]
        %v3614 = vstv %s3613
        %v3615 = vmul.f32 %v3614, %v2699
        %v3616 = vmul.f32 %v3614, %v2702
        %v3617 = vadd.f32 %v3611, %v3615
        %v3618 = vadd.f32 %v3612, %v3616
        %s3619 = sld [smem:[#allocation10 + $0x19f]]
        %v3620 = vstv %s3619
        %v3621 = vmul.f32 %v3620, %v2705
        %v3622 = vmul.f32 %v3620, %v2708
        %v3623 = vadd.f32 %v3617, %v3621
        %v3624 = vadd.f32 %v3618, %v3622
        %s3625 = sld [smem:[#allocation10 + $0x1a0]]
        %v3626 = vstv %s3625
        %v3627 = vmul.f32 %v3626, %v2751
        %v3628 = vmul.f32 %v3626, %v2752
        %v3629 = vadd.f32 %v3623, %v3627
        %v3630 = vadd.f32 %v3624, %v3628
        %s3631 = sld [smem:[#allocation10 + $0x1a1]]
        %v3632 = vstv %s3631
        %v3633 = vmul.f32 %v3632, %v2759
        %v3634 = vmul.f32 %v3632, %v2760
        %v3635 = vadd.f32 %v3629, %v3633
        %v3636 = vadd.f32 %v3630, %v3634
        %s3637 = sld [smem:[#allocation10 + $0x1a2]]
        %v3638 = vstv %s3637
        %v3639 = vmul.f32 %v3638, %v2767
        %v3640 = vmul.f32 %v3638, %v2768
        %v3641 = vadd.f32 %v3635, %v3639
        %v3642 = vadd.f32 %v3636, %v3640
        %s3643 = sld [smem:[#allocation10 + $0x1a3]]
        %v3644 = vstv %s3643
        %v3645 = vmul.f32 %v3644, %v2775
        %v3646 = vmul.f32 %v3644, %v2776
        %v3647 = vadd.f32 %v3641, %v3645
        %v3648 = vadd.f32 %v3642, %v3646
        %s3649 = scalar_lea.vmem %s400, 48 [#allocation12]
        %3650 = vst.msk [vmem:[%s3649] sm:$0xff] %vm1894, %v3647
        %3651 = vst.msk [vmem:[%s3649 + $0x8] sm:$0xff] %vm1894, %v3648
        %s3652 = sand.u32 %s211, 1
        %s3653 = scalar_lea.sflag [#allocation3], %s3652
        %s3654 = sand.u32 %s211, 1
        %s3655 = smul.addr %s3654, 16
        %s3656 = scalar_lea.vmem [#allocation11], %s3655
        %s3657 = sand.u32 %s237, 1
        %s3658 = scalar_lea.sflag [#allocation13], %s3657
        %s3659 = sand.u32 %s237, 1
        %s3660 = smul.addr %s3659, 64
        %s3661 = scalar_lea.vmem [#allocation12], %s3660
        // Predicated region
        $region73: #{orient_forward.1} parent=51 // pred_check
          %p3662 = pneg %p221
        $region74: #{orient_forward.1} parent=51 // pred_check_branch
          %3664 = sbr.rel (%p3662) target = $region76
        $region75: #{orient_forward.1} parent=51 // pred_region
          %s3666 = ssub.s32 256, 256
          %3667 = vsyncadd %s3653, %s3666
          %s3668 = smul.addr %s30, 2
          %s3669 = smul.addr %s3668, 128
          %s3670 = scalar_lea.hbm %s8, %s3669
          %s3671 = sshll.u32 %s3656, 4
          %s3672 = int_to_ptr.vmem [resolvable:$true] %s3671
          %3677 = dma.vmem_to_hbm [thread:$0]  %s3672, 256, %s3670, %s3653, 128, 128, 8
        $region76: #{orient_forward.1} parent=51 // pred_fallthru
          _
        // Predicated region
        $region77: #{orient_forward.1} parent=51 // pred_check
          %p3678 = pneg %p247
        $region78: #{orient_forward.1} parent=51 // pred_check_branch
          %3680 = sbr.rel (%p3678) target = $region80
        $region79: #{orient_forward.1} parent=51 // pred_region
          %s3682 = ssub.s32 1024, 1024
          %3683 = vsyncadd %s3658, %s3682
          %s3684 = smul.addr %s30, 8
          %s3685 = smul.addr %s3684, 128
          %s3686 = scalar_lea.hbm %s9, %s3685
          %s3687 = sshll.u32 %s3661, 4
          %s3688 = int_to_ptr.vmem [resolvable:$true] %s3687
          %3693 = dma.vmem_to_hbm [thread:$0]  %s3688, 1024, %s3686, %s3658, 128, 128, 8
        $region80: #{orient_forward.1} parent=51 // pred_fallthru
          _
      $region52: #{orient_forward.1} parent=5 // pred_fallthru
        _
      %p3694 = scmp.le.s32.totalorder 2, %s25
      // Predicated region
      $region81: #{orient_forward.1} parent=5 // pred_check
        %p3695 = pneg %p3694
      $region82: #{orient_forward.1} parent=5 // pred_check_branch
        %3697 = sbr.rel (%p3695) target = $region84
      $region83: #{orient_forward.1} parent=5 // pred_region
        %s3698 = ssub.s32 %s25, 2
        // Predicated region
        $region85: #{orient_forward.1} parent=83 // pred_check
          %p3699 = pneg %p227
        $region86: #{orient_forward.1} parent=83 // pred_check_branch
          %3701 = sbr.rel (%p3699) target = $region88
        $region87: #{orient_forward.1} parent=83 // pred_region
          %s3702 = sand.u32 %s212, 1
          %s3703 = scalar_lea.sflag [#allocation3], %s3702
          %s3704 = sand.u32 %s212, 1
          %s3705 = smul.addr %s3704, 16
          %s3706 = scalar_lea.vmem [#allocation11], %s3705
          %3707 = dma.done %s3703, 256
        $region88: #{orient_forward.1} parent=83 // pred_fallthru
          _
        // Predicated region
        $region89: #{orient_forward.1} parent=83 // pred_check
          %p3708 = pneg %p253
        $region90: #{orient_forward.1} parent=83 // pred_check_branch
          %3710 = sbr.rel (%p3708) target = $region92
        $region91: #{orient_forward.1} parent=83 // pred_region
          %s3711 = sand.u32 %s238, 1
          %s3712 = scalar_lea.sflag [#allocation13], %s3711
          %s3713 = sand.u32 %s238, 1
          %s3714 = smul.addr %s3713, 64
          %s3715 = scalar_lea.vmem [#allocation12], %s3714
          %3716 = dma.done %s3712, 1024
        $region92: #{orient_forward.1} parent=83 // pred_fallthru
          _
      $region84: #{orient_forward.1} parent=5 // pred_fallthru
        _
    $region6: #{orient_forward.1} parent=1 // loop_footer
      %s29 = sadd.s32 1, %s25
    $region7: #{orient_forward.1} parent=1 // loop_footer_branch
      %24 = sbr.rel target = $region3
    $region8: #{orient_forward.1} parent=1 // loop_exit
      _
    %3717 = vsyncpa [#allocation3], 1
    %s3718 = scalar_lea.sflag [#allocation3], 1
    %3719 = vsyncpa %s3718, 1
    %3720 = vsyncpa [#allocation13], 1
    %s3721 = scalar_lea.sflag [#allocation13], 1
    %3722 = vsyncpa %s3721, 1
    %3723 = vsyncpa [#allocation4], 1
    %s3724 = scalar_lea.sflag [#allocation4], 1
    %3725 = vsyncpa %s3724, 1
    %3726 = vsyncpa [#allocation6], 1
    %3727 = vsyncpa [#allocation9], 1

</llo_original>
